<compile_context>
chip_gen: v7x
topology: tpu7x:2x2x1
jax: 0.10.0
libtpu: 0.0.40
codegen_flags: <defaults>
</compile_context>

<pallas_src>
import functools

import jax
import jax.numpy as jnp
from jax import lax
from jax.experimental import pallas as pl
from jax.experimental.pallas import tpu as pltpu


# ----------------------------------------------------------------------------
# Helpers
# ----------------------------------------------------------------------------
def _round_up(n, m):
    return (n + m - 1) // m * m


@functools.lru_cache(maxsize=None)
def _vmem_limit():
    """3/4 of physical VMEM (v5e/v6e: 128 MiB, v7x: 64 MiB); None -> default."""
    try:
        cap = int(pltpu.get_tpu_info().vmem_capacity_bytes)
        return (cap * 3) // 4
    except Exception:
        return None


# ----------------------------------------------------------------------------
# Kernel 1: fused Conv2d(3x3, pad=1) + ReLU + MaxPool(2x2, stride 2)
#           taps built in-kernel from even/odd phase planes, channel-major out
# ----------------------------------------------------------------------------
def _conv_relu_pool_kernel(xp_ref, w_ref, b_ref, o_ref, *, jw):
    # xp_ref: (1, 2, 2, Cin_p, Lin)  even/odd (row, col) phase planes of the
    #         zero-padded NCHW image; spatial dims flattened with row width jw.
    # w_ref:  (Cout, 9*Cin_p)        conv weight, (dy,dx)-major / channel-minor.
    # b_ref:  (Cout, 1)
    # o_ref:  (1, Cout, Nq)          pooled output, channel-major, row width jw.
    nq = o_ref.shape[-1]
    w = w_ref[...]

    out = None
    for oy in range(2):                    # pool-phase rows
        for ox in range(2):                # pool-phase cols
            taps = []
            for dy in range(3):
                py, a = (oy + dy) % 2, (oy + dy) // 2
                for dx in range(3):
                    px, b2 = (ox + dx) % 2, (ox + dx) // 2
                    s = a * jw + b2        # static unit-shift into the plane
                    taps.append(xp_ref[0, py, px, :, pl.ds(s, nq)])
            patch = jnp.concatenate(taps, axis=0)          # (9*Cin_p, Nq)
            acc = jnp.dot(w, patch, preferred_element_type=jnp.float32)
            out = acc if out is None else jnp.maximum(out, acc)

    # Bias + ReLU hoisted out of the phase loop (exact: max/relu are monotone,
    # the bias is phase-invariant) -> one broadcast/add/relu per tile.
    o_ref[0] = jnp.maximum(out + b_ref[...], 0.0).astype(o_ref.dtype)


def conv_relu_pool(x_nchw, w_oihw, b):
    """x_nchw: (B, Cin, H, W); w_oihw: (Cout, Cin, 3, 3); b: (Cout,).

    Returns pooled activations in NCHW: (B, Cout, H//2, W//2)."""
    B, Cin, H, W = x_nchw.shape
    Cout = w_oihw.shape[0]
    assert H % 2 == 0 and W % 2 == 0
    Hh, Wh = H // 2, W // 2
    Jw = Wh + 1                       # padded-row-width layout inside the kernel
    cin_p = _round_up(Cin, 8)         # sublane-aligned channel count (zero-pad)
    nq = _round_up(Hh * Jw, 128)      # lane-dense, 128-aligned output width
    lin = _round_up(nq + Jw + 1, 128)
    l0 = (Hh + 1) * Jw

    # Zero-pad channels (sublane alignment) and the +1 spatial conv border.
    xp = jnp.pad(x_nchw, ((0, 0), (0, cin_p - Cin), (1, 1), (1, 1)))
    # Even/odd (row, col) phase split: stride-2 pooling accesses become unit
    # shifts inside the kernel.  This is ~1x the input bytes (vs ~9x im2col).
    e = xp.reshape(B, cin_p, Hh + 1, 2, Jw, 2).transpose(0, 3, 5, 1, 2, 4)
    ef = e.reshape(B, 2, 2, cin_p, l0)
    ef = jnp.pad(ef, ((0, 0), (0, 0), (0, 0), (0, 0), (0, lin - l0)))

    # Weight in (dy,dx)-major / channel-minor order to match the tap stacking.
    w_p = jnp.pad(w_oihw, ((0, 0), (0, cin_p - Cin), (0, 0), (0, 0)))
    w_mat = w_p.transpose(0, 2, 3, 1).reshape(Cout, 9 * cin_p)
    b_mat = b.reshape(Cout, 1)

    kernel = functools.partial(_conv_relu_pool_kernel, jw=Jw)
    out = pl.pallas_call(
        kernel,
        out_shape=jax.ShapeDtypeStruct((B, Cout, nq), x_nchw.dtype),
        grid=(B,),                          # full image per step; fits VMEM
        in_specs=[
            pl.BlockSpec((1, 2, 2, cin_p, lin), lambda bi: (bi, 0, 0, 0, 0)),
            pl.BlockSpec((Cout, 9 * cin_p), lambda bi: (0, 0)),
            pl.BlockSpec((Cout, 1), lambda bi: (0, 0)),
        ],
        out_specs=pl.BlockSpec((1, Cout, nq), lambda bi: (bi, 0, 0)),
        compiler_params=pltpu.CompilerParams(
            dimension_semantics=("parallel",),
            vmem_limit_bytes=_vmem_limit()),
    )(ef, w_mat, b_mat)

    # Drop the padded-row-width layout back to compact NCHW pooled activations.
    out = out[:, :, : Hh * Jw].reshape(B, Cout, Hh, Jw)[:, :, :, :Wh]
    return out


# ----------------------------------------------------------------------------
# Kernel 2: FC head  (Linear -> ReLU -> Linear), FC1 weight streamed over F
# ----------------------------------------------------------------------------
def _mlp_kernel(x_ref, w1_ref, b1_ref, w2_ref, b2_ref, o_ref, acc_ref):
    k = pl.program_id(0)

    @pl.when(k == 0)
    def _():
        acc_ref[...] = jnp.zeros_like(acc_ref)

    # Partial product for this F-tile.  The (tiny) activation row is cast to
    # the weight's stream dtype so a bf16 weight stays on the bf16 MXU path
    # (no per-step f32 upcast of the streamed slab); accumulation stays f32.
    acc_ref[...] += jnp.dot(x_ref[...].astype(w1_ref.dtype), w1_ref[...],
                            preferred_element_type=jnp.float32)

    @pl.when(k == pl.num_programs(0) - 1)
    def _():
        h = jnp.maximum(acc_ref[...] + b1_ref[...], 0.0)
        y = jnp.dot(h.astype(w2_ref.dtype), w2_ref[...],
                    preferred_element_type=jnp.float32) + b2_ref[...]
        o_ref[...] = y.astype(o_ref.dtype)


def _pick_fc1_tile(f, hd, itemsize, tile_bytes):
    """Lane-aligned F-tile whose (TF, hd) weight slab is ~tile_bytes.

    Prefers a multiple-of-128 divisor of f (no padding); otherwise returns the
    byte-sized tile and the caller zero-pads F up to a multiple of it."""
    target = max(128, (tile_bytes // (hd * itemsize)) // 128 * 128)
    if f <= target:
        return f if f % 128 == 0 else _round_up(f, 128)
    for t in range(target, 127, -128):
        if f % t == 0:
            return t
    return target


def mlp_head(x, w1, b1, w2, b2, *, tile_bytes=8 << 20):
    """x: (B, F); w1: (Fw, Hd) with Fw >= F (stream dtype = w1.dtype);
    b1: (Hd,); w2: (Hd, A); b2: (A,)."""
    B, F = x.shape
    Fw, Hd = w1.shape
    A = w2.shape[1]

    TF = _pick_fc1_tile(Fw, Hd, jnp.dtype(w1.dtype).itemsize, tile_bytes)
    n_k = pl.cdiv(Fw, TF)
    Fp = n_k * TF
    if Fp != Fw:
        # Fallback only (prepare_params pre-pads the weight outside the graph).
        w1 = jnp.pad(w1, ((0, Fp - Fw), (0, 0)))
    if Fp != F:
        x = jnp.pad(x, ((0, 0), (0, Fp - F)))   # zero cols: exact, tiny

    return pl.pallas_call(
        _mlp_kernel,
        out_shape=jax.ShapeDtypeStruct((B, A), x.dtype),
        grid=(n_k,),
        in_specs=[
            pl.BlockSpec((B, TF), lambda k: (0, k)),
            pl.BlockSpec((TF, Hd), lambda k: (k, 0)),
            pl.BlockSpec((1, Hd), lambda k: (0, 0)),
            pl.BlockSpec((Hd, A), lambda k: (0, 0)),
            pl.BlockSpec((1, A), lambda k: (0, 0)),
        ],
        out_specs=pl.BlockSpec((B, A), lambda k: (0, 0)),
        scratch_shapes=[pltpu.VMEM((B, Hd), jnp.float32)],
        compiler_params=pltpu.CompilerParams(
            dimension_semantics=("arbitrary",),
            vmem_limit_bytes=_vmem_limit()),
    )(x, w1, b1.reshape(1, -1), w2, b2.reshape(1, -1))


# ----------------------------------------------------------------------------
# Parameter preparation (cast/pad the streamed FC1 weight ONCE, outside jit)
# ----------------------------------------------------------------------------
def prepare_params(params, fc1_stream_dtype=jnp.bfloat16, tile_bytes=8 << 20):
    p = dict(params)
    w1 = jnp.asarray(params["w_fc1"], fc1_stream_dtype)
    F, Hd = w1.shape
    TF = _pick_fc1_tile(F, Hd, jnp.dtype(fc1_stream_dtype).itemsize, tile_bytes)
    Fp = _round_up(F, TF)
    if Fp != F:
        w1 = jnp.pad(w1, ((0, Fp - F), (0, 0)))
    p["w_fc1"] = w1
    return p


# ----------------------------------------------------------------------------
# Full forward pass (matches LunarLanderConvNet.forward semantics)
# ----------------------------------------------------------------------------
def lunar_lander_convnet_forward(x_nchw, params):
    # x_nchw: (B, 3, H, W) float32, H and W divisible by 4.  Everything stays
    # NCHW / channel-major, so the PyTorch x.view(B, -1) flatten is a reshape.
    x = conv_relu_pool(x_nchw, params["w_conv1"], params["b_conv1"])  # (B,32,H/2,W/2)
    x = conv_relu_pool(x, params["w_conv2"], params["b_conv2"])       # (B,64,H/4,W/4)
    x = x.reshape(x.shape[0], -1)                                     # NCHW flatten
    return mlp_head(x, params["w_fc1"], params["b_fc1"],
                    params["w_fc2"], params["b_fc2"])


# ----------------------------------------------------------------------------
# Deterministic parameter init (synthetic; shapes follow the module __init__)
# ----------------------------------------------------------------------------
def init_params(key, H, W):
    ks = jax.random.split(key, 8)
    feat = 64 * (H // 4) * (W // 4)   # module uses 64*56*56 for the 224x224 case

    def u(k, shape, fan_in):
        bound = 1.0 / jnp.sqrt(jnp.float32(fan_in))
        return jax.random.uniform(k, shape, jnp.float32, -bound, bound)

    return dict(
        w_conv1=u(ks[0], (32, 3, 3, 3), 3 * 9),
        b_conv1=u(ks[1], (32,), 3 * 9),
        w_conv2=u(ks[2], (64, 32, 3, 3), 32 * 9),
        b_conv2=u(ks[3], (64,), 32 * 9),
        w_fc1=u(ks[4], (feat, 128), feat),   # stored (in, out)
        b_fc1=u(ks[5], (128,), feat),
        w_fc2=u(ks[6], (128, 4), 128),
        b_fc2=u(ks[7], (4,), 128),
    )


# ----------------------------------------------------------------------------
# Pure-JAX reference (numerical sanity check)
# ----------------------------------------------------------------------------
def reference_forward(x_nchw, params):
    y = lax.conv_general_dilated(x_nchw, params["w_conv1"], (1, 1),
                                 ((1, 1), (1, 1)),
                                 dimension_numbers=("NCHW", "OIHW", "NCHW"))
    y = jnp.maximum(y + params["b_conv1"][None, :, None, None], 0.0)
    y = lax.reduce_window(y, -jnp.inf, lax.max, (1, 1, 2, 2), (1, 1, 2, 2), "VALID")
    y = lax.conv_general_dilated(y, params["w_conv2"], (1, 1),
                                 ((1, 1), (1, 1)),
                                 dimension_numbers=("NCHW", "OIHW", "NCHW"))
    y = jnp.maximum(y + params["b_conv2"][None, :, None, None], 0.0)
    y = lax.reduce_window(y, -jnp.inf, lax.max, (1, 1, 2, 2), (1, 1, 2, 2), "VALID")
    y = y.reshape(y.shape[0], -1)
    y = jnp.maximum(y @ params["w_fc1"] + params["b_fc1"], 0.0)
    return y @ params["w_fc2"] + params["b_fc2"]


if __name__ == "__main__":
    key = jax.random.PRNGKey(0)
    kx, kp = jax.random.split(key)
    B, H, W = 2, 16, 16   # small test shape; real module expects (B, 3, 224, 224)
    x = jax.random.normal(kx, (B, 3, H, W), jnp.float32)
    params = init_params(kp, H, W)

    fwd = jax.jit(lunar_lander_convnet_forward)
    ref = reference_forward(x, params)

    # f32 FC1 weight stream (tight check).
    out32 = jax.block_until_ready(fwd(x, params))
    assert out32.shape == (B, 4), out32.shape
    err32 = float(jnp.max(jnp.abs(out32 - ref)))
    assert err32 < 2e-3, err32

    # bf16 FC1 weight streaming, cast/padded once outside jit (looser check).
    params_bf16 = prepare_params(params, jnp.bfloat16)
    out16 = jax.block_until_ready(fwd(x, params_bf16))
    err16 = float(jnp.max(jnp.abs(out16 - ref)))
    assert err16 < 5e-2, err16

    print("KERNEL_OK")
</pallas_src>

<mosaic_0001>
module attributes {stable_mosaic.version = 11 : i64} {
  func.func @_conv_relu_pool_kernel(%arg0: i32, %arg1: memref<1x2x2x8x256xf32, #tpu.memory_space<vmem>>, %arg2: memref<32x72xf32, #tpu.memory_space<vmem>>, %arg3: memref<32x1xf32, #tpu.memory_space<vmem>>, %arg4: memref<1x32x128xf32, #tpu.memory_space<vmem>>) attributes {dimension_semantics = [#tpu.dimension_semantics<parallel>], iteration_bounds = array<i64: 2>, scalar_prefetch = 0 : i64, scratch_operands = 0 : i64, tpu.core_type = #tpu.core_type<tc>, window_params = [{transform_indices = @transform_0, window_bounds = array<i64: 1, 2, 2, 8, 256>}, {pipeline_mode = #tpu.pipeline_mode<synchronous>, transform_indices = @transform_1, window_bounds = array<i64: 32, 72>}, {pipeline_mode = #tpu.pipeline_mode<synchronous>, transform_indices = @transform_2, window_bounds = array<i64: 32, 1>}, {transform_indices = @transform_3, window_bounds = array<i64: 1, 32, 128>}]} {
    %c0 = arith.constant 0 : index
    %c0_0 = arith.constant 0 : index
    %0 = vector.load %arg2[%c0, %c0_0] : memref<32x72xf32, #tpu.memory_space<vmem>>, vector<32x72xf32>
    %c0_1 = arith.constant 0 : index
    %c0_2 = arith.constant 0 : index
    %c0_3 = arith.constant 0 : index
    %c0_4 = arith.constant 0 : index
    %c0_5 = arith.constant 0 : index
    %1 = vector.load %arg1[%c0_1, %c0_2, %c0_3, %c0_4, %c0_5] : memref<1x2x2x8x256xf32, #tpu.memory_space<vmem>>, vector<1x1x1x8x128xf32>
    %2 = vector.shape_cast %1 : vector<1x1x1x8x128xf32> to vector<8x128xf32>
    %c0_6 = arith.constant 0 : index
    %c0_7 = arith.constant 0 : index
    %c1 = arith.constant 1 : index
    %c0_8 = arith.constant 0 : index
    %c0_9 = arith.constant 0 : index
    %3 = vector.load %arg1[%c0_6, %c0_7, %c1, %c0_8, %c0_9] : memref<1x2x2x8x256xf32, #tpu.memory_space<vmem>>, vector<1x1x1x8x128xf32>
    %4 = vector.shape_cast %3 : vector<1x1x1x8x128xf32> to vector<8x128xf32>
    %c0_10 = arith.constant 0 : index
    %c0_11 = arith.constant 0 : index
    %c0_12 = arith.constant 0 : index
    %c0_13 = arith.constant 0 : index
    %c1_14 = arith.constant 1 : index
    %5 = vector.load %arg1[%c0_10, %c0_11, %c0_12, %c0_13, %c1_14] : memref<1x2x2x8x256xf32, #tpu.memory_space<vmem>>, vector<1x1x1x8x128xf32>
    %6 = vector.shape_cast %5 : vector<1x1x1x8x128xf32> to vector<8x128xf32>
    %c0_15 = arith.constant 0 : index
    %c1_16 = arith.constant 1 : index
    %c0_17 = arith.constant 0 : index
    %c0_18 = arith.constant 0 : index
    %c0_19 = arith.constant 0 : index
    %7 = vector.load %arg1[%c0_15, %c1_16, %c0_17, %c0_18, %c0_19] : memref<1x2x2x8x256xf32, #tpu.memory_space<vmem>>, vector<1x1x1x8x128xf32>
    %8 = vector.shape_cast %7 : vector<1x1x1x8x128xf32> to vector<8x128xf32>
    %c0_20 = arith.constant 0 : index
    %c1_21 = arith.constant 1 : index
    %c1_22 = arith.constant 1 : index
    %c0_23 = arith.constant 0 : index
    %c0_24 = arith.constant 0 : index
    %9 = vector.load %arg1[%c0_20, %c1_21, %c1_22, %c0_23, %c0_24] : memref<1x2x2x8x256xf32, #tpu.memory_space<vmem>>, vector<1x1x1x8x128xf32>
    %10 = vector.shape_cast %9 : vector<1x1x1x8x128xf32> to vector<8x128xf32>
    %c0_25 = arith.constant 0 : index
    %c1_26 = arith.constant 1 : index
    %c0_27 = arith.constant 0 : index
    %c0_28 = arith.constant 0 : index
    %c1_29 = arith.constant 1 : index
    %11 = vector.load %arg1[%c0_25, %c1_26, %c0_27, %c0_28, %c1_29] : memref<1x2x2x8x256xf32, #tpu.memory_space<vmem>>, vector<1x1x1x8x128xf32>
    %12 = vector.shape_cast %11 : vector<1x1x1x8x128xf32> to vector<8x128xf32>
    %c0_30 = arith.constant 0 : index
    %c0_31 = arith.constant 0 : index
    %c0_32 = arith.constant 0 : index
    %c0_33 = arith.constant 0 : index
    %c9 = arith.constant 9 : index
    %13 = vector.load %arg1[%c0_30, %c0_31, %c0_32, %c0_33, %c9] : memref<1x2x2x8x256xf32, #tpu.memory_space<vmem>>, vector<1x1x1x8x128xf32>
    %14 = vector.shape_cast %13 : vector<1x1x1x8x128xf32> to vector<8x128xf32>
    %c0_34 = arith.constant 0 : index
    %c0_35 = arith.constant 0 : index
    %c1_36 = arith.constant 1 : index
    %c0_37 = arith.constant 0 : index
    %c9_38 = arith.constant 9 : index
    %15 = vector.load %arg1[%c0_34, %c0_35, %c1_36, %c0_37, %c9_38] : memref<1x2x2x8x256xf32, #tpu.memory_space<vmem>>, vector<1x1x1x8x128xf32>
    %16 = vector.shape_cast %15 : vector<1x1x1x8x128xf32> to vector<8x128xf32>
    %c0_39 = arith.constant 0 : index
    %c0_40 = arith.constant 0 : index
    %c0_41 = arith.constant 0 : index
    %c0_42 = arith.constant 0 : index
    %c10 = arith.constant 10 : index
    %17 = vector.load %arg1[%c0_39, %c0_40, %c0_41, %c0_42, %c10] : memref<1x2x2x8x256xf32, #tpu.memory_space<vmem>>, vector<1x1x1x8x128xf32>
    %18 = vector.shape_cast %17 : vector<1x1x1x8x128xf32> to vector<8x128xf32>
    %19 = tpu.concatenate %2, %4, %6, %8, %10, %12, %14, %16, %18 in 0 : vector<8x128xf32>, vector<8x128xf32>, vector<8x128xf32>, vector<8x128xf32>, vector<8x128xf32>, vector<8x128xf32>, vector<8x128xf32>, vector<8x128xf32>, vector<8x128xf32> -> vector<72x128xf32>
    %cst = arith.constant dense<0.000000e+00> : vector<32x128xf32>
    %20 = tpu.matmul %0, %19, %cst {dimension_numbers = #tpu.dot_dimension_numbers<[1], [0], [0], [1], [0, 0, 1, 1], [], []>} : vector<32x72xf32>, vector<72x128xf32>, vector<32x128xf32> -> vector<32x128xf32>
    %c0_43 = arith.constant 0 : index
    %c0_44 = arith.constant 0 : index
    %c1_45 = arith.constant 1 : index
    %c0_46 = arith.constant 0 : index
    %c0_47 = arith.constant 0 : index
    %21 = vector.load %arg1[%c0_43, %c0_44, %c1_45, %c0_46, %c0_47] : memref<1x2x2x8x256xf32, #tpu.memory_space<vmem>>, vector<1x1x1x8x128xf32>
    %22 = vector.shape_cast %21 : vector<1x1x1x8x128xf32> to vector<8x128xf32>
    %c0_48 = arith.constant 0 : index
    %c0_49 = arith.constant 0 : index
    %c0_50 = arith.constant 0 : index
    %c0_51 = arith.constant 0 : index
    %c1_52 = arith.constant 1 : index
    %23 = vector.load %arg1[%c0_48, %c0_49, %c0_50, %c0_51, %c1_52] : memref<1x2x2x8x256xf32, #tpu.memory_space<vmem>>, vector<1x1x1x8x128xf32>
    %24 = vector.shape_cast %23 : vector<1x1x1x8x128xf32> to vector<8x128xf32>
    %c0_53 = arith.constant 0 : index
    %c0_54 = arith.constant 0 : index
    %c1_55 = arith.constant 1 : index
    %c0_56 = arith.constant 0 : index
    %c1_57 = arith.constant 1 : index
    %25 = vector.load %arg1[%c0_53, %c0_54, %c1_55, %c0_56, %c1_57] : memref<1x2x2x8x256xf32, #tpu.memory_space<vmem>>, vector<1x1x1x8x128xf32>
    %26 = vector.shape_cast %25 : vector<1x1x1x8x128xf32> to vector<8x128xf32>
    %c0_58 = arith.constant 0 : index
    %c1_59 = arith.constant 1 : index
    %c1_60 = arith.constant 1 : index
    %c0_61 = arith.constant 0 : index
    %c0_62 = arith.constant 0 : index
    %27 = vector.load %arg1[%c0_58, %c1_59, %c1_60, %c0_61, %c0_62] : memref<1x2x2x8x256xf32, #tpu.memory_space<vmem>>, vector<1x1x1x8x128xf32>
    %28 = vector.shape_cast %27 : vector<1x1x1x8x128xf32> to vector<8x128xf32>
    %c0_63 = arith.constant 0 : index
    %c1_64 = arith.constant 1 : index
    %c0_65 = arith.constant 0 : index
    %c0_66 = arith.constant 0 : index
    %c1_67 = arith.constant 1 : index
    %29 = vector.load %arg1[%c0_63, %c1_64, %c0_65, %c0_66, %c1_67] : memref<1x2x2x8x256xf32, #tpu.memory_space<vmem>>, vector<1x1x1x8x128xf32>
    %30 = vector.shape_cast %29 : vector<1x1x1x8x128xf32> to vector<8x128xf32>
    %c0_68 = arith.constant 0 : index
    %c1_69 = arith.constant 1 : index
    %c1_70 = arith.constant 1 : index
    %c0_71 = arith.constant 0 : index
    %c1_72 = arith.constant 1 : index
    %31 = vector.load %arg1[%c0_68, %c1_69, %c1_70, %c0_71, %c1_72] : memref<1x2x2x8x256xf32, #tpu.memory_space<vmem>>, vector<1x1x1x8x128xf32>
    %32 = vector.shape_cast %31 : vector<1x1x1x8x128xf32> to vector<8x128xf32>
    %c0_73 = arith.constant 0 : index
    %c0_74 = arith.constant 0 : index
    %c1_75 = arith.constant 1 : index
    %c0_76 = arith.constant 0 : index
    %c9_77 = arith.constant 9 : index
    %33 = vector.load %arg1[%c0_73, %c0_74, %c1_75, %c0_76, %c9_77] : memref<1x2x2x8x256xf32, #tpu.memory_space<vmem>>, vector<1x1x1x8x128xf32>
    %34 = vector.shape_cast %33 : vector<1x1x1x8x128xf32> to vector<8x128xf32>
    %c0_78 = arith.constant 0 : index
    %c0_79 = arith.constant 0 : index
    %c0_80 = arith.constant 0 : index
    %c0_81 = arith.constant 0 : index
    %c10_82 = arith.constant 10 : index
    %35 = vector.load %arg1[%c0_78, %c0_79, %c0_80, %c0_81, %c10_82] : memref<1x2x2x8x256xf32, #tpu.memory_space<vmem>>, vector<1x1x1x8x128xf32>
    %36 = vector.shape_cast %35 : vector<1x1x1x8x128xf32> to vector<8x128xf32>
    %c0_83 = arith.constant 0 : index
    %c0_84 = arith.constant 0 : index
    %c1_85 = arith.constant 1 : index
    %c0_86 = arith.constant 0 : index
    %c10_87 = arith.constant 10 : index
    %37 = vector.load %arg1[%c0_83, %c0_84, %c1_85, %c0_86, %c10_87] : memref<1x2x2x8x256xf32, #tpu.memory_space<vmem>>, vector<1x1x1x8x128xf32>
    %38 = vector.shape_cast %37 : vector<1x1x1x8x128xf32> to vector<8x128xf32>
    %39 = tpu.concatenate %22, %24, %26, %28, %30, %32, %34, %36, %38 in 0 : vector<8x128xf32>, vector<8x128xf32>, vector<8x128xf32>, vector<8x128xf32>, vector<8x128xf32>, vector<8x128xf32>, vector<8x128xf32>, vector<8x128xf32>, vector<8x128xf32> -> vector<72x128xf32>
    %cst_88 = arith.constant dense<0.000000e+00> : vector<32x128xf32>
    %40 = tpu.matmul %0, %39, %cst_88 {dimension_numbers = #tpu.dot_dimension_numbers<[1], [0], [0], [1], [0, 0, 1, 1], [], []>} : vector<32x72xf32>, vector<72x128xf32>, vector<32x128xf32> -> vector<32x128xf32>
    %41 = arith.maximumf %20, %40 : vector<32x128xf32>
    %c0_89 = arith.constant 0 : index
    %c1_90 = arith.constant 1 : index
    %c0_91 = arith.constant 0 : index
    %c0_92 = arith.constant 0 : index
    %c0_93 = arith.constant 0 : index
    %42 = vector.load %arg1[%c0_89, %c1_90, %c0_91, %c0_92, %c0_93] : memref<1x2x2x8x256xf32, #tpu.memory_space<vmem>>, vector<1x1x1x8x128xf32>
    %43 = vector.shape_cast %42 : vector<1x1x1x8x128xf32> to vector<8x128xf32>
    %c0_94 = arith.constant 0 : index
    %c1_95 = arith.constant 1 : index
    %c1_96 = arith.constant 1 : index
    %c0_97 = arith.constant 0 : index
    %c0_98 = arith.constant 0 : index
    %44 = vector.load %arg1[%c0_94, %c1_95, %c1_96, %c0_97, %c0_98] : memref<1x2x2x8x256xf32, #tpu.memory_space<vmem>>, vector<1x1x1x8x128xf32>
    %45 = vector.shape_cast %44 : vector<1x1x1x8x128xf32> to vector<8x128xf32>
    %c0_99 = arith.constant 0 : index
    %c1_100 = arith.constant 1 : index
    %c0_101 = arith.constant 0 : index
    %c0_102 = arith.constant 0 : index
    %c1_103 = arith.constant 1 : index
    %46 = vector.load %arg1[%c0_99, %c1_100, %c0_101, %c0_102, %c1_103] : memref<1x2x2x8x256xf32, #tpu.memory_space<vmem>>, vector<1x1x1x8x128xf32>
    %47 = vector.shape_cast %46 : vector<1x1x1x8x128xf32> to vector<8x128xf32>
    %c0_104 = arith.constant 0 : index
    %c0_105 = arith.constant 0 : index
    %c0_106 = arith.constant 0 : index
    %c0_107 = arith.constant 0 : index
    %c9_108 = arith.constant 9 : index
    %48 = vector.load %arg1[%c0_104, %c0_105, %c0_106, %c0_107, %c9_108] : memref<1x2x2x8x256xf32, #tpu.memory_space<vmem>>, vector<1x1x1x8x128xf32>
    %49 = vector.shape_cast %48 : vector<1x1x1x8x128xf32> to vector<8x128xf32>
    %c0_109 = arith.constant 0 : index
    %c0_110 = arith.constant 0 : index
    %c1_111 = arith.constant 1 : index
    %c0_112 = arith.constant 0 : index
    %c9_113 = arith.constant 9 : index
    %50 = vector.load %arg1[%c0_109, %c0_110, %c1_111, %c0_112, %c9_113] : memref<1x2x2x8x256xf32, #tpu.memory_space<vmem>>, vector<1x1x1x8x128xf32>
    %51 = vector.shape_cast %50 : vector<1x1x1x8x128xf32> to vector<8x128xf32>
    %c0_114 = arith.constant 0 : index
    %c0_115 = arith.constant 0 : index
    %c0_116 = arith.constant 0 : index
    %c0_117 = arith.constant 0 : index
    %c10_118 = arith.constant 10 : index
    %52 = vector.load %arg1[%c0_114, %c0_115, %c0_116, %c0_117, %c10_118] : memref<1x2x2x8x256xf32, #tpu.memory_space<vmem>>, vector<1x1x1x8x128xf32>
    %53 = vector.shape_cast %52 : vector<1x1x1x8x128xf32> to vector<8x128xf32>
    %c0_119 = arith.constant 0 : index
    %c1_120 = arith.constant 1 : index
    %c0_121 = arith.constant 0 : index
    %c0_122 = arith.constant 0 : index
    %c9_123 = arith.constant 9 : index
    %54 = vector.load %arg1[%c0_119, %c1_120, %c0_121, %c0_122, %c9_123] : memref<1x2x2x8x256xf32, #tpu.memory_space<vmem>>, vector<1x1x1x8x128xf32>
    %55 = vector.shape_cast %54 : vector<1x1x1x8x128xf32> to vector<8x128xf32>
    %c0_124 = arith.constant 0 : index
    %c1_125 = arith.constant 1 : index
    %c1_126 = arith.constant 1 : index
    %c0_127 = arith.constant 0 : index
    %c9_128 = arith.constant 9 : index
    %56 = vector.load %arg1[%c0_124, %c1_125, %c1_126, %c0_127, %c9_128] : memref<1x2x2x8x256xf32, #tpu.memory_space<vmem>>, vector<1x1x1x8x128xf32>
    %57 = vector.shape_cast %56 : vector<1x1x1x8x128xf32> to vector<8x128xf32>
    %c0_129 = arith.constant 0 : index
    %c1_130 = arith.constant 1 : index
    %c0_131 = arith.constant 0 : index
    %c0_132 = arith.constant 0 : index
    %c10_133 = arith.constant 10 : index
    %58 = vector.load %arg1[%c0_129, %c1_130, %c0_131, %c0_132, %c10_133] : memref<1x2x2x8x256xf32, #tpu.memory_space<vmem>>, vector<1x1x1x8x128xf32>
    %59 = vector.shape_cast %58 : vector<1x1x1x8x128xf32> to vector<8x128xf32>
    %60 = tpu.concatenate %43, %45, %47, %49, %51, %53, %55, %57, %59 in 0 : vector<8x128xf32>, vector<8x128xf32>, vector<8x128xf32>, vector<8x128xf32>, vector<8x128xf32>, vector<8x128xf32>, vector<8x128xf32>, vector<8x128xf32>, vector<8x128xf32> -> vector<72x128xf32>
    %cst_134 = arith.constant dense<0.000000e+00> : vector<32x128xf32>
    %61 = tpu.matmul %0, %60, %cst_134 {dimension_numbers = #tpu.dot_dimension_numbers<[1], [0], [0], [1], [0, 0, 1, 1], [], []>} : vector<32x72xf32>, vector<72x128xf32>, vector<32x128xf32> -> vector<32x128xf32>
    %62 = arith.maximumf %41, %61 : vector<32x128xf32>
    %c0_135 = arith.constant 0 : index
    %c1_136 = arith.constant 1 : index
    %c1_137 = arith.constant 1 : index
    %c0_138 = arith.constant 0 : index
    %c0_139 = arith.constant 0 : index
    %63 = vector.load %arg1[%c0_135, %c1_136, %c1_137, %c0_138, %c0_139] : memref<1x2x2x8x256xf32, #tpu.memory_space<vmem>>, vector<1x1x1x8x128xf32>
    %64 = vector.shape_cast %63 : vector<1x1x1x8x128xf32> to vector<8x128xf32>
    %c0_140 = arith.constant 0 : index
    %c1_141 = arith.constant 1 : index
    %c0_142 = arith.constant 0 : index
    %c0_143 = arith.constant 0 : index
    %c1_144 = arith.constant 1 : index
    %65 = vector.load %arg1[%c0_140, %c1_141, %c0_142, %c0_143, %c1_144] : memref<1x2x2x8x256xf32, #tpu.memory_space<vmem>>, vector<1x1x1x8x128xf32>
    %66 = vector.shape_cast %65 : vector<1x1x1x8x128xf32> to vector<8x128xf32>
    %c0_145 = arith.constant 0 : index
    %c1_146 = arith.constant 1 : index
    %c1_147 = arith.constant 1 : index
    %c0_148 = arith.constant 0 : index
    %c1_149 = arith.constant 1 : index
    %67 = vector.load %arg1[%c0_145, %c1_146, %c1_147, %c0_148, %c1_149] : memref<1x2x2x8x256xf32, #tpu.memory_space<vmem>>, vector<1x1x1x8x128xf32>
    %68 = vector.shape_cast %67 : vector<1x1x1x8x128xf32> to vector<8x128xf32>
    %c0_150 = arith.constant 0 : index
    %c0_151 = arith.constant 0 : index
    %c1_152 = arith.constant 1 : index
    %c0_153 = arith.constant 0 : index
    %c9_154 = arith.constant 9 : index
    %69 = vector.load %arg1[%c0_150, %c0_151, %c1_152, %c0_153, %c9_154] : memref<1x2x2x8x256xf32, #tpu.memory_space<vmem>>, vector<1x1x1x8x128xf32>
    %70 = vector.shape_cast %69 : vector<1x1x1x8x128xf32> to vector<8x128xf32>
    %c0_155 = arith.constant 0 : index
    %c0_156 = arith.constant 0 : index
    %c0_157 = arith.constant 0 : index
    %c0_158 = arith.constant 0 : index
    %c10_159 = arith.constant 10 : index
    %71 = vector.load %arg1[%c0_155, %c0_156, %c0_157, %c0_158, %c10_159] : memref<1x2x2x8x256xf32, #tpu.memory_space<vmem>>, vector<1x1x1x8x128xf32>
    %72 = vector.shape_cast %71 : vector<1x1x1x8x128xf32> to vector<8x128xf32>
    %c0_160 = arith.constant 0 : index
    %c0_161 = arith.constant 0 : index
    %c1_162 = arith.constant 1 : index
    %c0_163 = arith.constant 0 : index
    %c10_164 = arith.constant 10 : index
    %73 = vector.load %arg1[%c0_160, %c0_161, %c1_162, %c0_163, %c10_164] : memref<1x2x2x8x256xf32, #tpu.memory_space<vmem>>, vector<1x1x1x8x128xf32>
    %74 = vector.shape_cast %73 : vector<1x1x1x8x128xf32> to vector<8x128xf32>
    %c0_165 = arith.constant 0 : index
    %c1_166 = arith.constant 1 : index
    %c1_167 = arith.constant 1 : index
    %c0_168 = arith.constant 0 : index
    %c9_169 = arith.constant 9 : index
    %75 = vector.load %arg1[%c0_165, %c1_166, %c1_167, %c0_168, %c9_169] : memref<1x2x2x8x256xf32, #tpu.memory_space<vmem>>, vector<1x1x1x8x128xf32>
    %76 = vector.shape_cast %75 : vector<1x1x1x8x128xf32> to vector<8x128xf32>
    %c0_170 = arith.constant 0 : index
    %c1_171 = arith.constant 1 : index
    %c0_172 = arith.constant 0 : index
    %c0_173 = arith.constant 0 : index
    %c10_174 = arith.constant 10 : index
    %77 = vector.load %arg1[%c0_170, %c1_171, %c0_172, %c0_173, %c10_174] : memref<1x2x2x8x256xf32, #tpu.memory_space<vmem>>, vector<1x1x1x8x128xf32>
    %78 = vector.shape_cast %77 : vector<1x1x1x8x128xf32> to vector<8x128xf32>
    %c0_175 = arith.constant 0 : index
    %c1_176 = arith.constant 1 : index
    %c1_177 = arith.constant 1 : index
    %c0_178 = arith.constant 0 : index
    %c10_179 = arith.constant 10 : index
    %79 = vector.load %arg1[%c0_175, %c1_176, %c1_177, %c0_178, %c10_179] : memref<1x2x2x8x256xf32, #tpu.memory_space<vmem>>, vector<1x1x1x8x128xf32>
    %80 = vector.shape_cast %79 : vector<1x1x1x8x128xf32> to vector<8x128xf32>
    %81 = tpu.concatenate %64, %66, %68, %70, %72, %74, %76, %78, %80 in 0 : vector<8x128xf32>, vector<8x128xf32>, vector<8x128xf32>, vector<8x128xf32>, vector<8x128xf32>, vector<8x128xf32>, vector<8x128xf32>, vector<8x128xf32>, vector<8x128xf32> -> vector<72x128xf32>
    %cst_180 = arith.constant dense<0.000000e+00> : vector<32x128xf32>
    %82 = tpu.matmul %0, %81, %cst_180 {dimension_numbers = #tpu.dot_dimension_numbers<[1], [0], [0], [1], [0, 0, 1, 1], [], []>} : vector<32x72xf32>, vector<72x128xf32>, vector<32x128xf32> -> vector<32x128xf32>
    %83 = arith.maximumf %62, %82 : vector<32x128xf32>
    %c0_181 = arith.constant 0 : index
    %c0_182 = arith.constant 0 : index
    %84 = vector.load %arg3[%c0_181, %c0_182] : memref<32x1xf32, #tpu.memory_space<vmem>>, vector<32x1xf32>
    %85 = vector.broadcast %84 : vector<32x1xf32> to vector<32x128xf32>
    %86 = arith.addf %83, %85 : vector<32x128xf32>
    %cst_183 = arith.constant 0.000000e+00 : f32
    %87 = vector.broadcast %cst_183 : f32 to vector<32x128xf32>
    %88 = arith.maximumf %86, %87 : vector<32x128xf32>
    %c0_184 = arith.constant 0 : index
    %c0_185 = arith.constant 0 : index
    %c0_186 = arith.constant 0 : index
    %89 = vector.load %arg4[%c0_184, %c0_185, %c0_186] : memref<1x32x128xf32, #tpu.memory_space<vmem>>, vector<1x32x128xf32>
    %90 = vector.shape_cast %89 : vector<1x32x128xf32> to vector<32x128xf32>
    %91 = vector.shape_cast %88 : vector<32x128xf32> to vector<1x32x128xf32>
    tpu.vector_store %arg4[%c0_184, %c0_185, %c0_186], %91 {strides = array<i32>} : memref<1x32x128xf32, #tpu.memory_space<vmem>>, vector<1x32x128xf32>,
    return
  }
  func.func @transform_0(%arg0: i32) -> (i32, i32, i32, i32, i32) {
    %c0_i32 = arith.constant 0 : i32
    %c0_i32_0 = arith.constant 0 : i32
    %c0_i32_1 = arith.constant 0 : i32
    %c0_i32_2 = arith.constant 0 : i32
    %c0_i32_3 = arith.constant 0 : i32
    return %arg0, %c0_i32, %c0_i32_0, %c0_i32_1, %c0_i32_2 : i32, i32, i32, i32, i32
  }
  func.func @transform_1(%arg0: i32) -> (i32, i32) {
    %c0_i32 = arith.constant 0 : i32
    %c0_i32_0 = arith.constant 0 : i32
    %c0_i32_1 = arith.constant 0 : i32
    return %c0_i32, %c0_i32_0 : i32, i32
  }
  func.func @transform_2(%arg0: i32) -> (i32, i32) {
    %c0_i32 = arith.constant 0 : i32
    %c0_i32_0 = arith.constant 0 : i32
    %c0_i32_1 = arith.constant 0 : i32
    return %c0_i32, %c0_i32_0 : i32, i32
  }
  func.func @transform_3(%arg0: i32) -> (i32, i32, i32) {
    %c0_i32 = arith.constant 0 : i32
    %c0_i32_0 = arith.constant 0 : i32
    %c0_i32_1 = arith.constant 0 : i32
    return %arg0, %c0_i32, %c0_i32_0 : i32, i32, i32
  }
}

module attributes {stable_mosaic.version = 11 : i64} {
  func.func @_conv_relu_pool_kernel(%arg0: i32, %arg1: memref<1x2x2x32x256xf32, #tpu.memory_space<vmem>>, %arg2: memref<64x288xf32, #tpu.memory_space<vmem>>, %arg3: memref<64x1xf32, #tpu.memory_space<vmem>>, %arg4: memref<1x64x128xf32, #tpu.memory_space<vmem>>) attributes {dimension_semantics = [#tpu.dimension_semantics<parallel>], iteration_bounds = array<i64: 2>, scalar_prefetch = 0 : i64, scratch_operands = 0 : i64, tpu.core_type = #tpu.core_type<tc>, window_params = [{transform_indices = @transform_0, window_bounds = array<i64: 1, 2, 2, 32, 256>}, {pipeline_mode = #tpu.pipeline_mode<synchronous>, transform_indices = @transform_1, window_bounds = array<i64: 64, 288>}, {pipeline_mode = #tpu.pipeline_mode<synchronous>, transform_indices = @transform_2, window_bounds = array<i64: 64, 1>}, {transform_indices = @transform_3, window_bounds = array<i64: 1, 64, 128>}]} {
    %c0 = arith.constant 0 : index
    %c0_0 = arith.constant 0 : index
    %0 = vector.load %arg2[%c0, %c0_0] : memref<64x288xf32, #tpu.memory_space<vmem>>, vector<64x288xf32>
    %c0_1 = arith.constant 0 : index
    %c0_2 = arith.constant 0 : index
    %c0_3 = arith.constant 0 : index
    %c0_4 = arith.constant 0 : index
    %c0_5 = arith.constant 0 : index
    %1 = vector.load %arg1[%c0_1, %c0_2, %c0_3, %c0_4, %c0_5] : memref<1x2x2x32x256xf32, #tpu.memory_space<vmem>>, vector<1x1x1x32x128xf32>
    %2 = vector.shape_cast %1 : vector<1x1x1x32x128xf32> to vector<32x128xf32>
    %c0_6 = arith.constant 0 : index
    %c0_7 = arith.constant 0 : index
    %c1 = arith.constant 1 : index
    %c0_8 = arith.constant 0 : index
    %c0_9 = arith.constant 0 : index
    %3 = vector.load %arg1[%c0_6, %c0_7, %c1, %c0_8, %c0_9] : memref<1x2x2x32x256xf32, #tpu.memory_space<vmem>>, vector<1x1x1x32x128xf32>
    %4 = vector.shape_cast %3 : vector<1x1x1x32x128xf32> to vector<32x128xf32>
    %c0_10 = arith.constant 0 : index
    %c0_11 = arith.constant 0 : index
    %c0_12 = arith.constant 0 : index
    %c0_13 = arith.constant 0 : index
    %c1_14 = arith.constant 1 : index
    %5 = vector.load %arg1[%c0_10, %c0_11, %c0_12, %c0_13, %c1_14] : memref<1x2x2x32x256xf32, #tpu.memory_space<vmem>>, vector<1x1x1x32x128xf32>
    %6 = vector.shape_cast %5 : vector<1x1x1x32x128xf32> to vector<32x128xf32>
    %c0_15 = arith.constant 0 : index
    %c1_16 = arith.constant 1 : index
    %c0_17 = arith.constant 0 : index
    %c0_18 = arith.constant 0 : index
    %c0_19 = arith.constant 0 : index
    %7 = vector.load %arg1[%c0_15, %c1_16, %c0_17, %c0_18, %c0_19] : memref<1x2x2x32x256xf32, #tpu.memory_space<vmem>>, vector<1x1x1x32x128xf32>
    %8 = vector.shape_cast %7 : vector<1x1x1x32x128xf32> to vector<32x128xf32>
    %c0_20 = arith.constant 0 : index
    %c1_21 = arith.constant 1 : index
    %c1_22 = arith.constant 1 : index
    %c0_23 = arith.constant 0 : index
    %c0_24 = arith.constant 0 : index
    %9 = vector.load %arg1[%c0_20, %c1_21, %c1_22, %c0_23, %c0_24] : memref<1x2x2x32x256xf32, #tpu.memory_space<vmem>>, vector<1x1x1x32x128xf32>
    %10 = vector.shape_cast %9 : vector<1x1x1x32x128xf32> to vector<32x128xf32>
    %c0_25 = arith.constant 0 : index
    %c1_26 = arith.constant 1 : index
    %c0_27 = arith.constant 0 : index
    %c0_28 = arith.constant 0 : index
    %c1_29 = arith.constant 1 : index
    %11 = vector.load %arg1[%c0_25, %c1_26, %c0_27, %c0_28, %c1_29] : memref<1x2x2x32x256xf32, #tpu.memory_space<vmem>>, vector<1x1x1x32x128xf32>
    %12 = vector.shape_cast %11 : vector<1x1x1x32x128xf32> to vector<32x128xf32>
    %c0_30 = arith.constant 0 : index
    %c0_31 = arith.constant 0 : index
    %c0_32 = arith.constant 0 : index
    %c0_33 = arith.constant 0 : index
    %c5 = arith.constant 5 : index
    %13 = vector.load %arg1[%c0_30, %c0_31, %c0_32, %c0_33, %c5] : memref<1x2x2x32x256xf32, #tpu.memory_space<vmem>>, vector<1x1x1x32x128xf32>
    %14 = vector.shape_cast %13 : vector<1x1x1x32x128xf32> to vector<32x128xf32>
    %c0_34 = arith.constant 0 : index
    %c0_35 = arith.constant 0 : index
    %c1_36 = arith.constant 1 : index
    %c0_37 = arith.constant 0 : index
    %c5_38 = arith.constant 5 : index
    %15 = vector.load %arg1[%c0_34, %c0_35, %c1_36, %c0_37, %c5_38] : memref<1x2x2x32x256xf32, #tpu.memory_space<vmem>>, vector<1x1x1x32x128xf32>
    %16 = vector.shape_cast %15 : vector<1x1x1x32x128xf32> to vector<32x128xf32>
    %c0_39 = arith.constant 0 : index
    %c0_40 = arith.constant 0 : index
    %c0_41 = arith.constant 0 : index
    %c0_42 = arith.constant 0 : index
    %c6 = arith.constant 6 : index
    %17 = vector.load %arg1[%c0_39, %c0_40, %c0_41, %c0_42, %c6] : memref<1x2x2x32x256xf32, #tpu.memory_space<vmem>>, vector<1x1x1x32x128xf32>
    %18 = vector.shape_cast %17 : vector<1x1x1x32x128xf32> to vector<32x128xf32>
    %19 = tpu.concatenate %2, %4, %6, %8, %10, %12, %14, %16, %18 in 0 : vector<32x128xf32>, vector<32x128xf32>, vector<32x128xf32>, vector<32x128xf32>, vector<32x128xf32>, vector<32x128xf32>, vector<32x128xf32>, vector<32x128xf32>, vector<32x128xf32> -> vector<288x128xf32>
    %cst = arith.constant dense<0.000000e+00> : vector<64x128xf32>
    %20 = tpu.matmul %0, %19, %cst {dimension_numbers = #tpu.dot_dimension_numbers<[1], [0], [0], [1], [0, 0, 1, 1], [], []>} : vector<64x288xf32>, vector<288x128xf32>, vector<64x128xf32> -> vector<64x128xf32>
    %c0_43 = arith.constant 0 : index
    %c0_44 = arith.constant 0 : index
    %c1_45 = arith.constant 1 : index
    %c0_46 = arith.constant 0 : index
    %c0_47 = arith.constant 0 : index
    %21 = vector.load %arg1[%c0_43, %c0_44, %c1_45, %c0_46, %c0_47] : memref<1x2x2x32x256xf32, #tpu.memory_space<vmem>>, vector<1x1x1x32x128xf32>
    %22 = vector.shape_cast %21 : vector<1x1x1x32x128xf32> to vector<32x128xf32>
    %c0_48 = arith.constant 0 : index
    %c0_49 = arith.constant 0 : index
    %c0_50 = arith.constant 0 : index
    %c0_51 = arith.constant 0 : index
    %c1_52 = arith.constant 1 : index
    %23 = vector.load %arg1[%c0_48, %c0_49, %c0_50, %c0_51, %c1_52] : memref<1x2x2x32x256xf32, #tpu.memory_space<vmem>>, vector<1x1x1x32x128xf32>
    %24 = vector.shape_cast %23 : vector<1x1x1x32x128xf32> to vector<32x128xf32>
    %c0_53 = arith.constant 0 : index
    %c0_54 = arith.constant 0 : index
    %c1_55 = arith.constant 1 : index
    %c0_56 = arith.constant 0 : index
    %c1_57 = arith.constant 1 : index
    %25 = vector.load %arg1[%c0_53, %c0_54, %c1_55, %c0_56, %c1_57] : memref<1x2x2x32x256xf32, #tpu.memory_space<vmem>>, vector<1x1x1x32x128xf32>
    %26 = vector.shape_cast %25 : vector<1x1x1x32x128xf32> to vector<32x128xf32>
    %c0_58 = arith.constant 0 : index
    %c1_59 = arith.constant 1 : index
    %c1_60 = arith.constant 1 : index
    %c0_61 = arith.constant 0 : index
    %c0_62 = arith.constant 0 : index
    %27 = vector.load %arg1[%c0_58, %c1_59, %c1_60, %c0_61, %c0_62] : memref<1x2x2x32x256xf32, #tpu.memory_space<vmem>>, vector<1x1x1x32x128xf32>
    %28 = vector.shape_cast %27 : vector<1x1x1x32x128xf32> to vector<32x128xf32>
    %c0_63 = arith.constant 0 : index
    %c1_64 = arith.constant 1 : index
    %c0_65 = arith.constant 0 : index
    %c0_66 = arith.constant 0 : index
    %c1_67 = arith.constant 1 : index
    %29 = vector.load %arg1[%c0_63, %c1_64, %c0_65, %c0_66, %c1_67] : memref<1x2x2x32x256xf32, #tpu.memory_space<vmem>>, vector<1x1x1x32x128xf32>
    %30 = vector.shape_cast %29 : vector<1x1x1x32x128xf32> to vector<32x128xf32>
    %c0_68 = arith.constant 0 : index
    %c1_69 = arith.constant 1 : index
    %c1_70 = arith.constant 1 : index
    %c0_71 = arith.constant 0 : index
    %c1_72 = arith.constant 1 : index
    %31 = vector.load %arg1[%c0_68, %c1_69, %c1_70, %c0_71, %c1_72] : memref<1x2x2x32x256xf32, #tpu.memory_space<vmem>>, vector<1x1x1x32x128xf32>
    %32 = vector.shape_cast %31 : vector<1x1x1x32x128xf32> to vector<32x128xf32>
    %c0_73 = arith.constant 0 : index
    %c0_74 = arith.constant 0 : index
    %c1_75 = arith.constant 1 : index
    %c0_76 = arith.constant 0 : index
    %c5_77 = arith.constant 5 : index
    %33 = vector.load %arg1[%c0_73, %c0_74, %c1_75, %c0_76, %c5_77] : memref<1x2x2x32x256xf32, #tpu.memory_space<vmem>>, vector<1x1x1x32x128xf32>
    %34 = vector.shape_cast %33 : vector<1x1x1x32x128xf32> to vector<32x128xf32>
    %c0_78 = arith.constant 0 : index
    %c0_79 = arith.constant 0 : index
    %c0_80 = arith.constant 0 : index
    %c0_81 = arith.constant 0 : index
    %c6_82 = arith.constant 6 : index
    %35 = vector.load %arg1[%c0_78, %c0_79, %c0_80, %c0_81, %c6_82] : memref<1x2x2x32x256xf32, #tpu.memory_space<vmem>>, vector<1x1x1x32x128xf32>
    %36 = vector.shape_cast %35 : vector<1x1x1x32x128xf32> to vector<32x128xf32>
    %c0_83 = arith.constant 0 : index
    %c0_84 = arith.constant 0 : index
    %c1_85 = arith.constant 1 : index
    %c0_86 = arith.constant 0 : index
    %c6_87 = arith.constant 6 : index
    %37 = vector.load %arg1[%c0_83, %c0_84, %c1_85, %c0_86, %c6_87] : memref<1x2x2x32x256xf32, #tpu.memory_space<vmem>>, vector<1x1x1x32x128xf32>
    %38 = vector.shape_cast %37 : vector<1x1x1x32x128xf32> to vector<32x128xf32>
    %39 = tpu.concatenate %22, %24, %26, %28, %30, %32, %34, %36, %38 in 0 : vector<32x128xf32>, vector<32x128xf32>, vector<32x128xf32>, vector<32x128xf32>, vector<32x128xf32>, vector<32x128xf32>, vector<32x128xf32>, vector<32x128xf32>, vector<32x128xf32> -> vector<288x128xf32>
    %cst_88 = arith.constant dense<0.000000e+00> : vector<64x128xf32>
    %40 = tpu.matmul %0, %39, %cst_88 {dimension_numbers = #tpu.dot_dimension_numbers<[1], [0], [0], [1], [0, 0, 1, 1], [], []>} : vector<64x288xf32>, vector<288x128xf32>, vector<64x128xf32> -> vector<64x128xf32>
    %41 = arith.maximumf %20, %40 : vector<64x128xf32>
    %c0_89 = arith.constant 0 : index
    %c1_90 = arith.constant 1 : index
    %c0_91 = arith.constant 0 : index
    %c0_92 = arith.constant 0 : index
    %c0_93 = arith.constant 0 : index
    %42 = vector.load %arg1[%c0_89, %c1_90, %c0_91, %c0_92, %c0_93] : memref<1x2x2x32x256xf32, #tpu.memory_space<vmem>>, vector<1x1x1x32x128xf32>
    %43 = vector.shape_cast %42 : vector<1x1x1x32x128xf32> to vector<32x128xf32>
    %c0_94 = arith.constant 0 : index
    %c1_95 = arith.constant 1 : index
    %c1_96 = arith.constant 1 : index
    %c0_97 = arith.constant 0 : index
    %c0_98 = arith.constant 0 : index
    %44 = vector.load %arg1[%c0_94, %c1_95, %c1_96, %c0_97, %c0_98] : memref<1x2x2x32x256xf32, #tpu.memory_space<vmem>>, vector<1x1x1x32x128xf32>
    %45 = vector.shape_cast %44 : vector<1x1x1x32x128xf32> to vector<32x128xf32>
    %c0_99 = arith.constant 0 : index
    %c1_100 = arith.constant 1 : index
    %c0_101 = arith.constant 0 : index
    %c0_102 = arith.constant 0 : index
    %c1_103 = arith.constant 1 : index
    %46 = vector.load %arg1[%c0_99, %c1_100, %c0_101, %c0_102, %c1_103] : memref<1x2x2x32x256xf32, #tpu.memory_space<vmem>>, vector<1x1x1x32x128xf32>
    %47 = vector.shape_cast %46 : vector<1x1x1x32x128xf32> to vector<32x128xf32>
    %c0_104 = arith.constant 0 : index
    %c0_105 = arith.constant 0 : index
    %c0_106 = arith.constant 0 : index
    %c0_107 = arith.constant 0 : index
    %c5_108 = arith.constant 5 : index
    %48 = vector.load %arg1[%c0_104, %c0_105, %c0_106, %c0_107, %c5_108] : memref<1x2x2x32x256xf32, #tpu.memory_space<vmem>>, vector<1x1x1x32x128xf32>
    %49 = vector.shape_cast %48 : vector<1x1x1x32x128xf32> to vector<32x128xf32>
    %c0_109 = arith.constant 0 : index
    %c0_110 = arith.constant 0 : index
    %c1_111 = arith.constant 1 : index
    %c0_112 = arith.constant 0 : index
    %c5_113 = arith.constant 5 : index
    %50 = vector.load %arg1[%c0_109, %c0_110, %c1_111, %c0_112, %c5_113] : memref<1x2x2x32x256xf32, #tpu.memory_space<vmem>>, vector<1x1x1x32x128xf32>
    %51 = vector.shape_cast %50 : vector<1x1x1x32x128xf32> to vector<32x128xf32>
    %c0_114 = arith.constant 0 : index
    %c0_115 = arith.constant 0 : index
    %c0_116 = arith.constant 0 : index
    %c0_117 = arith.constant 0 : index
    %c6_118 = arith.constant 6 : index
    %52 = vector.load %arg1[%c0_114, %c0_115, %c0_116, %c0_117, %c6_118] : memref<1x2x2x32x256xf32, #tpu.memory_space<vmem>>, vector<1x1x1x32x128xf32>
    %53 = vector.shape_cast %52 : vector<1x1x1x32x128xf32> to vector<32x128xf32>
    %c0_119 = arith.constant 0 : index
    %c1_120 = arith.constant 1 : index
    %c0_121 = arith.constant 0 : index
    %c0_122 = arith.constant 0 : index
    %c5_123 = arith.constant 5 : index
    %54 = vector.load %arg1[%c0_119, %c1_120, %c0_121, %c0_122, %c5_123] : memref<1x2x2x32x256xf32, #tpu.memory_space<vmem>>, vector<1x1x1x32x128xf32>
    %55 = vector.shape_cast %54 : vector<1x1x1x32x128xf32> to vector<32x128xf32>
    %c0_124 = arith.constant 0 : index
    %c1_125 = arith.constant 1 : index
    %c1_126 = arith.constant 1 : index
    %c0_127 = arith.constant 0 : index
    %c5_128 = arith.constant 5 : index
    %56 = vector.load %arg1[%c0_124, %c1_125, %c1_126, %c0_127, %c5_128] : memref<1x2x2x32x256xf32, #tpu.memory_space<vmem>>, vector<1x1x1x32x128xf32>
    %57 = vector.shape_cast %56 : vector<1x1x1x32x128xf32> to vector<32x128xf32>
    %c0_129 = arith.constant 0 : index
    %c1_130 = arith.constant 1 : index
    %c0_131 = arith.constant 0 : index
    %c0_132 = arith.constant 0 : index
    %c6_133 = arith.constant 6 : index
    %58 = vector.load %arg1[%c0_129, %c1_130, %c0_131, %c0_132, %c6_133] : memref<1x2x2x32x256xf32, #tpu.memory_space<vmem>>, vector<1x1x1x32x128xf32>
    %59 = vector.shape_cast %58 : vector<1x1x1x32x128xf32> to vector<32x128xf32>
    %60 = tpu.concatenate %43, %45, %47, %49, %51, %53, %55, %57, %59 in 0 : vector<32x128xf32>, vector<32x128xf32>, vector<32x128xf32>, vector<32x128xf32>, vector<32x128xf32>, vector<32x128xf32>, vector<32x128xf32>, vector<32x128xf32>, vector<32x128xf32> -> vector<288x128xf32>
    %cst_134 = arith.constant dense<0.000000e+00> : vector<64x128xf32>
    %61 = tpu.matmul %0, %60, %cst_134 {dimension_numbers = #tpu.dot_dimension_numbers<[1], [0], [0], [1], [0, 0, 1, 1], [], []>} : vector<64x288xf32>, vector<288x128xf32>, vector<64x128xf32> -> vector<64x128xf32>
    %62 = arith.maximumf %41, %61 : vector<64x128xf32>
    %c0_135 = arith.constant 0 : index
    %c1_136 = arith.constant 1 : index
    %c1_137 = arith.constant 1 : index
    %c0_138 = arith.constant 0 : index
    %c0_139 = arith.constant 0 : index
    %63 = vector.load %arg1[%c0_135, %c1_136, %c1_137, %c0_138, %c0_139] : memref<1x2x2x32x256xf32, #tpu.memory_space<vmem>>, vector<1x1x1x32x128xf32>
    %64 = vector.shape_cast %63 : vector<1x1x1x32x128xf32> to vector<32x128xf32>
    %c0_140 = arith.constant 0 : index
    %c1_141 = arith.constant 1 : index
    %c0_142 = arith.constant 0 : index
    %c0_143 = arith.constant 0 : index
    %c1_144 = arith.constant 1 : index
    %65 = vector.load %arg1[%c0_140, %c1_141, %c0_142, %c0_143, %c1_144] : memref<1x2x2x32x256xf32, #tpu.memory_space<vmem>>, vector<1x1x1x32x128xf32>
    %66 = vector.shape_cast %65 : vector<1x1x1x32x128xf32> to vector<32x128xf32>
    %c0_145 = arith.constant 0 : index
    %c1_146 = arith.constant 1 : index
    %c1_147 = arith.constant 1 : index
    %c0_148 = arith.constant 0 : index
    %c1_149 = arith.constant 1 : index
    %67 = vector.load %arg1[%c0_145, %c1_146, %c1_147, %c0_148, %c1_149] : memref<1x2x2x32x256xf32, #tpu.memory_space<vmem>>, vector<1x1x1x32x128xf32>
    %68 = vector.shape_cast %67 : vector<1x1x1x32x128xf32> to vector<32x128xf32>
    %c0_150 = arith.constant 0 : index
    %c0_151 = arith.constant 0 : index
    %c1_152 = arith.constant 1 : index
    %c0_153 = arith.constant 0 : index
    %c5_154 = arith.constant 5 : index
    %69 = vector.load %arg1[%c0_150, %c0_151, %c1_152, %c0_153, %c5_154] : memref<1x2x2x32x256xf32, #tpu.memory_space<vmem>>, vector<1x1x1x32x128xf32>
    %70 = vector.shape_cast %69 : vector<1x1x1x32x128xf32> to vector<32x128xf32>
    %c0_155 = arith.constant 0 : index
    %c0_156 = arith.constant 0 : index
    %c0_157 = arith.constant 0 : index
    %c0_158 = arith.constant 0 : index
    %c6_159 = arith.constant 6 : index
    %71 = vector.load %arg1[%c0_155, %c0_156, %c0_157, %c0_158, %c6_159] : memref<1x2x2x32x256xf32, #tpu.memory_space<vmem>>, vector<1x1x1x32x128xf32>
    %72 = vector.shape_cast %71 : vector<1x1x1x32x128xf32> to vector<32x128xf32>
    %c0_160 = arith.constant 0 : index
    %c0_161 = arith.constant 0 : index
    %c1_162 = arith.constant 1 : index
    %c0_163 = arith.constant 0 : index
    %c6_164 = arith.constant 6 : index
    %73 = vector.load %arg1[%c0_160, %c0_161, %c1_162, %c0_163, %c6_164] : memref<1x2x2x32x256xf32, #tpu.memory_space<vmem>>, vector<1x1x1x32x128xf32>
    %74 = vector.shape_cast %73 : vector<1x1x1x32x128xf32> to vector<32x128xf32>
    %c0_165 = arith.constant 0 : index
    %c1_166 = arith.constant 1 : index
    %c1_167 = arith.constant 1 : index
    %c0_168 = arith.constant 0 : index
    %c5_169 = arith.constant 5 : index
    %75 = vector.load %arg1[%c0_165, %c1_166, %c1_167, %c0_168, %c5_169] : memref<1x2x2x32x256xf32, #tpu.memory_space<vmem>>, vector<1x1x1x32x128xf32>
    %76 = vector.shape_cast %75 : vector<1x1x1x32x128xf32> to vector<32x128xf32>
    %c0_170 = arith.constant 0 : index
    %c1_171 = arith.constant 1 : index
    %c0_172 = arith.constant 0 : index
    %c0_173 = arith.constant 0 : index
    %c6_174 = arith.constant 6 : index
    %77 = vector.load %arg1[%c0_170, %c1_171, %c0_172, %c0_173, %c6_174] : memref<1x2x2x32x256xf32, #tpu.memory_space<vmem>>, vector<1x1x1x32x128xf32>
    %78 = vector.shape_cast %77 : vector<1x1x1x32x128xf32> to vector<32x128xf32>
    %c0_175 = arith.constant 0 : index
    %c1_176 = arith.constant 1 : index
    %c1_177 = arith.constant 1 : index
    %c0_178 = arith.constant 0 : index
    %c6_179 = arith.constant 6 : index
    %79 = vector.load %arg1[%c0_175, %c1_176, %c1_177, %c0_178, %c6_179] : memref<1x2x2x32x256xf32, #tpu.memory_space<vmem>>, vector<1x1x1x32x128xf32>
    %80 = vector.shape_cast %79 : vector<1x1x1x32x128xf32> to vector<32x128xf32>
    %81 = tpu.concatenate %64, %66, %68, %70, %72, %74, %76, %78, %80 in 0 : vector<32x128xf32>, vector<32x128xf32>, vector<32x128xf32>, vector<32x128xf32>, vector<32x128xf32>, vector<32x128xf32>, vector<32x128xf32>, vector<32x128xf32>, vector<32x128xf32> -> vector<288x128xf32>
    %cst_180 = arith.constant dense<0.000000e+00> : vector<64x128xf32>
    %82 = tpu.matmul %0, %81, %cst_180 {dimension_numbers = #tpu.dot_dimension_numbers<[1], [0], [0], [1], [0, 0, 1, 1], [], []>} : vector<64x288xf32>, vector<288x128xf32>, vector<64x128xf32> -> vector<64x128xf32>
    %83 = arith.maximumf %62, %82 : vector<64x128xf32>
    %c0_181 = arith.constant 0 : index
    %c0_182 = arith.constant 0 : index
    %84 = vector.load %arg3[%c0_181, %c0_182] : memref<64x1xf32, #tpu.memory_space<vmem>>, vector<64x1xf32>
    %85 = vector.broadcast %84 : vector<64x1xf32> to vector<64x128xf32>
    %86 = arith.addf %83, %85 : vector<64x128xf32>
    %cst_183 = arith.constant 0.000000e+00 : f32
    %87 = vector.broadcast %cst_183 : f32 to vector<64x128xf32>
    %88 = arith.maximumf %86, %87 : vector<64x128xf32>
    %c0_184 = arith.constant 0 : index
    %c0_185 = arith.constant 0 : index
    %c0_186 = arith.constant 0 : index
    %89 = vector.load %arg4[%c0_184, %c0_185, %c0_186] : memref<1x64x128xf32, #tpu.memory_space<vmem>>, vector<1x64x128xf32>
    %90 = vector.shape_cast %89 : vector<1x64x128xf32> to vector<64x128xf32>
    %91 = vector.shape_cast %88 : vector<64x128xf32> to vector<1x64x128xf32>
    tpu.vector_store %arg4[%c0_184, %c0_185, %c0_186], %91 {strides = array<i32>} : memref<1x64x128xf32, #tpu.memory_space<vmem>>, vector<1x64x128xf32>,
    return
  }
  func.func @transform_0(%arg0: i32) -> (i32, i32, i32, i32, i32) {
    %c0_i32 = arith.constant 0 : i32
    %c0_i32_0 = arith.constant 0 : i32
    %c0_i32_1 = arith.constant 0 : i32
    %c0_i32_2 = arith.constant 0 : i32
    %c0_i32_3 = arith.constant 0 : i32
    return %arg0, %c0_i32, %c0_i32_0, %c0_i32_1, %c0_i32_2 : i32, i32, i32, i32, i32
  }
  func.func @transform_1(%arg0: i32) -> (i32, i32) {
    %c0_i32 = arith.constant 0 : i32
    %c0_i32_0 = arith.constant 0 : i32
    %c0_i32_1 = arith.constant 0 : i32
    return %c0_i32, %c0_i32_0 : i32, i32
  }
  func.func @transform_2(%arg0: i32) -> (i32, i32) {
    %c0_i32 = arith.constant 0 : i32
    %c0_i32_0 = arith.constant 0 : i32
    %c0_i32_1 = arith.constant 0 : i32
    return %c0_i32, %c0_i32_0 : i32, i32
  }
  func.func @transform_3(%arg0: i32) -> (i32, i32, i32) {
    %c0_i32 = arith.constant 0 : i32
    %c0_i32_0 = arith.constant 0 : i32
    %c0_i32_1 = arith.constant 0 : i32
    return %arg0, %c0_i32, %c0_i32_0 : i32, i32, i32
  }
}

module attributes {stable_mosaic.version = 11 : i64} {
  func.func @_mlp_kernel(%arg0: i32, %arg1: memref<2x1024xf32, #tpu.memory_space<vmem>>, %arg2: memref<1024x128xf32, #tpu.memory_space<vmem>>, %arg3: memref<1x128xf32, #tpu.memory_space<vmem>>, %arg4: memref<128x4xf32, #tpu.memory_space<vmem>>, %arg5: memref<1x4xf32, #tpu.memory_space<vmem>>, %arg6: memref<2x4xf32, #tpu.memory_space<vmem>>, %arg7: memref<2x128xf32, #tpu.memory_space<vmem>>) attributes {dimension_semantics = [#tpu.dimension_semantics<arbitrary>], iteration_bounds = array<i64: 1>, scalar_prefetch = 0 : i64, scratch_operands = 1 : i64, tpu.core_type = #tpu.core_type<tc>, window_params = [{transform_indices = @transform_0, window_bounds = array<i64: 2, 1024>}, {transform_indices = @transform_1, window_bounds = array<i64: 1024, 128>}, {pipeline_mode = #tpu.pipeline_mode<synchronous>, transform_indices = @transform_2, window_bounds = array<i64: 1, 128>}, {pipeline_mode = #tpu.pipeline_mode<synchronous>, transform_indices = @transform_3, window_bounds = array<i64: 128, 4>}, {pipeline_mode = #tpu.pipeline_mode<synchronous>, transform_indices = @transform_4, window_bounds = array<i64: 1, 4>}, {pipeline_mode = #tpu.pipeline_mode<synchronous>, transform_indices = @transform_5, window_bounds = array<i64: 2, 4>}]} {
    %c0_i32 = arith.constant 0 : i32
    %0 = arith.cmpi eq, %arg0, %c0_i32 : i32
    %1 = arith.extui %0 : i1 to i32
    %c0_i32_0 = arith.constant 0 : i32
    %2 = arith.cmpi ne, %1, %c0_i32_0 : i32
    scf.if %2 {
      %cst_10 = arith.constant 0.000000e+00 : f32
      %12 = vector.broadcast %cst_10 : f32 to vector<2x128xf32>
      %c0_11 = arith.constant 0 : index
      %c0_12 = arith.constant 0 : index
      %13 = vector.load %arg7[%c0_11, %c0_12] : memref<2x128xf32, #tpu.memory_space<vmem>>, vector<2x128xf32>
      tpu.vector_store %arg7[%c0_11, %c0_12], %12 {strides = array<i32>} : memref<2x128xf32, #tpu.memory_space<vmem>>, vector<2x128xf32>,
    } else {
    }
    %c0 = arith.constant 0 : index
    %c0_1 = arith.constant 0 : index
    %3 = vector.load %arg7[%c0, %c0_1] : memref<2x128xf32, #tpu.memory_space<vmem>>, vector<2x128xf32>
    %c0_2 = arith.constant 0 : index
    %c0_3 = arith.constant 0 : index
    %4 = vector.load %arg1[%c0_2, %c0_3] : memref<2x1024xf32, #tpu.memory_space<vmem>>, vector<2x1024xf32>
    %c0_4 = arith.constant 0 : index
    %c0_5 = arith.constant 0 : index
    %5 = vector.load %arg2[%c0_4, %c0_5] : memref<1024x128xf32, #tpu.memory_space<vmem>>, vector<1024x128xf32>
    %cst = arith.constant dense<0.000000e+00> : vector<2x128xf32>
    %6 = tpu.matmul %4, %5, %cst {dimension_numbers = #tpu.dot_dimension_numbers<[1], [0], [0], [1], [0, 0, 1, 1], [], []>} : vector<2x1024xf32>, vector<1024x128xf32>, vector<2x128xf32> -> vector<2x128xf32>
    %7 = arith.addf %3, %6 : vector<2x128xf32>
    %c0_6 = arith.constant 0 : index
    %c0_7 = arith.constant 0 : index
    %8 = vector.load %arg7[%c0_6, %c0_7] : memref<2x128xf32, #tpu.memory_space<vmem>>, vector<2x128xf32>
    tpu.vector_store %arg7[%c0_6, %c0_7], %7 {strides = array<i32>} : memref<2x128xf32, #tpu.memory_space<vmem>>, vector<2x128xf32>,
    %c0_i32_8 = arith.constant 0 : i32
    %9 = arith.cmpi eq, %arg0, %c0_i32_8 : i32
    %10 = arith.extui %9 : i1 to i32
    %c0_i32_9 = arith.constant 0 : i32
    %11 = arith.cmpi ne, %10, %c0_i32_9 : i32
    scf.if %11 {
      %c0_10 = arith.constant 0 : index
      %c0_11 = arith.constant 0 : index
      %12 = vector.load %arg7[%c0_10, %c0_11] : memref<2x128xf32, #tpu.memory_space<vmem>>, vector<2x128xf32>
      %c0_12 = arith.constant 0 : index
      %c0_13 = arith.constant 0 : index
      %13 = vector.load %arg3[%c0_12, %c0_13] : memref<1x128xf32, #tpu.memory_space<vmem>>, vector<1x128xf32>
      %14 = vector.broadcast %13 : vector<1x128xf32> to vector<2x128xf32>
      %15 = arith.addf %12, %14 : vector<2x128xf32>
      %cst_14 = arith.constant 0.000000e+00 : f32
      %16 = vector.broadcast %cst_14 : f32 to vector<2x128xf32>
      %17 = arith.maximumf %15, %16 : vector<2x128xf32>
      %c0_15 = arith.constant 0 : index
      %c0_16 = arith.constant 0 : index
      %18 = vector.load %arg4[%c0_15, %c0_16] : memref<128x4xf32, #tpu.memory_space<vmem>>, vector<128x4xf32>
      %cst_17 = arith.constant dense<0.000000e+00> : vector<2x4xf32>
      %19 = tpu.matmul %17, %18, %cst_17 {dimension_numbers = #tpu.dot_dimension_numbers<[1], [0], [0], [1], [0, 0, 1, 1], [], []>} : vector<2x128xf32>, vector<128x4xf32>, vector<2x4xf32> -> vector<2x4xf32>
      %c0_18 = arith.constant 0 : index
      %c0_19 = arith.constant 0 : index
      %20 = vector.load %arg5[%c0_18, %c0_19] : memref<1x4xf32, #tpu.memory_space<vmem>>, vector<1x4xf32>
      %21 = vector.broadcast %20 : vector<1x4xf32> to vector<2x4xf32>
      %22 = arith.addf %19, %21 : vector<2x4xf32>
      %c0_20 = arith.constant 0 : index
      %c0_21 = arith.constant 0 : index
      %23 = vector.load %arg6[%c0_20, %c0_21] : memref<2x4xf32, #tpu.memory_space<vmem>>, vector<2x4xf32>
      tpu.vector_store %arg6[%c0_20, %c0_21], %22 {strides = array<i32>} : memref<2x4xf32, #tpu.memory_space<vmem>>, vector<2x4xf32>,
    } else {
    }
    return
  }
  func.func @transform_0(%arg0: i32) -> (i32, i32) {
    %c0_i32 = arith.constant 0 : i32
    %c0_i32_0 = arith.constant 0 : i32
    return %c0_i32, %arg0 : i32, i32
  }
  func.func @transform_1(%arg0: i32) -> (i32, i32) {
    %c0_i32 = arith.constant 0 : i32
    %c0_i32_0 = arith.constant 0 : i32
    return %arg0, %c0_i32 : i32, i32
  }
  func.func @transform_2(%arg0: i32) -> (i32, i32) {
    %c0_i32 = arith.constant 0 : i32
    %c0_i32_0 = arith.constant 0 : i32
    %c0_i32_1 = arith.constant 0 : i32
    return %c0_i32, %c0_i32_0 : i32, i32
  }
  func.func @transform_3(%arg0: i32) -> (i32, i32) {
    %c0_i32 = arith.constant 0 : i32
    %c0_i32_0 = arith.constant 0 : i32
    %c0_i32_1 = arith.constant 0 : i32
    return %c0_i32, %c0_i32_0 : i32, i32
  }
  func.func @transform_4(%arg0: i32) -> (i32, i32) {
    %c0_i32 = arith.constant 0 : i32
    %c0_i32_0 = arith.constant 0 : i32
    %c0_i32_1 = arith.constant 0 : i32
    return %c0_i32, %c0_i32_0 : i32, i32
  }
  func.func @transform_5(%arg0: i32) -> (i32, i32) {
    %c0_i32 = arith.constant 0 : i32
    %c0_i32_0 = arith.constant 0 : i32
    %c0_i32_1 = arith.constant 0 : i32
    return %c0_i32, %c0_i32_0 : i32, i32
  }
}

</mosaic_0001>

<llo_original>
// kernel: lunar_lander_convnet_forward.3
$region0: #{lunar_lander_convnet_forward.3}
  #allocation0 [shape = 'u32[]', space=smem, size = 0x4, offset = 0x4, fixed_abs, tag = 'smem constant byte address 0x4 - core index']
  #allocation1 [shape = 'u32[144,128]{1,0:T(1,128)}', space=vmem, size = 0x12000, scoped, tag = 'internal scratch']
  %s0 = inlined_call_operand.vmem [shape: f32[2,2,2,8,256], index: 0, kind: input, shape index: {}]
  %s1 = inlined_call_operand.vmem [shape: f32[32,72], index: 1, kind: input, shape index: {}]
  %s2 = inlined_call_operand.vmem [shape: f32[32,1], index: 2, kind: input, shape index: {}]
  %s3 = inlined_call_operand.vmem [shape: f32[2,32,128], index: 3, kind: output, shape index: {}]
  %s4 = sld [smem:[#allocation0]]
  $region45: #{lunar_lander_convnet_forward.3} parent=0
    _
  %s6 = ssub.s32 1, %s4
  %s7 = scalar_select 0, %s6, %s4
  loop: start=0, step=1, limit=4
  $region2: #{lunar_lander_convnet_forward.3} parent=0 // loop_pre_header
    _
  $region3: #{lunar_lander_convnet_forward.3} parent=0 // loop_header
    %s9 = sphi 0, %s13
    %p10 = scmp.ge.s32.totalorder %s9, 4
    %s19 = sphi 0, %s21
    %s22 = sphi 0, %s19
    %s23 = sphi 0, %s22
    %s39 = sphi 0, %s23
    %s43 = sphi 0, %s43
    %s45 = sphi 0, %s43
    %s46 = sphi 0, %s45
    %s60 = sphi 0, %s46
    %s64 = sphi 0, %s64
    %s66 = sphi 0, %s64
    %s67 = sphi 0, %s66
    %s81 = sphi 0, %s67
    %s87 = sphi 0, %s89
    %s90 = sphi 0, %s87
    %s91 = sphi 0, %s90
    %s107 = sphi 0, %s91
  $region4: #{lunar_lander_convnet_forward.3} parent=0 // loop_header_branch
    %12 = sbr.rel (%p10) target = $region8
  $region5: #{lunar_lander_convnet_forward.3} parent=0 // loop_body
    %s14 = ssub.s32 %s9, 1
    %s15 = ssub.s32 %s9, 2
    %s16 = sadd.s32 %s9, 1
    %s17 = ssub.s32 %s9, %s16
    %p18 = scmp.eq.s32.totalorder %s17, 0
    %s20 = sadd.s32 %s19, 1
    %s21 = scalar_select %p18, %s19, %s20
    %p24 = pneg %p18
    %p25 = scmp.eq.s32.totalorder %s9, 1
    %p26 = por %p24, %p25
    %p27 = scmp.ne.s32.totalorder %s19, %s22
    %p28 = scmp.eq.s32.totalorder %s9, 0
    %p29 = por %p27, %p28
    %p30 = scmp.ne.s32.totalorder %s19, %s22
    %p31 = scmp.eq.s32.totalorder %s14, 1
    %p32 = por %p30, %p31
    %p33 = scmp.ne.s32.totalorder %s22, %s23
    %p34 = scmp.eq.s32.totalorder %s14, 0
    %p35 = por %p33, %p34
    %p36 = scmp.ne.s32.totalorder %s22, %s23
    %p37 = scmp.eq.s32.totalorder %s15, 1
    %p38 = por %p36, %p37
    %p40 = scmp.ne.s32.totalorder %s23, %s39
    %p41 = scmp.eq.s32.totalorder %s15, 0
    %p42 = por %p40, %p41
    %s44 = sadd.s32 %s43, 1
    %p47 = scmp.eq.s32.totalorder %s9, 1
    %p48 = scmp.ne.s32.totalorder %s43, %s45
    %p49 = scmp.eq.s32.totalorder %s9, 0
    %p50 = por %p48, %p49
    %p51 = scmp.ne.s32.totalorder %s43, %s45
    %p52 = scmp.eq.s32.totalorder %s14, 1
    %p53 = por %p51, %p52
    %p54 = scmp.ne.s32.totalorder %s45, %s46
    %p55 = scmp.eq.s32.totalorder %s14, 0
    %p56 = por %p54, %p55
    %p57 = scmp.ne.s32.totalorder %s45, %s46
    %p58 = scmp.eq.s32.totalorder %s15, 1
    %p59 = por %p57, %p58
    %p61 = scmp.ne.s32.totalorder %s46, %s60
    %p62 = scmp.eq.s32.totalorder %s15, 0
    %p63 = por %p61, %p62
    %s65 = sadd.s32 %s64, 1
    %p68 = scmp.eq.s32.totalorder %s9, 1
    %p69 = scmp.ne.s32.totalorder %s64, %s66
    %p70 = scmp.eq.s32.totalorder %s9, 0
    %p71 = por %p69, %p70
    %p72 = scmp.ne.s32.totalorder %s64, %s66
    %p73 = scmp.eq.s32.totalorder %s14, 1
    %p74 = por %p72, %p73
    %p75 = scmp.ne.s32.totalorder %s66, %s67
    %p76 = scmp.eq.s32.totalorder %s14, 0
    %p77 = por %p75, %p76
    %p78 = scmp.ne.s32.totalorder %s66, %s67
    %p79 = scmp.eq.s32.totalorder %s15, 1
    %p80 = por %p78, %p79
    %p82 = scmp.ne.s32.totalorder %s67, %s81
    %p83 = scmp.eq.s32.totalorder %s15, 0
    %p84 = por %p82, %p83
    %s85 = ssub.s32 %s9, %s16
    %p86 = scmp.eq.s32.totalorder %s85, 0
    %s88 = sadd.s32 %s87, 1
    %s89 = scalar_select %p86, %s87, %s88
    %p92 = pneg %p86
    %p93 = scmp.eq.s32.totalorder %s9, 1
    %p94 = por %p92, %p93
    %p95 = scmp.ne.s32.totalorder %s87, %s90
    %p96 = scmp.eq.s32.totalorder %s9, 0
    %p97 = por %p95, %p96
    %p98 = scmp.ne.s32.totalorder %s87, %s90
    %p99 = scmp.eq.s32.totalorder %s14, 1
    %p100 = por %p98, %p99
    %p101 = scmp.ne.s32.totalorder %s90, %s91
    %p102 = scmp.eq.s32.totalorder %s14, 0
    %p103 = por %p101, %p102
    %p104 = scmp.ne.s32.totalorder %s90, %s91
    %p105 = scmp.eq.s32.totalorder %s15, 1
    %p106 = por %p104, %p105
    %p108 = scmp.ne.s32.totalorder %s91, %s107
    %p109 = scmp.eq.s32.totalorder %s15, 0
    %p110 = por %p108, %p109
    %p111 = scmp.le.s32.totalorder 1, %s9
    %p112 = scmp.lt.s32.totalorder %s9, 3
    %p113 = pnand %p111, %p112
    %p114 = pneg %p113
    // Predicated region
    $region9: #{lunar_lander_convnet_forward.3} parent=5 // pred_check
      _
    $region10: #{lunar_lander_convnet_forward.3} parent=5 // pred_check_branch
      %116 = sbr.rel (%p113) target = $region12
    $region11: #{lunar_lander_convnet_forward.3} parent=5 // pred_region
      %s117 = ssub.s32 %s9, 1
      // Predicated region
      $region13: #{lunar_lander_convnet_forward.3} parent=11 // pred_check
        %p118 = pneg %p56
      $region14: #{lunar_lander_convnet_forward.3} parent=11 // pred_check_branch
        %120 = sbr.rel (%p118) target = $region16
      $region15: #{lunar_lander_convnet_forward.3} parent=11 // pred_region
        _
      $region16: #{lunar_lander_convnet_forward.3} parent=11 // pred_fallthru
        _
      // Predicated region
      $region17: #{lunar_lander_convnet_forward.3} parent=11 // pred_check
        %p121 = pneg %p77
      $region18: #{lunar_lander_convnet_forward.3} parent=11 // pred_check_branch
        %123 = sbr.rel (%p121) target = $region20
      $region19: #{lunar_lander_convnet_forward.3} parent=11 // pred_region
        _
      $region20: #{lunar_lander_convnet_forward.3} parent=11 // pred_fallthru
        _
    $region12: #{lunar_lander_convnet_forward.3} parent=5 // pred_fallthru
      _
    %p124 = scmp.lt.s32.totalorder %s9, 2
    // Predicated region
    $region21: #{lunar_lander_convnet_forward.3} parent=5 // pred_check
      %p125 = pneg %p124
    $region22: #{lunar_lander_convnet_forward.3} parent=5 // pred_check_branch
      %127 = sbr.rel (%p125) target = $region24
    $region23: #{lunar_lander_convnet_forward.3} parent=5 // pred_region
      // Predicated region
      $region25: #{lunar_lander_convnet_forward.3} parent=23 // pred_check
        %p128 = pneg %p29
      $region26: #{lunar_lander_convnet_forward.3} parent=23 // pred_check_branch
        %130 = sbr.rel (%p128) target = $region28
      $region27: #{lunar_lander_convnet_forward.3} parent=23 // pred_region
        %p131 = scmp.lt.s32.totalorder %s9, 1
        %s132 = scalar_select %p131, %s9, 1
        %s133 = smul.addr %s132, 8
        %s134 = smul.addr %s133, 8
        %s135 = scalar_lea.vmem %s0, %s134
      $region28: #{lunar_lander_convnet_forward.3} parent=23 // pred_fallthru
        _
    $region24: #{lunar_lander_convnet_forward.3} parent=5 // pred_fallthru
      _
    %p136 = scmp.le.s32.totalorder 1, %s9
    %p137 = scmp.lt.s32.totalorder %s9, 3
    %p138 = pnand %p136, %p137
    %p139 = pneg %p138
    // Predicated region
    $region29: #{lunar_lander_convnet_forward.3} parent=5 // pred_check
      _
    $region30: #{lunar_lander_convnet_forward.3} parent=5 // pred_check_branch
      %141 = sbr.rel (%p138) target = $region32
    $region31: #{lunar_lander_convnet_forward.3} parent=5 // pred_region
      %s142 = ssub.s32 %s9, 1
      %p143 = scmp.lt.s32.totalorder %s14, 1
      %s144 = scalar_select %p143, %s14, 1
      %s145 = smul.addr %s144, 8
      %s146 = smul.addr %s145, 8
      %s147 = scalar_lea.vmem %s0, %s146
      %p148 = pneg %p35
      %p149 = pneg %p32
      %p150 = pneg %p56
      %p151 = pneg %p53
      %p152 = pneg %p77
      %p153 = pneg %p74
      %p154 = pneg %p103
      %p155 = pneg %p100
      %p156 = scmp.lt.s32.totalorder %s14, 1
      %s157 = scalar_select %p156, %s14, 1
      %s158 = smul.addr %s157, 4
      %s159 = smul.addr %s158, 8
      %s160 = scalar_lea.vmem %s3, %s159
      %p161 = scmp.lt.s32.totalorder %s14, 1
      %s162 = scalar_select %p161, %s14, 1
      %s163 = smul.addr %s162, 8
      %s164 = smul.addr %s163, 8
      %s165 = scalar_lea.vmem %s0, %s164
      %p166 = scmp.lt.s32.totalorder %s14, 1
      %s167 = scalar_select %p166, %s14, 1
      %s168 = smul.addr %s167, 4
      %s169 = smul.addr %s168, 8
      %s170 = scalar_lea.vmem %s3, %s169
      %v171 = vld [vmem:[%s1] sm:$0xff]
      %v172 = vld [vmem:[%s1 + $0x8] sm:$0xff]
      %v173 = vld [vmem:[%s1 + $0x10] sm:$0xff]
      %v174 = vld [vmem:[%s1 + $0x18] sm:$0xff]
      %v175 = vld [vmem:[%s165] sm:$0xff]
      %s176 = scalar_lea.vmem %s165, 16
      %v177 = vld [vmem:[%s176] sm:$0xff]
      %v178 = vld [vmem:[%s165 + $0x8] sm:$0xff]
      %s179 = scalar_lea.vmem %s165, 32
      %v180 = vld [vmem:[%s179] sm:$0xff]
      %s181 = scalar_lea.vmem %s165, 48
      %v182 = vld [vmem:[%s181] sm:$0xff]
      %v183 = vld [vmem:[%s179 + $0x8] sm:$0xff]
      %v184 = vld [vmem:[%s176 + $0x8] sm:$0xff]
      %187 = vrot.lane.b32.xlu0 %v175, 127
      %v188 = vpop.permute.xlu0 %187
      %189 = vrot.lane.b32.xlu0 %v178, 127
      %v190 = vpop.permute.xlu0 %189
      %vm191 = vcmask 1039360
      %v192 = vsel %vm191, %v188, %v190
      %196 = vrot.lane.b32.xlu0 %v180, 127
      %v197 = vpop.permute.xlu0 %196
      %198 = vrot.lane.b32.xlu0 %v183, 127
      %v199 = vpop.permute.xlu0 %198
      %v200 = vsel %vm191, %v197, %v199
      %202 = vrot.lane.b32.xlu0 %v175, 119
      %v203 = vpop.permute.xlu0 %202
      %204 = vrot.lane.b32.xlu0 %v178, 119
      %v205 = vpop.permute.xlu0 %204
      %vm206 = vcmask 973824
      %v207 = vsel %vm206, %v203, %v205
      %211 = vrot.lane.b32.xlu0 %v177, 119
      %v212 = vpop.permute.xlu0 %211
      %213 = vrot.lane.b32.xlu0 %v184, 119
      %v214 = vpop.permute.xlu0 %213
      %v215 = vsel %vm206, %v212, %v214
      %217 = vrot.lane.b32.xlu0 %v175, 118
      %v218 = vpop.permute.xlu0 %217
      %219 = vrot.lane.b32.xlu0 %v178, 118
      %v220 = vpop.permute.xlu0 %219
      %vm221 = vcmask 965632
      %v222 = vsel %vm221, %v218, %v220
      %vm224 = vcmask 588800
      %v226 = vsel %vm224, %v171, 0
      %v229 = vsel %vm224, %v172, 0
      %v232 = vsel %vm224, %v173, 0
      %v235 = vsel %vm224, %v174, 0
      %237 = vmatprep.subr.mxu0 0.0
      %238 = vmatpush1.msra.mxu0 %v175
      %239 = vmatprep.subr.mxu0 0.0
      %240 = vmatpush1.msra.mxu0 %v177
      %241 = vmatprep.subr.mxu0 0.0
      %242 = vmatpush1.msra.mxu0 %v192
      %243 = vmatprep.subr.mxu0 0.0
      %244 = vmatpush1.msra.mxu0 %v180
      %245 = vmatprep.subr.mxu0 0.0
      %246 = vmatpush1.msra.mxu0 %v182
      %247 = vmatprep.subr.mxu0 0.0
      %248 = vmatpush1.msra.mxu0 %v200
      %249 = vmatprep.subr.mxu0 0.0
      %250 = vmatpush1.msra.mxu0 %v207
      %251 = vmatprep.subr.mxu0 0.0
      %252 = vmatpush1.msra.mxu0 %v215
      %253 = vmatprep.subr.mxu0 0.0
      %254 = vmatpush1.msra.mxu0 %v222
      %255 = vmatprep.subr.mxu0 0.0
      %256 = vmatpush1.msra.mxu0 0.0
      %257 = vmatprep.subr.mxu0 0.0
      %258 = vmatpush1.msra.mxu0 0.0
      %259 = vmatprep.subr.mxu0 0.0
      %260 = vmatpush1.msra.mxu0 0.0
      %261 = vmatprep.subr.mxu0 0.0
      %262 = vmatpush1.msra.mxu0 0.0
      %263 = vmatprep.subr.mxu0 0.0
      %264 = vmatpush1.msra.mxu0 0.0
      %265 = vmatprep.subr.mxu0 0.0
      %266 = vmatpush1.msra.mxu0 0.0
      %267 = vmatprep.subr.mxu0 0.0
      %268 = vmatpush1.msra.mxu0 0.0
      %269 = vmatprep.subr.mxu0 0.0
      %270 = vmatpush1.msra.mxu0 0.0
      %271 = vmatprep.subr.mxu0 0.0
      %272 = vmatpush1.msra.mxu0 0.0
      %273 = vmatprep.subr.mxu0 0.0
      %274 = vmatpush1.msra.mxu0 0.0
      %275 = vmatprep.subr.mxu0 0.0
      %276 = vmatpush1.msra.mxu0 0.0
      %277 = vmatprep.subr.mxu0 0.0
      %278 = vmatpush1.msra.mxu0 0.0
      %279 = vmatprep.subr.mxu0 0.0
      %280 = vmatpush1.msra.mxu0 0.0
      %281 = vmatprep.subr.mxu0 0.0
      %282 = vmatpush1.msra.mxu0 0.0
      %283 = vmatprep.subr.mxu0 0.0
      %284 = vmatpush1.msra.mxu0 0.0
      %285 = vmatprep.subr.mxu0 0.0
      %286 = vmatpush1.msra.mxu0 0.0
      %287 = vmatprep.subr.mxu0 0.0
      %288 = vmatpush1.msra.mxu0 0.0
      %289 = vmatprep.subr.mxu0 0.0
      %290 = vmatpush1.msra.mxu0 0.0
      %291 = vmatprep.subr.mxu0 0.0
      %292 = vmatpush1.msra.mxu0 0.0
      %293 = vmatprep.subr.mxu0 0.0
      %294 = vmatpush1.msra.mxu0 0.0
      %295 = vmatprep.subr.mxu0 0.0
      %296 = vmatpush1.msra.mxu0 0.0
      %297 = vmatprep.subr.mxu0 0.0
      %298 = vmatpush1.msra.mxu0 0.0
      %299 = vmatprep.subr.mxu0 0.0
      %300 = vmatpush1.msra.mxu0 0.0
      %301 = vmatprep.mubr.f32.mxu0 0.0
      %302 = vmatmul.mubr.f32.gmra.mrb[0].mxu0 %v226
      %v303 = vpop.f32.mrb[0].mxu0
      %v304 = vadd.f32 0.0, %v303
      %v305 = vpop.f32.mrb[0].mxu0
      %306 = vmatprep.mubr.f32.mxu0 0.0
      %307 = vmatmul.mubr.f32.gmra.mrb[0].mxu0 %v229
      %v308 = vpop.f32.mrb[0].mxu0
      %v309 = vadd.f32 0.0, %v308
      %v310 = vpop.f32.mrb[0].mxu0
      %311 = vmatprep.mubr.f32.mxu0 0.0
      %312 = vmatmul.mubr.f32.gmra.mrb[0].mxu0 %v232
      %v313 = vpop.f32.mrb[0].mxu0
      %v314 = vadd.f32 0.0, %v313
      %v315 = vpop.f32.mrb[0].mxu0
      %316 = vmatprep.mubr.f32.mxu0 0.0
      %317 = vmatmul.mubr.f32.gmra.mrb[0].mxu0 %v235
      %v318 = vpop.f32.mrb[0].mxu0
      %v319 = vadd.f32 0.0, %v318
      %v320 = vpop.f32.mrb[0].mxu0
      %321 = vdwg.mxu0
      %v322 = vld [vmem:[%s181] sm:$0xff]
      %v323 = vld [vmem:[%s181 + $0x8] sm:$0xff]
      %324 = vrot.lane.b32.xlu0 %v177, 127
      %v325 = vpop.permute.xlu0 %324
      %326 = vrot.lane.b32.xlu0 %v184, 127
      %v327 = vpop.permute.xlu0 %326
      %v328 = vsel %vm191, %v325, %v327
      %332 = vrot.lane.b32.xlu0 %v322, 127
      %v333 = vpop.permute.xlu0 %332
      %334 = vrot.lane.b32.xlu0 %v323, 127
      %v335 = vpop.permute.xlu0 %334
      %v336 = vsel %vm191, %v333, %v335
      %338 = vrot.lane.b32.xlu0 %v177, 118
      %v339 = vpop.permute.xlu0 %338
      %340 = vrot.lane.b32.xlu0 %v184, 118
      %v341 = vpop.permute.xlu0 %340
      %v342 = vsel %vm221, %v339, %v341
      %344 = vmatprep.subr.mxu0 0.0
      %345 = vmatpush1.msra.mxu0 %v177
      %346 = vmatprep.subr.mxu0 0.0
      %347 = vmatpush1.msra.mxu0 %v192
      %348 = vmatprep.subr.mxu0 0.0
      %349 = vmatpush1.msra.mxu0 %v328
      %350 = vmatprep.subr.mxu0 0.0
      %351 = vmatpush1.msra.mxu0 %v182
      %352 = vmatprep.subr.mxu0 0.0
      %353 = vmatpush1.msra.mxu0 %v200
      %354 = vmatprep.subr.mxu0 0.0
      %355 = vmatpush1.msra.mxu0 %v336
      %356 = vmatprep.subr.mxu0 0.0
      %357 = vmatpush1.msra.mxu0 %v215
      %358 = vmatprep.subr.mxu0 0.0
      %359 = vmatpush1.msra.mxu0 %v222
      %360 = vmatprep.subr.mxu0 0.0
      %361 = vmatpush1.msra.mxu0 %v342
      %362 = vmatprep.subr.mxu0 0.0
      %363 = vmatpush1.msra.mxu0 0.0
      %364 = vmatprep.subr.mxu0 0.0
      %365 = vmatpush1.msra.mxu0 0.0
      %366 = vmatprep.subr.mxu0 0.0
      %367 = vmatpush1.msra.mxu0 0.0
      %368 = vmatprep.subr.mxu0 0.0
      %369 = vmatpush1.msra.mxu0 0.0
      %370 = vmatprep.subr.mxu0 0.0
      %371 = vmatpush1.msra.mxu0 0.0
      %372 = vmatprep.subr.mxu0 0.0
      %373 = vmatpush1.msra.mxu0 0.0
      %374 = vmatprep.subr.mxu0 0.0
      %375 = vmatpush1.msra.mxu0 0.0
      %376 = vmatprep.subr.mxu0 0.0
      %377 = vmatpush1.msra.mxu0 0.0
      %378 = vmatprep.subr.mxu0 0.0
      %379 = vmatpush1.msra.mxu0 0.0
      %380 = vmatprep.subr.mxu0 0.0
      %381 = vmatpush1.msra.mxu0 0.0
      %382 = vmatprep.subr.mxu0 0.0
      %383 = vmatpush1.msra.mxu0 0.0
      %384 = vmatprep.subr.mxu0 0.0
      %385 = vmatpush1.msra.mxu0 0.0
      %386 = vmatprep.subr.mxu0 0.0
      %387 = vmatpush1.msra.mxu0 0.0
      %388 = vmatprep.subr.mxu0 0.0
      %389 = vmatpush1.msra.mxu0 0.0
      %390 = vmatprep.subr.mxu0 0.0
      %391 = vmatpush1.msra.mxu0 0.0
      %392 = vmatprep.subr.mxu0 0.0
      %393 = vmatpush1.msra.mxu0 0.0
      %394 = vmatprep.subr.mxu0 0.0
      %395 = vmatpush1.msra.mxu0 0.0
      %396 = vmatprep.subr.mxu0 0.0
      %397 = vmatpush1.msra.mxu0 0.0
      %398 = vmatprep.subr.mxu0 0.0
      %399 = vmatpush1.msra.mxu0 0.0
      %400 = vmatprep.subr.mxu0 0.0
      %401 = vmatpush1.msra.mxu0 0.0
      %402 = vmatprep.subr.mxu0 0.0
      %403 = vmatpush1.msra.mxu0 0.0
      %404 = vmatprep.subr.mxu0 0.0
      %405 = vmatpush1.msra.mxu0 0.0
      %406 = vmatprep.subr.mxu0 0.0
      %407 = vmatpush1.msra.mxu0 0.0
      %408 = vmatprep.mubr.f32.mxu0 0.0
      %409 = vmatmul.mubr.f32.gmra.mrb[0].mxu0 %v226
      %v410 = vpop.f32.mrb[0].mxu0
      %v411 = vadd.f32 0.0, %v410
      %v412 = vpop.f32.mrb[0].mxu0
      %413 = vmatprep.mubr.f32.mxu0 0.0
      %414 = vmatmul.mubr.f32.gmra.mrb[0].mxu0 %v229
      %v415 = vpop.f32.mrb[0].mxu0
      %v416 = vadd.f32 0.0, %v415
      %v417 = vpop.f32.mrb[0].mxu0
      %418 = vmatprep.mubr.f32.mxu0 0.0
      %419 = vmatmul.mubr.f32.gmra.mrb[0].mxu0 %v232
      %v420 = vpop.f32.mrb[0].mxu0
      %v421 = vadd.f32 0.0, %v420
      %v422 = vpop.f32.mrb[0].mxu0
      %423 = vmatprep.mubr.f32.mxu0 0.0
      %424 = vmatmul.mubr.f32.gmra.mrb[0].mxu0 %v235
      %v425 = vpop.f32.mrb[0].mxu0
      %v426 = vadd.f32 0.0, %v425
      %v427 = vpop.f32.mrb[0].mxu0
      %428 = vdwg.mxu0
      %v429 = vmax.f32 %v304, %v411
      %v430 = vmax.f32 %v309, %v416
      %v431 = vmax.f32 %v314, %v421
      %v432 = vmax.f32 %v319, %v426
      %433 = vrot.lane.b32.xlu0 %v180, 119
      %v434 = vpop.permute.xlu0 %433
      %435 = vrot.lane.b32.xlu0 %v183, 119
      %v436 = vpop.permute.xlu0 %435
      %v437 = vsel %vm206, %v434, %v436
      %439 = vrot.lane.b32.xlu0 %v322, 119
      %v440 = vpop.permute.xlu0 %439
      %441 = vrot.lane.b32.xlu0 %v323, 119
      %v442 = vpop.permute.xlu0 %441
      %v443 = vsel %vm206, %v440, %v442
      %445 = vrot.lane.b32.xlu0 %v180, 118
      %v446 = vpop.permute.xlu0 %445
      %447 = vrot.lane.b32.xlu0 %v183, 118
      %v448 = vpop.permute.xlu0 %447
      %v449 = vsel %vm221, %v446, %v448
      %451 = vmatprep.subr.mxu0 0.0
      %452 = vmatpush1.msra.mxu0 %v180
      %453 = vmatprep.subr.mxu0 0.0
      %454 = vmatpush1.msra.mxu0 %v182
      %455 = vmatprep.subr.mxu0 0.0
      %456 = vmatpush1.msra.mxu0 %v200
      %457 = vmatprep.subr.mxu0 0.0
      %458 = vmatpush1.msra.mxu0 %v207
      %459 = vmatprep.subr.mxu0 0.0
      %460 = vmatpush1.msra.mxu0 %v215
      %461 = vmatprep.subr.mxu0 0.0
      %462 = vmatpush1.msra.mxu0 %v222
      %463 = vmatprep.subr.mxu0 0.0
      %464 = vmatpush1.msra.mxu0 %v437
      %465 = vmatprep.subr.mxu0 0.0
      %466 = vmatpush1.msra.mxu0 %v443
      %467 = vmatprep.subr.mxu0 0.0
      %468 = vmatpush1.msra.mxu0 %v449
      %469 = vmatprep.subr.mxu0 0.0
      %470 = vmatpush1.msra.mxu0 0.0
      %471 = vmatprep.subr.mxu0 0.0
      %472 = vmatpush1.msra.mxu0 0.0
      %473 = vmatprep.subr.mxu0 0.0
      %474 = vmatpush1.msra.mxu0 0.0
      %475 = vmatprep.subr.mxu0 0.0
      %476 = vmatpush1.msra.mxu0 0.0
      %477 = vmatprep.subr.mxu0 0.0
      %478 = vmatpush1.msra.mxu0 0.0
      %479 = vmatprep.subr.mxu0 0.0
      %480 = vmatpush1.msra.mxu0 0.0
      %481 = vmatprep.subr.mxu0 0.0
      %482 = vmatpush1.msra.mxu0 0.0
      %483 = vmatprep.subr.mxu0 0.0
      %484 = vmatpush1.msra.mxu0 0.0
      %485 = vmatprep.subr.mxu0 0.0
      %486 = vmatpush1.msra.mxu0 0.0
      %487 = vmatprep.subr.mxu0 0.0
      %488 = vmatpush1.msra.mxu0 0.0
      %489 = vmatprep.subr.mxu0 0.0
      %490 = vmatpush1.msra.mxu0 0.0
      %491 = vmatprep.subr.mxu0 0.0
      %492 = vmatpush1.msra.mxu0 0.0
      %493 = vmatprep.subr.mxu0 0.0
      %494 = vmatpush1.msra.mxu0 0.0
      %495 = vmatprep.subr.mxu0 0.0
      %496 = vmatpush1.msra.mxu0 0.0
      %497 = vmatprep.subr.mxu0 0.0
      %498 = vmatpush1.msra.mxu0 0.0
      %499 = vmatprep.subr.mxu0 0.0
      %500 = vmatpush1.msra.mxu0 0.0
      %501 = vmatprep.subr.mxu0 0.0
      %502 = vmatpush1.msra.mxu0 0.0
      %503 = vmatprep.subr.mxu0 0.0
      %504 = vmatpush1.msra.mxu0 0.0
      %505 = vmatprep.subr.mxu0 0.0
      %506 = vmatpush1.msra.mxu0 0.0
      %507 = vmatprep.subr.mxu0 0.0
      %508 = vmatpush1.msra.mxu0 0.0
      %509 = vmatprep.subr.mxu0 0.0
      %510 = vmatpush1.msra.mxu0 0.0
      %511 = vmatprep.subr.mxu0 0.0
      %512 = vmatpush1.msra.mxu0 0.0
      %513 = vmatprep.subr.mxu0 0.0
      %514 = vmatpush1.msra.mxu0 0.0
      %515 = vmatprep.mubr.f32.mxu0 0.0
      %516 = vmatmul.mubr.f32.gmra.mrb[0].mxu0 %v226
      %v517 = vpop.f32.mrb[0].mxu0
      %v518 = vadd.f32 0.0, %v517
      %v519 = vpop.f32.mrb[0].mxu0
      %520 = vmatprep.mubr.f32.mxu0 0.0
      %521 = vmatmul.mubr.f32.gmra.mrb[0].mxu0 %v229
      %v522 = vpop.f32.mrb[0].mxu0
      %v523 = vadd.f32 0.0, %v522
      %v524 = vpop.f32.mrb[0].mxu0
      %525 = vmatprep.mubr.f32.mxu0 0.0
      %526 = vmatmul.mubr.f32.gmra.mrb[0].mxu0 %v232
      %v527 = vpop.f32.mrb[0].mxu0
      %v528 = vadd.f32 0.0, %v527
      %v529 = vpop.f32.mrb[0].mxu0
      %530 = vmatprep.mubr.f32.mxu0 0.0
      %531 = vmatmul.mubr.f32.gmra.mrb[0].mxu0 %v235
      %v532 = vpop.f32.mrb[0].mxu0
      %v533 = vadd.f32 0.0, %v532
      %v534 = vpop.f32.mrb[0].mxu0
      %535 = vdwg.mxu0
      %v536 = vmax.f32 %v429, %v518
      %v537 = vmax.f32 %v430, %v523
      %v538 = vmax.f32 %v431, %v528
      %v539 = vmax.f32 %v432, %v533
      %540 = vrot.lane.b32.xlu0 %v322, 118
      %v541 = vpop.permute.xlu0 %540
      %542 = vrot.lane.b32.xlu0 %v323, 118
      %v543 = vpop.permute.xlu0 %542
      %v544 = vsel %vm221, %v541, %v543
      %546 = vmatprep.subr.mxu0 0.0
      %547 = vmatpush1.msra.mxu0 %v182
      %548 = vmatprep.subr.mxu0 0.0
      %549 = vmatpush1.msra.mxu0 %v200
      %550 = vmatprep.subr.mxu0 0.0
      %551 = vmatpush1.msra.mxu0 %v336
      %552 = vmatprep.subr.mxu0 0.0
      %553 = vmatpush1.msra.mxu0 %v215
      %554 = vmatprep.subr.mxu0 0.0
      %555 = vmatpush1.msra.mxu0 %v222
      %556 = vmatprep.subr.mxu0 0.0
      %557 = vmatpush1.msra.mxu0 %v342
      %558 = vmatprep.subr.mxu0 0.0
      %559 = vmatpush1.msra.mxu0 %v443
      %560 = vmatprep.subr.mxu0 0.0
      %561 = vmatpush1.msra.mxu0 %v449
      %562 = vmatprep.subr.mxu0 0.0
      %563 = vmatpush1.msra.mxu0 %v544
      %564 = vmatprep.subr.mxu0 0.0
      %565 = vmatpush1.msra.mxu0 0.0
      %566 = vmatprep.subr.mxu0 0.0
      %567 = vmatpush1.msra.mxu0 0.0
      %568 = vmatprep.subr.mxu0 0.0
      %569 = vmatpush1.msra.mxu0 0.0
      %570 = vmatprep.subr.mxu0 0.0
      %571 = vmatpush1.msra.mxu0 0.0
      %572 = vmatprep.subr.mxu0 0.0
      %573 = vmatpush1.msra.mxu0 0.0
      %574 = vmatprep.subr.mxu0 0.0
      %575 = vmatpush1.msra.mxu0 0.0
      %576 = vmatprep.subr.mxu0 0.0
      %577 = vmatpush1.msra.mxu0 0.0
      %578 = vmatprep.subr.mxu0 0.0
      %579 = vmatpush1.msra.mxu0 0.0
      %580 = vmatprep.subr.mxu0 0.0
      %581 = vmatpush1.msra.mxu0 0.0
      %582 = vmatprep.subr.mxu0 0.0
      %583 = vmatpush1.msra.mxu0 0.0
      %584 = vmatprep.subr.mxu0 0.0
      %585 = vmatpush1.msra.mxu0 0.0
      %586 = vmatprep.subr.mxu0 0.0
      %587 = vmatpush1.msra.mxu0 0.0
      %588 = vmatprep.subr.mxu0 0.0
      %589 = vmatpush1.msra.mxu0 0.0
      %590 = vmatprep.subr.mxu0 0.0
      %591 = vmatpush1.msra.mxu0 0.0
      %592 = vmatprep.subr.mxu0 0.0
      %593 = vmatpush1.msra.mxu0 0.0
      %594 = vmatprep.subr.mxu0 0.0
      %595 = vmatpush1.msra.mxu0 0.0
      %596 = vmatprep.subr.mxu0 0.0
      %597 = vmatpush1.msra.mxu0 0.0
      %598 = vmatprep.subr.mxu0 0.0
      %599 = vmatpush1.msra.mxu0 0.0
      %600 = vmatprep.subr.mxu0 0.0
      %601 = vmatpush1.msra.mxu0 0.0
      %602 = vmatprep.subr.mxu0 0.0
      %603 = vmatpush1.msra.mxu0 0.0
      %604 = vmatprep.subr.mxu0 0.0
      %605 = vmatpush1.msra.mxu0 0.0
      %606 = vmatprep.subr.mxu0 0.0
      %607 = vmatpush1.msra.mxu0 0.0
      %608 = vmatprep.subr.mxu0 0.0
      %609 = vmatpush1.msra.mxu0 0.0
      %610 = vmatprep.mubr.f32.mxu0 0.0
      %611 = vmatmul.mubr.f32.gmra.mrb[0].mxu0 %v226
      %v612 = vpop.f32.mrb[0].mxu0
      %v613 = vadd.f32 0.0, %v612
      %v614 = vpop.f32.mrb[0].mxu0
      %615 = vmatprep.mubr.f32.mxu0 0.0
      %616 = vmatmul.mubr.f32.gmra.mrb[0].mxu0 %v229
      %v617 = vpop.f32.mrb[0].mxu0
      %v618 = vadd.f32 0.0, %v617
      %v619 = vpop.f32.mrb[0].mxu0
      %620 = vmatprep.mubr.f32.mxu0 0.0
      %621 = vmatmul.mubr.f32.gmra.mrb[0].mxu0 %v232
      %v622 = vpop.f32.mrb[0].mxu0
      %v623 = vadd.f32 0.0, %v622
      %v624 = vpop.f32.mrb[0].mxu0
      %625 = vmatprep.mubr.f32.mxu0 0.0
      %626 = vmatmul.mubr.f32.gmra.mrb[0].mxu0 %v235
      %v627 = vpop.f32.mrb[0].mxu0
      %v628 = vadd.f32 0.0, %v627
      %v629 = vpop.f32.mrb[0].mxu0
      %630 = vdwg.mxu0
      %v631 = vmax.f32 %v536, %v613
      %v632 = vmax.f32 %v537, %v618
      %v633 = vmax.f32 %v538, %v623
      %v634 = vmax.f32 %v539, %v628
      %v635 = vld [vmem:[%s2] sm:$0xff]
      %v636 = vld [vmem:[%s2 + $0x8] sm:$0xff]
      %v637 = vld [vmem:[%s2 + $0x10] sm:$0xff]
      %v638 = vld [vmem:[%s2 + $0x18] sm:$0xff]
      %640 = vset.pattern.permute.xlu0 0
      %641 = vperm.xlu0 %640, %v635
      %v642 = vpop.permute.xlu0 %641
      %645 = vset.pattern.permute.xlu0 0
      %646 = vperm.xlu0 %645, %v636
      %v647 = vpop.permute.xlu0 %646
      %650 = vset.pattern.permute.xlu0 0
      %651 = vperm.xlu0 %650, %v637
      %v652 = vpop.permute.xlu0 %651
      %655 = vset.pattern.permute.xlu0 0
      %656 = vperm.xlu0 %655, %v638
      %v657 = vpop.permute.xlu0 %656
      %v659 = vadd.f32 %v631, %v642
      %v660 = vadd.f32 %v632, %v647
      %v661 = vadd.f32 %v633, %v652
      %v662 = vadd.f32 %v634, %v657
      %v663 = vmax.f32 %v659, 0.0
      %v664 = vmax.f32 %v660, 0.0
      %v665 = vmax.f32 %v661, 0.0
      %v666 = vmax.f32 %v662, 0.0
      %667 = vst [vmem:[%s170] sm:$0xff] %v663
      %668 = vst [vmem:[%s170 + $0x8] sm:$0xff] %v664
      %669 = vst [vmem:[%s170 + $0x10] sm:$0xff] %v665
      %670 = vst [vmem:[%s170 + $0x18] sm:$0xff] %v666
      %p671 = scmp.lt.s32.totalorder %s14, 1
      %s672 = scalar_select %p671, %s14, 1
      %s673 = smul.addr %s672, 4
      %s674 = smul.addr %s673, 8
      %s675 = scalar_lea.vmem %s3, %s674
      // Predicated region
      $region33: #{lunar_lander_convnet_forward.3} parent=31 // pred_check
        %p676 = pneg %p100
      $region34: #{lunar_lander_convnet_forward.3} parent=31 // pred_check_branch
        %678 = sbr.rel (%p676) target = $region36
      $region35: #{lunar_lander_convnet_forward.3} parent=31 // pred_region
        _
      $region36: #{lunar_lander_convnet_forward.3} parent=31 // pred_fallthru
        _
    $region32: #{lunar_lander_convnet_forward.3} parent=5 // pred_fallthru
      _
    %p679 = scmp.le.s32.totalorder 2, %s9
    // Predicated region
    $region37: #{lunar_lander_convnet_forward.3} parent=5 // pred_check
      %p680 = pneg %p679
    $region38: #{lunar_lander_convnet_forward.3} parent=5 // pred_check_branch
      %682 = sbr.rel (%p680) target = $region40
    $region39: #{lunar_lander_convnet_forward.3} parent=5 // pred_region
      %s683 = ssub.s32 %s9, 2
      // Predicated region
      $region41: #{lunar_lander_convnet_forward.3} parent=39 // pred_check
        %p684 = pneg %p106
      $region42: #{lunar_lander_convnet_forward.3} parent=39 // pred_check_branch
        %686 = sbr.rel (%p684) target = $region44
      $region43: #{lunar_lander_convnet_forward.3} parent=39 // pred_region
        %p687 = scmp.lt.s32.totalorder %s15, 1
        %s688 = scalar_select %p687, %s15, 1
        %s689 = smul.addr %s688, 4
        %s690 = smul.addr %s689, 8
        %s691 = scalar_lea.vmem %s3, %s690
      $region44: #{lunar_lander_convnet_forward.3} parent=39 // pred_fallthru
        _
    $region40: #{lunar_lander_convnet_forward.3} parent=5 // pred_fallthru
      _
  $region6: #{lunar_lander_convnet_forward.3} parent=0 // loop_footer
    %s13 = sadd.s32 1, %s9
  $region7: #{lunar_lander_convnet_forward.3} parent=0 // loop_footer_branch
    %8 = sbr.rel target = $region3
  $region8: #{lunar_lander_convnet_forward.3} parent=0 // loop_exit
    _

// kernel: lunar_lander_convnet_forward.5
$region0: #{lunar_lander_convnet_forward.5}
  #allocation0 [shape = 'u32[]', space=smem, size = 0x4, offset = 0x4, fixed_abs, tag = 'smem constant byte address 0x4 - core index']
  #allocation1 [shape = 'u32[144,128]{1,0:T(1,128)}', space=vmem, size = 0x12000, scoped, tag = 'internal scratch']
  #allocation2 [shape = 'f32[2,128]{1,0:T(2,128)}', space=vmem, size = 0x400, scoped, tag = 'scratch operand']
  %s0 = inlined_call_operand.vmem [shape: f32[2,1024], index: 0, kind: input, shape index: {}]
  %s1 = inlined_call_operand.vmem [shape: f32[1024,128], index: 1, kind: input, shape index: {}]
  %s2 = inlined_call_operand.vmem [shape: f32[1,128], index: 2, kind: input, shape index: {}]
  %s3 = inlined_call_operand.vmem [shape: f32[128,4], index: 3, kind: input, shape index: {}]
  %s4 = inlined_call_operand.vmem [shape: f32[1,4], index: 4, kind: input, shape index: {}]
  %s5 = inlined_call_operand.hbm [shape: f32[2,4], index: 5, kind: output, shape index: {}]
  %s6 = sld [smem:[#allocation0]]
  $region38: #{lunar_lander_convnet_forward.5} parent=0
    _
  %s8 = ssub.s32 1, %s6
  %s9 = scalar_select 0, %s8, %s6
  $region1: #{lunar_lander_convnet_forward.5} parent=0
    #allocation3 [shape = 'u8[1024]{0}', space=vmem, size = 0x400, scoped, tag = 'output window, operand 0, single buffered']
    #allocation4 [shape = 's32[1]{0}', space=sflag, size = 0x4, scoped, tag = 'scoped memory for lunar_lander_convnet_forward.5']
    %10 = vsyncpa [#allocation4], 0
    // Predicated region
    $region2: #{lunar_lander_convnet_forward.5} parent=1 // pred_check
      _
    $region3: #{lunar_lander_convnet_forward.5} parent=1 // pred_check_branch
      %12 = sbr.rel (0) target = $region5
    $region4: #{lunar_lander_convnet_forward.5} parent=1 // pred_region
      _
    $region5: #{lunar_lander_convnet_forward.5} parent=1 // pred_fallthru
      _
    // Predicated region
    $region6: #{lunar_lander_convnet_forward.5} parent=1 // pred_check
      _
    $region7: #{lunar_lander_convnet_forward.5} parent=1 // pred_check_branch
      %14 = sbr.rel (0) target = $region9
    $region8: #{lunar_lander_convnet_forward.5} parent=1 // pred_region
      _
    $region9: #{lunar_lander_convnet_forward.5} parent=1 // pred_fallthru
      _
    // Predicated region
    $region10: #{lunar_lander_convnet_forward.5} parent=1 // pred_check
      _
    $region11: #{lunar_lander_convnet_forward.5} parent=1 // pred_check_branch
      %16 = sbr.rel (0) target = $region13
    $region12: #{lunar_lander_convnet_forward.5} parent=1 // pred_region
      _
    $region13: #{lunar_lander_convnet_forward.5} parent=1 // pred_fallthru
      _
    // Predicated region
    $region14: #{lunar_lander_convnet_forward.5} parent=1 // pred_check
      _
    $region15: #{lunar_lander_convnet_forward.5} parent=1 // pred_check_branch
      %18 = sbr.rel (0) target = $region17
    $region16: #{lunar_lander_convnet_forward.5} parent=1 // pred_region
      _
    $region17: #{lunar_lander_convnet_forward.5} parent=1 // pred_fallthru
      _
    // Predicated region
    $region18: #{lunar_lander_convnet_forward.5} parent=1 // pred_check
      _
    $region19: #{lunar_lander_convnet_forward.5} parent=1 // pred_check_branch
      %20 = sbr.rel (0) target = $region21
    $region20: #{lunar_lander_convnet_forward.5} parent=1 // pred_region
      _
    $region21: #{lunar_lander_convnet_forward.5} parent=1 // pred_fallthru
      _
    %p21 = scmp.eq.s32.totalorder 0, 0
    // Predicated region
    $region22: #{lunar_lander_convnet_forward.5} parent=1 // pred_check
      %p22 = pneg %p21
    $region23: #{lunar_lander_convnet_forward.5} parent=1 // pred_check_branch
      %24 = sbr.rel (%p22) target = $region25
    $region24: #{lunar_lander_convnet_forward.5} parent=1 // pred_region
      %25 = vst [vmem:[#allocation2] sm:$0x3] 0.0
    $region25: #{lunar_lander_convnet_forward.5} parent=1 // pred_fallthru
      _
    %v26 = vld [vmem:[#allocation2] sm:$0x3]
    %v27 = vld [vmem:[%s0] sm:$0xff]
    %v28 = vld [vmem:[%s0 + $0x8] sm:$0xff]
    %v29 = vld [vmem:[%s1] sm:$0xff]
    %v30 = vld [vmem:[%s1 + $0x8] sm:$0xff]
    %v31 = vld [vmem:[%s1 + $0x10] sm:$0xff]
    %v32 = vld [vmem:[%s1 + $0x18] sm:$0xff]
    %v33 = vld [vmem:[%s1 + $0x20] sm:$0xff]
    %v34 = vld [vmem:[%s1 + $0x28] sm:$0xff]
    %v35 = vld [vmem:[%s1 + $0x30] sm:$0xff]
    %v36 = vld [vmem:[%s1 + $0x38] sm:$0xff]
    %v37 = vld [vmem:[%s1 + $0x40] sm:$0xff]
    %v38 = vld [vmem:[%s1 + $0x48] sm:$0xff]
    %v39 = vld [vmem:[%s1 + $0x50] sm:$0xff]
    %v40 = vld [vmem:[%s1 + $0x58] sm:$0xff]
    %v41 = vld [vmem:[%s1 + $0x60] sm:$0xff]
    %v42 = vld [vmem:[%s1 + $0x68] sm:$0xff]
    %v43 = vld [vmem:[%s1 + $0x70] sm:$0xff]
    %v44 = vld [vmem:[%s1 + $0x78] sm:$0xff]
    %v45 = vld [vmem:[%s1 + $0x80] sm:$0xff]
    %v46 = vld [vmem:[%s1 + $0x88] sm:$0xff]
    %v47 = vld [vmem:[%s1 + $0x90] sm:$0xff]
    %v48 = vld [vmem:[%s1 + $0x98] sm:$0xff]
    %v49 = vld [vmem:[%s1 + $0xa0] sm:$0xff]
    %v50 = vld [vmem:[%s1 + $0xa8] sm:$0xff]
    %v51 = vld [vmem:[%s1 + $0xb0] sm:$0xff]
    %v52 = vld [vmem:[%s1 + $0xb8] sm:$0xff]
    %v53 = vld [vmem:[%s1 + $0xc0] sm:$0xff]
    %v54 = vld [vmem:[%s1 + $0xc8] sm:$0xff]
    %v55 = vld [vmem:[%s1 + $0xd0] sm:$0xff]
    %v56 = vld [vmem:[%s1 + $0xd8] sm:$0xff]
    %v57 = vld [vmem:[%s1 + $0xe0] sm:$0xff]
    %v58 = vld [vmem:[%s1 + $0xe8] sm:$0xff]
    %v59 = vld [vmem:[%s1 + $0xf0] sm:$0xff]
    %v60 = vld [vmem:[%s1 + $0xf8] sm:$0xff]
    %v61 = vld [vmem:[%s1 + $0x100] sm:$0xff]
    %v62 = vld [vmem:[%s1 + $0x108] sm:$0xff]
    %v63 = vld [vmem:[%s1 + $0x110] sm:$0xff]
    %v64 = vld [vmem:[%s1 + $0x118] sm:$0xff]
    %v65 = vld [vmem:[%s1 + $0x120] sm:$0xff]
    %v66 = vld [vmem:[%s1 + $0x128] sm:$0xff]
    %v67 = vld [vmem:[%s1 + $0x130] sm:$0xff]
    %v68 = vld [vmem:[%s1 + $0x138] sm:$0xff]
    %v69 = vld [vmem:[%s1 + $0x140] sm:$0xff]
    %v70 = vld [vmem:[%s1 + $0x148] sm:$0xff]
    %v71 = vld [vmem:[%s1 + $0x150] sm:$0xff]
    %v72 = vld [vmem:[%s1 + $0x158] sm:$0xff]
    %v73 = vld [vmem:[%s1 + $0x160] sm:$0xff]
    %v74 = vld [vmem:[%s1 + $0x168] sm:$0xff]
    %v75 = vld [vmem:[%s1 + $0x170] sm:$0xff]
    %v76 = vld [vmem:[%s1 + $0x178] sm:$0xff]
    %v77 = vld [vmem:[%s1 + $0x180] sm:$0xff]
    %v78 = vld [vmem:[%s1 + $0x188] sm:$0xff]
    %v79 = vld [vmem:[%s1 + $0x190] sm:$0xff]
    %v80 = vld [vmem:[%s1 + $0x198] sm:$0xff]
    %v81 = vld [vmem:[%s1 + $0x1a0] sm:$0xff]
    %v82 = vld [vmem:[%s1 + $0x1a8] sm:$0xff]
    %v83 = vld [vmem:[%s1 + $0x1b0] sm:$0xff]
    %v84 = vld [vmem:[%s1 + $0x1b8] sm:$0xff]
    %v85 = vld [vmem:[%s1 + $0x1c0] sm:$0xff]
    %v86 = vld [vmem:[%s1 + $0x1c8] sm:$0xff]
    %v87 = vld [vmem:[%s1 + $0x1d0] sm:$0xff]
    %v88 = vld [vmem:[%s1 + $0x1d8] sm:$0xff]
    %v89 = vld [vmem:[%s1 + $0x1e0] sm:$0xff]
    %v90 = vld [vmem:[%s1 + $0x1e8] sm:$0xff]
    %v91 = vld [vmem:[%s1 + $0x1f0] sm:$0xff]
    %v92 = vld [vmem:[%s1 + $0x1f8] sm:$0xff]
    %v93 = vld [vmem:[%s1 + $0x200] sm:$0xff]
    %v94 = vld [vmem:[%s1 + $0x208] sm:$0xff]
    %v95 = vld [vmem:[%s1 + $0x210] sm:$0xff]
    %v96 = vld [vmem:[%s1 + $0x218] sm:$0xff]
    %v97 = vld [vmem:[%s1 + $0x220] sm:$0xff]
    %v98 = vld [vmem:[%s1 + $0x228] sm:$0xff]
    %v99 = vld [vmem:[%s1 + $0x230] sm:$0xff]
    %v100 = vld [vmem:[%s1 + $0x238] sm:$0xff]
    %v101 = vld [vmem:[%s1 + $0x240] sm:$0xff]
    %v102 = vld [vmem:[%s1 + $0x248] sm:$0xff]
    %v103 = vld [vmem:[%s1 + $0x250] sm:$0xff]
    %v104 = vld [vmem:[%s1 + $0x258] sm:$0xff]
    %v105 = vld [vmem:[%s1 + $0x260] sm:$0xff]
    %v106 = vld [vmem:[%s1 + $0x268] sm:$0xff]
    %v107 = vld [vmem:[%s1 + $0x270] sm:$0xff]
    %v108 = vld [vmem:[%s1 + $0x278] sm:$0xff]
    %v109 = vld [vmem:[%s1 + $0x280] sm:$0xff]
    %v110 = vld [vmem:[%s1 + $0x288] sm:$0xff]
    %v111 = vld [vmem:[%s1 + $0x290] sm:$0xff]
    %v112 = vld [vmem:[%s1 + $0x298] sm:$0xff]
    %v113 = vld [vmem:[%s1 + $0x2a0] sm:$0xff]
    %v114 = vld [vmem:[%s1 + $0x2a8] sm:$0xff]
    %v115 = vld [vmem:[%s1 + $0x2b0] sm:$0xff]
    %v116 = vld [vmem:[%s1 + $0x2b8] sm:$0xff]
    %v117 = vld [vmem:[%s1 + $0x2c0] sm:$0xff]
    %v118 = vld [vmem:[%s1 + $0x2c8] sm:$0xff]
    %v119 = vld [vmem:[%s1 + $0x2d0] sm:$0xff]
    %v120 = vld [vmem:[%s1 + $0x2d8] sm:$0xff]
    %v121 = vld [vmem:[%s1 + $0x2e0] sm:$0xff]
    %v122 = vld [vmem:[%s1 + $0x2e8] sm:$0xff]
    %v123 = vld [vmem:[%s1 + $0x2f0] sm:$0xff]
    %v124 = vld [vmem:[%s1 + $0x2f8] sm:$0xff]
    %v125 = vld [vmem:[%s1 + $0x300] sm:$0xff]
    %v126 = vld [vmem:[%s1 + $0x308] sm:$0xff]
    %v127 = vld [vmem:[%s1 + $0x310] sm:$0xff]
    %v128 = vld [vmem:[%s1 + $0x318] sm:$0xff]
    %v129 = vld [vmem:[%s1 + $0x320] sm:$0xff]
    %v130 = vld [vmem:[%s1 + $0x328] sm:$0xff]
    %v131 = vld [vmem:[%s1 + $0x330] sm:$0xff]
    %v132 = vld [vmem:[%s1 + $0x338] sm:$0xff]
    %v133 = vld [vmem:[%s1 + $0x340] sm:$0xff]
    %v134 = vld [vmem:[%s1 + $0x348] sm:$0xff]
    %v135 = vld [vmem:[%s1 + $0x350] sm:$0xff]
    %v136 = vld [vmem:[%s1 + $0x358] sm:$0xff]
    %v137 = vld [vmem:[%s1 + $0x360] sm:$0xff]
    %v138 = vld [vmem:[%s1 + $0x368] sm:$0xff]
    %v139 = vld [vmem:[%s1 + $0x370] sm:$0xff]
    %v140 = vld [vmem:[%s1 + $0x378] sm:$0xff]
    %v141 = vld [vmem:[%s1 + $0x380] sm:$0xff]
    %v142 = vld [vmem:[%s1 + $0x388] sm:$0xff]
    %v143 = vld [vmem:[%s1 + $0x390] sm:$0xff]
    %v144 = vld [vmem:[%s1 + $0x398] sm:$0xff]
    %v145 = vld [vmem:[%s1 + $0x3a0] sm:$0xff]
    %v146 = vld [vmem:[%s1 + $0x3a8] sm:$0xff]
    %v147 = vld [vmem:[%s1 + $0x3b0] sm:$0xff]
    %v148 = vld [vmem:[%s1 + $0x3b8] sm:$0xff]
    %v149 = vld [vmem:[%s1 + $0x3c0] sm:$0xff]
    %v150 = vld [vmem:[%s1 + $0x3c8] sm:$0xff]
    %v151 = vld [vmem:[%s1 + $0x3d0] sm:$0xff]
    %v152 = vld [vmem:[%s1 + $0x3d8] sm:$0xff]
    %v153 = vld [vmem:[%s1 + $0x3e0] sm:$0xff]
    %v154 = vld [vmem:[%s1 + $0x3e8] sm:$0xff]
    %v155 = vld [vmem:[%s1 + $0x3f0] sm:$0xff]
    %v156 = vld [vmem:[%s1 + $0x3f8] sm:$0xff]
    %v159 = vcombine.high %v27, %v27
    %v161 = vunpack.c.l.s4 1983009808
    %v162 = vunpack.c.0.s8 %v161
    %v163 = vlaneseq
    %v164 = vshrl.u32 %v163, 7
    %v165 = vsub.s32 %v162, %v164
    %v166 = vrot.slane %v27, %v165
    %v168 = vunpack.c.l.s4 1983009808
    %v169 = vunpack.c.0.s8 %v168
    %v170 = vlaneseq
    %v171 = vshrl.u32 %v170, 7
    %v172 = vsub.s32 %v169, %v171
    %v173 = vrot.slane %v159, %v172
    %v174 = vcombine.high %v166, %v166
    %v175 = vcombine.high %v173, %v173
    %v176 = vcombine.high %v28, %v28
    %v178 = vunpack.c.l.s4 1983009808
    %v179 = vunpack.c.0.s8 %v178
    %v180 = vlaneseq
    %v181 = vshrl.u32 %v180, 7
    %v182 = vsub.s32 %v179, %v181
    %v183 = vrot.slane %v28, %v182
    %v185 = vunpack.c.l.s4 1983009808
    %v186 = vunpack.c.0.s8 %v185
    %v187 = vlaneseq
    %v188 = vshrl.u32 %v187, 7
    %v189 = vsub.s32 %v186, %v188
    %v190 = vrot.slane %v176, %v189
    %v191 = vcombine.high %v183, %v183
    %v192 = vcombine.high %v190, %v190
    %201 = vmatprep.subr.mxu0 0.0
    %202 = vmatpush1.msra.mxu0 %v29
    %203 = vmatprep.subr.mxu0 0.0
    %204 = vmatpush1.msra.mxu0 %v30
    %205 = vmatprep.subr.mxu0 0.0
    %206 = vmatpush1.msra.mxu0 %v31
    %207 = vmatprep.subr.mxu0 0.0
    %208 = vmatpush1.msra.mxu0 %v32
    %209 = vmatprep.subr.mxu0 0.0
    %210 = vmatpush1.msra.mxu0 %v33
    %211 = vmatprep.subr.mxu0 0.0
    %212 = vmatpush1.msra.mxu0 %v34
    %213 = vmatprep.subr.mxu0 0.0
    %214 = vmatpush1.msra.mxu0 %v35
    %215 = vmatprep.subr.mxu0 0.0
    %216 = vmatpush1.msra.mxu0 %v36
    %217 = vmatprep.subr.mxu0 0.0
    %218 = vmatpush1.msra.mxu0 %v37
    %219 = vmatprep.subr.mxu0 0.0
    %220 = vmatpush1.msra.mxu0 %v38
    %221 = vmatprep.subr.mxu0 0.0
    %222 = vmatpush1.msra.mxu0 %v39
    %223 = vmatprep.subr.mxu0 0.0
    %224 = vmatpush1.msra.mxu0 %v40
    %225 = vmatprep.subr.mxu0 0.0
    %226 = vmatpush1.msra.mxu0 %v41
    %227 = vmatprep.subr.mxu0 0.0
    %228 = vmatpush1.msra.mxu0 %v42
    %229 = vmatprep.subr.mxu0 0.0
    %230 = vmatpush1.msra.mxu0 %v43
    %231 = vmatprep.subr.mxu0 0.0
    %232 = vmatpush1.msra.mxu0 %v44
    %233 = vmatprep.subr.mxu0 0.0
    %234 = vmatpush1.msra.mxu0 %v45
    %235 = vmatprep.subr.mxu0 0.0
    %236 = vmatpush1.msra.mxu0 %v46
    %237 = vmatprep.subr.mxu0 0.0
    %238 = vmatpush1.msra.mxu0 %v47
    %239 = vmatprep.subr.mxu0 0.0
    %240 = vmatpush1.msra.mxu0 %v48
    %241 = vmatprep.subr.mxu0 0.0
    %242 = vmatpush1.msra.mxu0 %v49
    %243 = vmatprep.subr.mxu0 0.0
    %244 = vmatpush1.msra.mxu0 %v50
    %245 = vmatprep.subr.mxu0 0.0
    %246 = vmatpush1.msra.mxu0 %v51
    %247 = vmatprep.subr.mxu0 0.0
    %248 = vmatpush1.msra.mxu0 %v52
    %249 = vmatprep.subr.mxu0 0.0
    %250 = vmatpush1.msra.mxu0 %v53
    %251 = vmatprep.subr.mxu0 0.0
    %252 = vmatpush1.msra.mxu0 %v54
    %253 = vmatprep.subr.mxu0 0.0
    %254 = vmatpush1.msra.mxu0 %v55
    %255 = vmatprep.subr.mxu0 0.0
    %256 = vmatpush1.msra.mxu0 %v56
    %257 = vmatprep.subr.mxu0 0.0
    %258 = vmatpush1.msra.mxu0 %v57
    %259 = vmatprep.subr.mxu0 0.0
    %260 = vmatpush1.msra.mxu0 %v58
    %261 = vmatprep.subr.mxu0 0.0
    %262 = vmatpush1.msra.mxu0 %v59
    %263 = vmatprep.subr.mxu0 0.0
    %264 = vmatpush1.msra.mxu0 %v60
    %265 = vmatprep.mubr.f32.mxu0 %v174
    %266 = vmatmul.mubr.f32.gmra.mrb[0].mxu0 %v166
    %v267 = vpop.f32.mrb[0].mxu0
    %v268 = vadd.f32 0.0, %v267
    %v269 = vpop.f32.mrb[0].mxu0
    %270 = vdwg.mxu0
    %271 = vmatprep.subr.mxu0 0.0
    %272 = vmatpush1.msra.mxu0 %v61
    %273 = vmatprep.subr.mxu0 0.0
    %274 = vmatpush1.msra.mxu0 %v62
    %275 = vmatprep.subr.mxu0 0.0
    %276 = vmatpush1.msra.mxu0 %v63
    %277 = vmatprep.subr.mxu0 0.0
    %278 = vmatpush1.msra.mxu0 %v64
    %279 = vmatprep.subr.mxu0 0.0
    %280 = vmatpush1.msra.mxu0 %v65
    %281 = vmatprep.subr.mxu0 0.0
    %282 = vmatpush1.msra.mxu0 %v66
    %283 = vmatprep.subr.mxu0 0.0
    %284 = vmatpush1.msra.mxu0 %v67
    %285 = vmatprep.subr.mxu0 0.0
    %286 = vmatpush1.msra.mxu0 %v68
    %287 = vmatprep.subr.mxu0 0.0
    %288 = vmatpush1.msra.mxu0 %v69
    %289 = vmatprep.subr.mxu0 0.0
    %290 = vmatpush1.msra.mxu0 %v70
    %291 = vmatprep.subr.mxu0 0.0
    %292 = vmatpush1.msra.mxu0 %v71
    %293 = vmatprep.subr.mxu0 0.0
    %294 = vmatpush1.msra.mxu0 %v72
    %295 = vmatprep.subr.mxu0 0.0
    %296 = vmatpush1.msra.mxu0 %v73
    %297 = vmatprep.subr.mxu0 0.0
    %298 = vmatpush1.msra.mxu0 %v74
    %299 = vmatprep.subr.mxu0 0.0
    %300 = vmatpush1.msra.mxu0 %v75
    %301 = vmatprep.subr.mxu0 0.0
    %302 = vmatpush1.msra.mxu0 %v76
    %303 = vmatprep.subr.mxu0 0.0
    %304 = vmatpush1.msra.mxu0 %v77
    %305 = vmatprep.subr.mxu0 0.0
    %306 = vmatpush1.msra.mxu0 %v78
    %307 = vmatprep.subr.mxu0 0.0
    %308 = vmatpush1.msra.mxu0 %v79
    %309 = vmatprep.subr.mxu0 0.0
    %310 = vmatpush1.msra.mxu0 %v80
    %311 = vmatprep.subr.mxu0 0.0
    %312 = vmatpush1.msra.mxu0 %v81
    %313 = vmatprep.subr.mxu0 0.0
    %314 = vmatpush1.msra.mxu0 %v82
    %315 = vmatprep.subr.mxu0 0.0
    %316 = vmatpush1.msra.mxu0 %v83
    %317 = vmatprep.subr.mxu0 0.0
    %318 = vmatpush1.msra.mxu0 %v84
    %319 = vmatprep.subr.mxu0 0.0
    %320 = vmatpush1.msra.mxu0 %v85
    %321 = vmatprep.subr.mxu0 0.0
    %322 = vmatpush1.msra.mxu0 %v86
    %323 = vmatprep.subr.mxu0 0.0
    %324 = vmatpush1.msra.mxu0 %v87
    %325 = vmatprep.subr.mxu0 0.0
    %326 = vmatpush1.msra.mxu0 %v88
    %327 = vmatprep.subr.mxu0 0.0
    %328 = vmatpush1.msra.mxu0 %v89
    %329 = vmatprep.subr.mxu0 0.0
    %330 = vmatpush1.msra.mxu0 %v90
    %331 = vmatprep.subr.mxu0 0.0
    %332 = vmatpush1.msra.mxu0 %v91
    %333 = vmatprep.subr.mxu0 0.0
    %334 = vmatpush1.msra.mxu0 %v92
    %335 = vmatprep.mubr.f32.mxu0 %v175
    %336 = vmatmul.mubr.f32.gmra.mrb[0].mxu0 %v173
    %v337 = vpop.f32.mrb[0].mxu0
    %v338 = vadd.f32 %v268, %v337
    %v339 = vpop.f32.mrb[0].mxu0
    %340 = vdwg.mxu0
    %341 = vmatprep.subr.mxu0 0.0
    %342 = vmatpush1.msra.mxu0 %v93
    %343 = vmatprep.subr.mxu0 0.0
    %344 = vmatpush1.msra.mxu0 %v94
    %345 = vmatprep.subr.mxu0 0.0
    %346 = vmatpush1.msra.mxu0 %v95
    %347 = vmatprep.subr.mxu0 0.0
    %348 = vmatpush1.msra.mxu0 %v96
    %349 = vmatprep.subr.mxu0 0.0
    %350 = vmatpush1.msra.mxu0 %v97
    %351 = vmatprep.subr.mxu0 0.0
    %352 = vmatpush1.msra.mxu0 %v98
    %353 = vmatprep.subr.mxu0 0.0
    %354 = vmatpush1.msra.mxu0 %v99
    %355 = vmatprep.subr.mxu0 0.0
    %356 = vmatpush1.msra.mxu0 %v100
    %357 = vmatprep.subr.mxu0 0.0
    %358 = vmatpush1.msra.mxu0 %v101
    %359 = vmatprep.subr.mxu0 0.0
    %360 = vmatpush1.msra.mxu0 %v102
    %361 = vmatprep.subr.mxu0 0.0
    %362 = vmatpush1.msra.mxu0 %v103
    %363 = vmatprep.subr.mxu0 0.0
    %364 = vmatpush1.msra.mxu0 %v104
    %365 = vmatprep.subr.mxu0 0.0
    %366 = vmatpush1.msra.mxu0 %v105
    %367 = vmatprep.subr.mxu0 0.0
    %368 = vmatpush1.msra.mxu0 %v106
    %369 = vmatprep.subr.mxu0 0.0
    %370 = vmatpush1.msra.mxu0 %v107
    %371 = vmatprep.subr.mxu0 0.0
    %372 = vmatpush1.msra.mxu0 %v108
    %373 = vmatprep.subr.mxu0 0.0
    %374 = vmatpush1.msra.mxu0 %v109
    %375 = vmatprep.subr.mxu0 0.0
    %376 = vmatpush1.msra.mxu0 %v110
    %377 = vmatprep.subr.mxu0 0.0
    %378 = vmatpush1.msra.mxu0 %v111
    %379 = vmatprep.subr.mxu0 0.0
    %380 = vmatpush1.msra.mxu0 %v112
    %381 = vmatprep.subr.mxu0 0.0
    %382 = vmatpush1.msra.mxu0 %v113
    %383 = vmatprep.subr.mxu0 0.0
    %384 = vmatpush1.msra.mxu0 %v114
    %385 = vmatprep.subr.mxu0 0.0
    %386 = vmatpush1.msra.mxu0 %v115
    %387 = vmatprep.subr.mxu0 0.0
    %388 = vmatpush1.msra.mxu0 %v116
    %389 = vmatprep.subr.mxu0 0.0
    %390 = vmatpush1.msra.mxu0 %v117
    %391 = vmatprep.subr.mxu0 0.0
    %392 = vmatpush1.msra.mxu0 %v118
    %393 = vmatprep.subr.mxu0 0.0
    %394 = vmatpush1.msra.mxu0 %v119
    %395 = vmatprep.subr.mxu0 0.0
    %396 = vmatpush1.msra.mxu0 %v120
    %397 = vmatprep.subr.mxu0 0.0
    %398 = vmatpush1.msra.mxu0 %v121
    %399 = vmatprep.subr.mxu0 0.0
    %400 = vmatpush1.msra.mxu0 %v122
    %401 = vmatprep.subr.mxu0 0.0
    %402 = vmatpush1.msra.mxu0 %v123
    %403 = vmatprep.subr.mxu0 0.0
    %404 = vmatpush1.msra.mxu0 %v124
    %405 = vmatprep.mubr.f32.mxu0 %v191
    %406 = vmatmul.mubr.f32.gmra.mrb[0].mxu0 %v183
    %v407 = vpop.f32.mrb[0].mxu0
    %v408 = vadd.f32 %v338, %v407
    %v409 = vpop.f32.mrb[0].mxu0
    %410 = vdwg.mxu0
    %411 = vmatprep.subr.mxu0 0.0
    %412 = vmatpush1.msra.mxu0 %v125
    %413 = vmatprep.subr.mxu0 0.0
    %414 = vmatpush1.msra.mxu0 %v126
    %415 = vmatprep.subr.mxu0 0.0
    %416 = vmatpush1.msra.mxu0 %v127
    %417 = vmatprep.subr.mxu0 0.0
    %418 = vmatpush1.msra.mxu0 %v128
    %419 = vmatprep.subr.mxu0 0.0
    %420 = vmatpush1.msra.mxu0 %v129
    %421 = vmatprep.subr.mxu0 0.0
    %422 = vmatpush1.msra.mxu0 %v130
    %423 = vmatprep.subr.mxu0 0.0
    %424 = vmatpush1.msra.mxu0 %v131
    %425 = vmatprep.subr.mxu0 0.0
    %426 = vmatpush1.msra.mxu0 %v132
    %427 = vmatprep.subr.mxu0 0.0
    %428 = vmatpush1.msra.mxu0 %v133
    %429 = vmatprep.subr.mxu0 0.0
    %430 = vmatpush1.msra.mxu0 %v134
    %431 = vmatprep.subr.mxu0 0.0
    %432 = vmatpush1.msra.mxu0 %v135
    %433 = vmatprep.subr.mxu0 0.0
    %434 = vmatpush1.msra.mxu0 %v136
    %435 = vmatprep.subr.mxu0 0.0
    %436 = vmatpush1.msra.mxu0 %v137
    %437 = vmatprep.subr.mxu0 0.0
    %438 = vmatpush1.msra.mxu0 %v138
    %439 = vmatprep.subr.mxu0 0.0
    %440 = vmatpush1.msra.mxu0 %v139
    %441 = vmatprep.subr.mxu0 0.0
    %442 = vmatpush1.msra.mxu0 %v140
    %443 = vmatprep.subr.mxu0 0.0
    %444 = vmatpush1.msra.mxu0 %v141
    %445 = vmatprep.subr.mxu0 0.0
    %446 = vmatpush1.msra.mxu0 %v142
    %447 = vmatprep.subr.mxu0 0.0
    %448 = vmatpush1.msra.mxu0 %v143
    %449 = vmatprep.subr.mxu0 0.0
    %450 = vmatpush1.msra.mxu0 %v144
    %451 = vmatprep.subr.mxu0 0.0
    %452 = vmatpush1.msra.mxu0 %v145
    %453 = vmatprep.subr.mxu0 0.0
    %454 = vmatpush1.msra.mxu0 %v146
    %455 = vmatprep.subr.mxu0 0.0
    %456 = vmatpush1.msra.mxu0 %v147
    %457 = vmatprep.subr.mxu0 0.0
    %458 = vmatpush1.msra.mxu0 %v148
    %459 = vmatprep.subr.mxu0 0.0
    %460 = vmatpush1.msra.mxu0 %v149
    %461 = vmatprep.subr.mxu0 0.0
    %462 = vmatpush1.msra.mxu0 %v150
    %463 = vmatprep.subr.mxu0 0.0
    %464 = vmatpush1.msra.mxu0 %v151
    %465 = vmatprep.subr.mxu0 0.0
    %466 = vmatpush1.msra.mxu0 %v152
    %467 = vmatprep.subr.mxu0 0.0
    %468 = vmatpush1.msra.mxu0 %v153
    %469 = vmatprep.subr.mxu0 0.0
    %470 = vmatpush1.msra.mxu0 %v154
    %471 = vmatprep.subr.mxu0 0.0
    %472 = vmatpush1.msra.mxu0 %v155
    %473 = vmatprep.subr.mxu0 0.0
    %474 = vmatpush1.msra.mxu0 %v156
    %475 = vmatprep.mubr.f32.mxu0 %v192
    %476 = vmatmul.mubr.f32.gmra.mrb[0].mxu0 %v190
    %v477 = vpop.f32.mrb[0].mxu0
    %v478 = vadd.f32 %v408, %v477
    %v479 = vpop.f32.mrb[0].mxu0
    %480 = vdwg.mxu0
    %v481 = vadd.f32 %v26, %v478
    %482 = vst [vmem:[#allocation2] sm:$0x3] %v481
    // Predicated region
    $region26: #{lunar_lander_convnet_forward.5} parent=1 // pred_check
      %p483 = pneg %p21
    $region27: #{lunar_lander_convnet_forward.5} parent=1 // pred_check_branch
      %485 = sbr.rel (%p483) target = $region29
    $region28: #{lunar_lander_convnet_forward.5} parent=1 // pred_region
      %v486 = vld [vmem:[#allocation2] sm:$0x3]
      %v487 = vld [vmem:[%s2] sm:$0x1]
      %v489 = vlaneseq
      %v490 = vshrl.u32 %v489, 7
      %v491 = vsub.s32 0, %v490
      %v492 = vrot.slane %v487, %v491
      %v494 = vadd.f32 %v486, %v492
      %v495 = vmax.f32 %v494, 0.0
      %v496 = vld [vmem:[%s3] sm:$0xff]
      %v497 = vld [vmem:[%s3 + $0x8] sm:$0xff]
      %v498 = vld [vmem:[%s3 + $0x10] sm:$0xff]
      %v499 = vld [vmem:[%s3 + $0x18] sm:$0xff]
      %v500 = vld [vmem:[%s3 + $0x20] sm:$0xff]
      %v501 = vld [vmem:[%s3 + $0x28] sm:$0xff]
      %v502 = vld [vmem:[%s3 + $0x30] sm:$0xff]
      %v503 = vld [vmem:[%s3 + $0x38] sm:$0xff]
      %v504 = vld [vmem:[%s3 + $0x40] sm:$0xff]
      %v505 = vld [vmem:[%s3 + $0x48] sm:$0xff]
      %v506 = vld [vmem:[%s3 + $0x50] sm:$0xff]
      %v507 = vld [vmem:[%s3 + $0x58] sm:$0xff]
      %v508 = vld [vmem:[%s3 + $0x60] sm:$0xff]
      %v509 = vld [vmem:[%s3 + $0x68] sm:$0xff]
      %v510 = vld [vmem:[%s3 + $0x70] sm:$0xff]
      %v511 = vld [vmem:[%s3 + $0x78] sm:$0xff]
      %v512 = vld [vmem:[%s4] sm:$0x1]
      %v514 = vlaneseq
      %v515 = vshrl.u32 %v514, 7
      %v516 = vsub.s32 0, %v515
      %v517 = vrot.slane %v512, %v516
      %519 = vmatprep.subr.mxu0 0.0
      %520 = vmatpush1.msra.mxu0 %v496
      %521 = vmatprep.subr.mxu0 0.0
      %522 = vmatpush1.msra.mxu0 %v497
      %523 = vmatprep.subr.mxu0 0.0
      %524 = vmatpush1.msra.mxu0 %v498
      %525 = vmatprep.subr.mxu0 0.0
      %526 = vmatpush1.msra.mxu0 %v499
      %527 = vmatprep.subr.mxu0 0.0
      %528 = vmatpush1.msra.mxu0 %v500
      %529 = vmatprep.subr.mxu0 0.0
      %530 = vmatpush1.msra.mxu0 %v501
      %531 = vmatprep.subr.mxu0 0.0
      %532 = vmatpush1.msra.mxu0 %v502
      %533 = vmatprep.subr.mxu0 0.0
      %534 = vmatpush1.msra.mxu0 %v503
      %535 = vmatprep.subr.mxu0 0.0
      %536 = vmatpush1.msra.mxu0 %v504
      %537 = vmatprep.subr.mxu0 0.0
      %538 = vmatpush1.msra.mxu0 %v505
      %539 = vmatprep.subr.mxu0 0.0
      %540 = vmatpush1.msra.mxu0 %v506
      %541 = vmatprep.subr.mxu0 0.0
      %542 = vmatpush1.msra.mxu0 %v507
      %543 = vmatprep.subr.mxu0 0.0
      %544 = vmatpush1.msra.mxu0 %v508
      %545 = vmatprep.subr.mxu0 0.0
      %546 = vmatpush1.msra.mxu0 %v509
      %547 = vmatprep.subr.mxu0 0.0
      %548 = vmatpush1.msra.mxu0 %v510
      %549 = vmatprep.subr.mxu0 0.0
      %550 = vmatpush1.msra.mxu0 %v511
      %551 = vmatprep.subr.mxu0 0.0
      %552 = vmatpush1.msra.mxu0 0.0
      %553 = vmatprep.subr.mxu0 0.0
      %554 = vmatpush1.msra.mxu0 0.0
      %555 = vmatprep.subr.mxu0 0.0
      %556 = vmatpush1.msra.mxu0 0.0
      %557 = vmatprep.subr.mxu0 0.0
      %558 = vmatpush1.msra.mxu0 0.0
      %559 = vmatprep.subr.mxu0 0.0
      %560 = vmatpush1.msra.mxu0 0.0
      %561 = vmatprep.subr.mxu0 0.0
      %562 = vmatpush1.msra.mxu0 0.0
      %563 = vmatprep.subr.mxu0 0.0
      %564 = vmatpush1.msra.mxu0 0.0
      %565 = vmatprep.subr.mxu0 0.0
      %566 = vmatpush1.msra.mxu0 0.0
      %567 = vmatprep.subr.mxu0 0.0
      %568 = vmatpush1.msra.mxu0 0.0
      %569 = vmatprep.subr.mxu0 0.0
      %570 = vmatpush1.msra.mxu0 0.0
      %571 = vmatprep.subr.mxu0 0.0
      %572 = vmatpush1.msra.mxu0 0.0
      %573 = vmatprep.subr.mxu0 0.0
      %574 = vmatpush1.msra.mxu0 0.0
      %575 = vmatprep.subr.mxu0 0.0
      %576 = vmatpush1.msra.mxu0 0.0
      %577 = vmatprep.subr.mxu0 0.0
      %578 = vmatpush1.msra.mxu0 0.0
      %579 = vmatprep.subr.mxu0 0.0
      %580 = vmatpush1.msra.mxu0 0.0
      %581 = vmatprep.subr.mxu0 0.0
      %582 = vmatpush1.msra.mxu0 0.0
      %583 = vmatprep.mubr.f32.mxu0 0.0
      %584 = vmatmul.mubr.f32.gmra.mrb[0].mxu0 %v495
      %v585 = vpop.f32.mrb[0].mxu0
      %v586 = vadd.f32 %v517, %v585
      %v587 = vpop.f32.mrb[0].mxu0
      %588 = vdwg.mxu0
      %vm589 = vcmask 25600
      %590 = vst.msk [vmem:[#allocation3] sm:$0x3] %vm589, %v586
    $region29: #{lunar_lander_convnet_forward.5} parent=1 // pred_fallthru
      _
    // Predicated region
    $region30: #{lunar_lander_convnet_forward.5} parent=1 // pred_check
      _
    $region31: #{lunar_lander_convnet_forward.5} parent=1 // pred_check_branch
      %592 = sbr.rel (0) target = $region33
    $region32: #{lunar_lander_convnet_forward.5} parent=1 // pred_region
      %s594 = ssub.s32 32, 32
      %595 = vsyncadd [#allocation4], %s594
      %s597 = sshll.u32 [#allocation3], 4
      %s598 = int_to_ptr.vmem [resolvable:$true] %s597
      %600 = dma.vmem_to_hbm [thread:$0]  %s598, 32, %s5, [#allocation4]
    $region33: #{lunar_lander_convnet_forward.5} parent=1 // pred_fallthru
      _
    // Predicated region
    $region34: #{lunar_lander_convnet_forward.5} parent=1 // pred_check
      _
    $region35: #{lunar_lander_convnet_forward.5} parent=1 // pred_check_branch
      %602 = sbr.rel (0) target = $region37
    $region36: #{lunar_lander_convnet_forward.5} parent=1 // pred_region
      %603 = dma.done [#allocation4], 32
    $region37: #{lunar_lander_convnet_forward.5} parent=1 // pred_fallthru
      _
    %604 = vsyncpa [#allocation4], 1

// kernel: lunar_lander_convnet_forward.4
$region0: #{lunar_lander_convnet_forward.4}
  #allocation0 [shape = 'u32[]', space=smem, size = 0x4, offset = 0x4, fixed_abs, tag = 'smem constant byte address 0x4 - core index']
  #allocation1 [shape = 'u32[144,128]{1,0:T(1,128)}', space=vmem, size = 0x12000, scoped, tag = 'internal scratch']
  %s0 = inlined_call_operand.vmem [shape: f32[2,2,2,32,256], index: 0, kind: input, shape index: {}]
  %s1 = inlined_call_operand.vmem [shape: f32[64,288], index: 1, kind: input, shape index: {}]
  %s2 = inlined_call_operand.vmem [shape: f32[64,1], index: 2, kind: input, shape index: {}]
  %s3 = inlined_call_operand.vmem [shape: f32[2,64,128], index: 3, kind: output, shape index: {}]
  %s4 = sld [smem:[#allocation0]]
  $region45: #{lunar_lander_convnet_forward.4} parent=0
    _
  %s6 = ssub.s32 1, %s4
  %s7 = scalar_select 0, %s6, %s4
  loop: start=0, step=1, limit=4
  $region2: #{lunar_lander_convnet_forward.4} parent=0 // loop_pre_header
    _
  $region3: #{lunar_lander_convnet_forward.4} parent=0 // loop_header
    %s9 = sphi 0, %s13
    %p10 = scmp.ge.s32.totalorder %s9, 4
    %s19 = sphi 0, %s21
    %s22 = sphi 0, %s19
    %s23 = sphi 0, %s22
    %s39 = sphi 0, %s23
    %s43 = sphi 0, %s43
    %s45 = sphi 0, %s43
    %s46 = sphi 0, %s45
    %s60 = sphi 0, %s46
    %s64 = sphi 0, %s64
    %s66 = sphi 0, %s64
    %s67 = sphi 0, %s66
    %s81 = sphi 0, %s67
    %s87 = sphi 0, %s89
    %s90 = sphi 0, %s87
    %s91 = sphi 0, %s90
    %s107 = sphi 0, %s91
  $region4: #{lunar_lander_convnet_forward.4} parent=0 // loop_header_branch
    %12 = sbr.rel (%p10) target = $region8
  $region5: #{lunar_lander_convnet_forward.4} parent=0 // loop_body
    %s14 = ssub.s32 %s9, 1
    %s15 = ssub.s32 %s9, 2
    %s16 = sadd.s32 %s9, 1
    %s17 = ssub.s32 %s9, %s16
    %p18 = scmp.eq.s32.totalorder %s17, 0
    %s20 = sadd.s32 %s19, 1
    %s21 = scalar_select %p18, %s19, %s20
    %p24 = pneg %p18
    %p25 = scmp.eq.s32.totalorder %s9, 1
    %p26 = por %p24, %p25
    %p27 = scmp.ne.s32.totalorder %s19, %s22
    %p28 = scmp.eq.s32.totalorder %s9, 0
    %p29 = por %p27, %p28
    %p30 = scmp.ne.s32.totalorder %s19, %s22
    %p31 = scmp.eq.s32.totalorder %s14, 1
    %p32 = por %p30, %p31
    %p33 = scmp.ne.s32.totalorder %s22, %s23
    %p34 = scmp.eq.s32.totalorder %s14, 0
    %p35 = por %p33, %p34
    %p36 = scmp.ne.s32.totalorder %s22, %s23
    %p37 = scmp.eq.s32.totalorder %s15, 1
    %p38 = por %p36, %p37
    %p40 = scmp.ne.s32.totalorder %s23, %s39
    %p41 = scmp.eq.s32.totalorder %s15, 0
    %p42 = por %p40, %p41
    %s44 = sadd.s32 %s43, 1
    %p47 = scmp.eq.s32.totalorder %s9, 1
    %p48 = scmp.ne.s32.totalorder %s43, %s45
    %p49 = scmp.eq.s32.totalorder %s9, 0
    %p50 = por %p48, %p49
    %p51 = scmp.ne.s32.totalorder %s43, %s45
    %p52 = scmp.eq.s32.totalorder %s14, 1
    %p53 = por %p51, %p52
    %p54 = scmp.ne.s32.totalorder %s45, %s46
    %p55 = scmp.eq.s32.totalorder %s14, 0
    %p56 = por %p54, %p55
    %p57 = scmp.ne.s32.totalorder %s45, %s46
    %p58 = scmp.eq.s32.totalorder %s15, 1
    %p59 = por %p57, %p58
    %p61 = scmp.ne.s32.totalorder %s46, %s60
    %p62 = scmp.eq.s32.totalorder %s15, 0
    %p63 = por %p61, %p62
    %s65 = sadd.s32 %s64, 1
    %p68 = scmp.eq.s32.totalorder %s9, 1
    %p69 = scmp.ne.s32.totalorder %s64, %s66
    %p70 = scmp.eq.s32.totalorder %s9, 0
    %p71 = por %p69, %p70
    %p72 = scmp.ne.s32.totalorder %s64, %s66
    %p73 = scmp.eq.s32.totalorder %s14, 1
    %p74 = por %p72, %p73
    %p75 = scmp.ne.s32.totalorder %s66, %s67
    %p76 = scmp.eq.s32.totalorder %s14, 0
    %p77 = por %p75, %p76
    %p78 = scmp.ne.s32.totalorder %s66, %s67
    %p79 = scmp.eq.s32.totalorder %s15, 1
    %p80 = por %p78, %p79
    %p82 = scmp.ne.s32.totalorder %s67, %s81
    %p83 = scmp.eq.s32.totalorder %s15, 0
    %p84 = por %p82, %p83
    %s85 = ssub.s32 %s9, %s16
    %p86 = scmp.eq.s32.totalorder %s85, 0
    %s88 = sadd.s32 %s87, 1
    %s89 = scalar_select %p86, %s87, %s88
    %p92 = pneg %p86
    %p93 = scmp.eq.s32.totalorder %s9, 1
    %p94 = por %p92, %p93
    %p95 = scmp.ne.s32.totalorder %s87, %s90
    %p96 = scmp.eq.s32.totalorder %s9, 0
    %p97 = por %p95, %p96
    %p98 = scmp.ne.s32.totalorder %s87, %s90
    %p99 = scmp.eq.s32.totalorder %s14, 1
    %p100 = por %p98, %p99
    %p101 = scmp.ne.s32.totalorder %s90, %s91
    %p102 = scmp.eq.s32.totalorder %s14, 0
    %p103 = por %p101, %p102
    %p104 = scmp.ne.s32.totalorder %s90, %s91
    %p105 = scmp.eq.s32.totalorder %s15, 1
    %p106 = por %p104, %p105
    %p108 = scmp.ne.s32.totalorder %s91, %s107
    %p109 = scmp.eq.s32.totalorder %s15, 0
    %p110 = por %p108, %p109
    %p111 = scmp.le.s32.totalorder 1, %s9
    %p112 = scmp.lt.s32.totalorder %s9, 3
    %p113 = pnand %p111, %p112
    %p114 = pneg %p113
    // Predicated region
    $region9: #{lunar_lander_convnet_forward.4} parent=5 // pred_check
      _
    $region10: #{lunar_lander_convnet_forward.4} parent=5 // pred_check_branch
      %116 = sbr.rel (%p113) target = $region12
    $region11: #{lunar_lander_convnet_forward.4} parent=5 // pred_region
      %s117 = ssub.s32 %s9, 1
      // Predicated region
      $region13: #{lunar_lander_convnet_forward.4} parent=11 // pred_check
        %p118 = pneg %p56
      $region14: #{lunar_lander_convnet_forward.4} parent=11 // pred_check_branch
        %120 = sbr.rel (%p118) target = $region16
      $region15: #{lunar_lander_convnet_forward.4} parent=11 // pred_region
        _
      $region16: #{lunar_lander_convnet_forward.4} parent=11 // pred_fallthru
        _
      // Predicated region
      $region17: #{lunar_lander_convnet_forward.4} parent=11 // pred_check
        %p121 = pneg %p77
      $region18: #{lunar_lander_convnet_forward.4} parent=11 // pred_check_branch
        %123 = sbr.rel (%p121) target = $region20
      $region19: #{lunar_lander_convnet_forward.4} parent=11 // pred_region
        _
      $region20: #{lunar_lander_convnet_forward.4} parent=11 // pred_fallthru
        _
    $region12: #{lunar_lander_convnet_forward.4} parent=5 // pred_fallthru
      _
    %p124 = scmp.lt.s32.totalorder %s9, 2
    // Predicated region
    $region21: #{lunar_lander_convnet_forward.4} parent=5 // pred_check
      %p125 = pneg %p124
    $region22: #{lunar_lander_convnet_forward.4} parent=5 // pred_check_branch
      %127 = sbr.rel (%p125) target = $region24
    $region23: #{lunar_lander_convnet_forward.4} parent=5 // pred_region
      // Predicated region
      $region25: #{lunar_lander_convnet_forward.4} parent=23 // pred_check
        %p128 = pneg %p29
      $region26: #{lunar_lander_convnet_forward.4} parent=23 // pred_check_branch
        %130 = sbr.rel (%p128) target = $region28
      $region27: #{lunar_lander_convnet_forward.4} parent=23 // pred_region
        %p131 = scmp.lt.s32.totalorder %s9, 1
        %s132 = scalar_select %p131, %s9, 1
        %s133 = smul.addr %s132, 32
        %s134 = smul.addr %s133, 8
        %s135 = scalar_lea.vmem %s0, %s134
      $region28: #{lunar_lander_convnet_forward.4} parent=23 // pred_fallthru
        _
    $region24: #{lunar_lander_convnet_forward.4} parent=5 // pred_fallthru
      _
    %p136 = scmp.le.s32.totalorder 1, %s9
    %p137 = scmp.lt.s32.totalorder %s9, 3
    %p138 = pnand %p136, %p137
    %p139 = pneg %p138
    // Predicated region
    $region29: #{lunar_lander_convnet_forward.4} parent=5 // pred_check
      _
    $region30: #{lunar_lander_convnet_forward.4} parent=5 // pred_check_branch
      %141 = sbr.rel (%p138) target = $region32
    $region31: #{lunar_lander_convnet_forward.4} parent=5 // pred_region
      %s142 = ssub.s32 %s9, 1
      %p143 = scmp.lt.s32.totalorder %s14, 1
      %s144 = scalar_select %p143, %s14, 1
      %s145 = smul.addr %s144, 32
      %s146 = smul.addr %s145, 8
      %s147 = scalar_lea.vmem %s0, %s146
      %p148 = pneg %p35
      %p149 = pneg %p32
      %p150 = pneg %p56
      %p151 = pneg %p53
      %p152 = pneg %p77
      %p153 = pneg %p74
      %p154 = pneg %p103
      %p155 = pneg %p100
      %p156 = scmp.lt.s32.totalorder %s14, 1
      %s157 = scalar_select %p156, %s14, 1
      %s158 = smul.addr %s157, 8
      %s159 = smul.addr %s158, 8
      %s160 = scalar_lea.vmem %s3, %s159
      %p161 = scmp.lt.s32.totalorder %s14, 1
      %s162 = scalar_select %p161, %s14, 1
      %s163 = smul.addr %s162, 32
      %s164 = smul.addr %s163, 8
      %s165 = scalar_lea.vmem %s0, %s164
      %p166 = scmp.lt.s32.totalorder %s14, 1
      %s167 = scalar_select %p166, %s14, 1
      %s168 = smul.addr %s167, 8
      %s169 = smul.addr %s168, 8
      %s170 = scalar_lea.vmem %s3, %s169
      %v171 = vld [vmem:[%s1] sm:$0xff]
      %v172 = vld [vmem:[%s1 + $0x8] sm:$0xff]
      %v173 = vld [vmem:[%s1 + $0x10] sm:$0xff]
      %v174 = vld [vmem:[%s1 + $0x18] sm:$0xff]
      %v175 = vld [vmem:[%s1 + $0x20] sm:$0xff]
      %v176 = vld [vmem:[%s1 + $0x28] sm:$0xff]
      %v177 = vld [vmem:[%s1 + $0x30] sm:$0xff]
      %v178 = vld [vmem:[%s1 + $0x38] sm:$0xff]
      %v179 = vld [vmem:[%s1 + $0x40] sm:$0xff]
      %v180 = vld [vmem:[%s1 + $0x48] sm:$0xff]
      %v181 = vld [vmem:[%s1 + $0x50] sm:$0xff]
      %v182 = vld [vmem:[%s1 + $0x58] sm:$0xff]
      %v183 = vld [vmem:[%s1 + $0x60] sm:$0xff]
      %v184 = vld [vmem:[%s1 + $0x68] sm:$0xff]
      %v185 = vld [vmem:[%s1 + $0x70] sm:$0xff]
      %v186 = vld [vmem:[%s1 + $0x78] sm:$0xff]
      %v187 = vld [vmem:[%s1 + $0x80] sm:$0xff]
      %v188 = vld [vmem:[%s1 + $0x88] sm:$0xff]
      %v189 = vld [vmem:[%s1 + $0x90] sm:$0xff]
      %v190 = vld [vmem:[%s1 + $0x98] sm:$0xff]
      %v191 = vld [vmem:[%s1 + $0xa0] sm:$0xff]
      %v192 = vld [vmem:[%s1 + $0xa8] sm:$0xff]
      %v193 = vld [vmem:[%s1 + $0xb0] sm:$0xff]
      %v194 = vld [vmem:[%s1 + $0xb8] sm:$0xff]
      %v195 = vld [vmem:[%s165] sm:$0xff]
      %v196 = vld [vmem:[%s165 + $0x10] sm:$0xff]
      %v197 = vld [vmem:[%s165 + $0x20] sm:$0xff]
      %v198 = vld [vmem:[%s165 + $0x30] sm:$0xff]
      %s199 = scalar_lea.vmem %s165, 64
      %v200 = vld [vmem:[%s199] sm:$0xff]
      %v201 = vld [vmem:[%s199 + $0x10] sm:$0xff]
      %v202 = vld [vmem:[%s199 + $0x20] sm:$0xff]
      %v203 = vld [vmem:[%s199 + $0x30] sm:$0xff]
      %v204 = vld [vmem:[%s165 + $0x8] sm:$0xff]
      %v205 = vld [vmem:[%s165 + $0x18] sm:$0xff]
      %v206 = vld [vmem:[%s165 + $0x28] sm:$0xff]
      %v207 = vld [vmem:[%s165 + $0x38] sm:$0xff]
      %s208 = scalar_lea.vmem %s165, 128
      %v209 = vld [vmem:[%s208] sm:$0xff]
      %v210 = vld [vmem:[%s208 + $0x10] sm:$0xff]
      %v211 = vld [vmem:[%s208 + $0x20] sm:$0xff]
      %v212 = vld [vmem:[%s208 + $0x30] sm:$0xff]
      %s213 = scalar_lea.vmem %s165, 192
      %v214 = vld [vmem:[%s213] sm:$0xff]
      %v215 = vld [vmem:[%s213 + $0x10] sm:$0xff]
      %v216 = vld [vmem:[%s213 + $0x20] sm:$0xff]
      %v217 = vld [vmem:[%s213 + $0x30] sm:$0xff]
      %v218 = vld [vmem:[%s208 + $0x8] sm:$0xff]
      %v219 = vld [vmem:[%s208 + $0x18] sm:$0xff]
      %v220 = vld [vmem:[%s208 + $0x28] sm:$0xff]
      %v221 = vld [vmem:[%s208 + $0x38] sm:$0xff]
      %v222 = vld [vmem:[%s199 + $0x8] sm:$0xff]
      %v223 = vld [vmem:[%s199 + $0x18] sm:$0xff]
      %v224 = vld [vmem:[%s199 + $0x28] sm:$0xff]
      %v225 = vld [vmem:[%s199 + $0x38] sm:$0xff]
      %234 = vrot.lane.b32.xlu0 %v195, 127
      %v235 = vpop.permute.xlu0 %234
      %236 = vrot.lane.b32.xlu0 %v204, 127
      %v237 = vpop.permute.xlu0 %236
      %238 = vrot.lane.b32.xlu0 %v196, 127
      %v239 = vpop.permute.xlu0 %238
      %240 = vrot.lane.b32.xlu0 %v205, 127
      %v241 = vpop.permute.xlu0 %240
      %242 = vrot.lane.b32.xlu0 %v197, 127
      %v243 = vpop.permute.xlu0 %242
      %244 = vrot.lane.b32.xlu0 %v206, 127
      %v245 = vpop.permute.xlu0 %244
      %246 = vrot.lane.b32.xlu0 %v198, 127
      %v247 = vpop.permute.xlu0 %246
      %248 = vrot.lane.b32.xlu0 %v207, 127
      %v249 = vpop.permute.xlu0 %248
      %vm250 = vcmask 1039360
      %v251 = vsel %vm250, %v235, %v237
      %v252 = vsel %vm250, %v239, %v241
      %v253 = vsel %vm250, %v243, %v245
      %v254 = vsel %vm250, %v247, %v249
      %267 = vrot.lane.b32.xlu0 %v209, 127
      %v268 = vpop.permute.xlu0 %267
      %269 = vrot.lane.b32.xlu0 %v218, 127
      %v270 = vpop.permute.xlu0 %269
      %271 = vrot.lane.b32.xlu0 %v210, 127
      %v272 = vpop.permute.xlu0 %271
      %273 = vrot.lane.b32.xlu0 %v219, 127
      %v274 = vpop.permute.xlu0 %273
      %275 = vrot.lane.b32.xlu0 %v211, 127
      %v276 = vpop.permute.xlu0 %275
      %277 = vrot.lane.b32.xlu0 %v220, 127
      %v278 = vpop.permute.xlu0 %277
      %279 = vrot.lane.b32.xlu0 %v212, 127
      %v280 = vpop.permute.xlu0 %279
      %281 = vrot.lane.b32.xlu0 %v221, 127
      %v282 = vpop.permute.xlu0 %281
      %v283 = vsel %vm250, %v268, %v270
      %v284 = vsel %vm250, %v272, %v274
      %v285 = vsel %vm250, %v276, %v278
      %v286 = vsel %vm250, %v280, %v282
      %291 = vrot.lane.b32.xlu0 %v195, 123
      %v292 = vpop.permute.xlu0 %291
      %293 = vrot.lane.b32.xlu0 %v204, 123
      %v294 = vpop.permute.xlu0 %293
      %295 = vrot.lane.b32.xlu0 %v196, 123
      %v296 = vpop.permute.xlu0 %295
      %297 = vrot.lane.b32.xlu0 %v205, 123
      %v298 = vpop.permute.xlu0 %297
      %299 = vrot.lane.b32.xlu0 %v197, 123
      %v300 = vpop.permute.xlu0 %299
      %301 = vrot.lane.b32.xlu0 %v206, 123
      %v302 = vpop.permute.xlu0 %301
      %303 = vrot.lane.b32.xlu0 %v198, 123
      %v304 = vpop.permute.xlu0 %303
      %305 = vrot.lane.b32.xlu0 %v207, 123
      %v306 = vpop.permute.xlu0 %305
      %vm307 = vcmask 1006592
      %v308 = vsel %vm307, %v292, %v294
      %v309 = vsel %vm307, %v296, %v298
      %v310 = vsel %vm307, %v300, %v302
      %v311 = vsel %vm307, %v304, %v306
      %324 = vrot.lane.b32.xlu0 %v200, 123
      %v325 = vpop.permute.xlu0 %324
      %326 = vrot.lane.b32.xlu0 %v222, 123
      %v327 = vpop.permute.xlu0 %326
      %328 = vrot.lane.b32.xlu0 %v201, 123
      %v329 = vpop.permute.xlu0 %328
      %330 = vrot.lane.b32.xlu0 %v223, 123
      %v331 = vpop.permute.xlu0 %330
      %332 = vrot.lane.b32.xlu0 %v202, 123
      %v333 = vpop.permute.xlu0 %332
      %334 = vrot.lane.b32.xlu0 %v224, 123
      %v335 = vpop.permute.xlu0 %334
      %336 = vrot.lane.b32.xlu0 %v203, 123
      %v337 = vpop.permute.xlu0 %336
      %338 = vrot.lane.b32.xlu0 %v225, 123
      %v339 = vpop.permute.xlu0 %338
      %v340 = vsel %vm307, %v325, %v327
      %v341 = vsel %vm307, %v329, %v331
      %v342 = vsel %vm307, %v333, %v335
      %v343 = vsel %vm307, %v337, %v339
      %348 = vrot.lane.b32.xlu0 %v195, 122
      %v349 = vpop.permute.xlu0 %348
      %350 = vrot.lane.b32.xlu0 %v204, 122
      %v351 = vpop.permute.xlu0 %350
      %352 = vrot.lane.b32.xlu0 %v196, 122
      %v353 = vpop.permute.xlu0 %352
      %354 = vrot.lane.b32.xlu0 %v205, 122
      %v355 = vpop.permute.xlu0 %354
      %356 = vrot.lane.b32.xlu0 %v197, 122
      %v357 = vpop.permute.xlu0 %356
      %358 = vrot.lane.b32.xlu0 %v206, 122
      %v359 = vpop.permute.xlu0 %358
      %360 = vrot.lane.b32.xlu0 %v198, 122
      %v361 = vpop.permute.xlu0 %360
      %362 = vrot.lane.b32.xlu0 %v207, 122
      %v363 = vpop.permute.xlu0 %362
      %vm364 = vcmask 998400
      %v365 = vsel %vm364, %v349, %v351
      %v366 = vsel %vm364, %v353, %v355
      %v367 = vsel %vm364, %v357, %v359
      %v368 = vsel %vm364, %v361, %v363
      %vm373 = vcmask 261120
      %v375 = vsel %vm373, %v173, 0
      %v378 = vsel %vm373, %v176, 0
      %v381 = vsel %vm373, %v179, 0
      %v384 = vsel %vm373, %v182, 0
      %v387 = vsel %vm373, %v185, 0
      %v390 = vsel %vm373, %v188, 0
      %v393 = vsel %vm373, %v191, 0
      %v396 = vsel %vm373, %v194, 0
      %398 = vmatprep.subr.mxu0 0.0
      %399 = vmatpush1.msra.mxu0 %v195
      %400 = vmatprep.subr.mxu0 0.0
      %401 = vmatpush1.msra.mxu0 %v196
      %402 = vmatprep.subr.mxu0 0.0
      %403 = vmatpush1.msra.mxu0 %v197
      %404 = vmatprep.subr.mxu0 0.0
      %405 = vmatpush1.msra.mxu0 %v198
      %406 = vmatprep.subr.mxu0 0.0
      %407 = vmatpush1.msra.mxu0 %v200
      %408 = vmatprep.subr.mxu0 0.0
      %409 = vmatpush1.msra.mxu0 %v201
      %410 = vmatprep.subr.mxu0 0.0
      %411 = vmatpush1.msra.mxu0 %v202
      %412 = vmatprep.subr.mxu0 0.0
      %413 = vmatpush1.msra.mxu0 %v203
      %414 = vmatprep.subr.mxu0 0.0
      %415 = vmatpush1.msra.mxu0 %v251
      %416 = vmatprep.subr.mxu0 0.0
      %417 = vmatpush1.msra.mxu0 %v252
      %418 = vmatprep.subr.mxu0 0.0
      %419 = vmatpush1.msra.mxu0 %v253
      %420 = vmatprep.subr.mxu0 0.0
      %421 = vmatpush1.msra.mxu0 %v254
      %422 = vmatprep.subr.mxu0 0.0
      %423 = vmatpush1.msra.mxu0 %v209
      %424 = vmatprep.subr.mxu0 0.0
      %425 = vmatpush1.msra.mxu0 %v210
      %426 = vmatprep.subr.mxu0 0.0
      %427 = vmatpush1.msra.mxu0 %v211
      %428 = vmatprep.subr.mxu0 0.0
      %429 = vmatpush1.msra.mxu0 %v212
      %430 = vmatprep.subr.mxu0 0.0
      %431 = vmatpush1.msra.mxu0 %v214
      %432 = vmatprep.subr.mxu0 0.0
      %433 = vmatpush1.msra.mxu0 %v215
      %434 = vmatprep.subr.mxu0 0.0
      %435 = vmatpush1.msra.mxu0 %v216
      %436 = vmatprep.subr.mxu0 0.0
      %437 = vmatpush1.msra.mxu0 %v217
      %438 = vmatprep.subr.mxu0 0.0
      %439 = vmatpush1.msra.mxu0 %v283
      %440 = vmatprep.subr.mxu0 0.0
      %441 = vmatpush1.msra.mxu0 %v284
      %442 = vmatprep.subr.mxu0 0.0
      %443 = vmatpush1.msra.mxu0 %v285
      %444 = vmatprep.subr.mxu0 0.0
      %445 = vmatpush1.msra.mxu0 %v286
      %446 = vmatprep.subr.mxu0 0.0
      %447 = vmatpush1.msra.mxu0 %v308
      %448 = vmatprep.subr.mxu0 0.0
      %449 = vmatpush1.msra.mxu0 %v309
      %450 = vmatprep.subr.mxu0 0.0
      %451 = vmatpush1.msra.mxu0 %v310
      %452 = vmatprep.subr.mxu0 0.0
      %453 = vmatpush1.msra.mxu0 %v311
      %454 = vmatprep.subr.mxu0 0.0
      %455 = vmatpush1.msra.mxu0 %v340
      %456 = vmatprep.subr.mxu0 0.0
      %457 = vmatpush1.msra.mxu0 %v341
      %458 = vmatprep.subr.mxu0 0.0
      %459 = vmatpush1.msra.mxu0 %v342
      %460 = vmatprep.subr.mxu0 0.0
      %461 = vmatpush1.msra.mxu0 %v343
      %462 = vmatprep.mubr.f32.mxu0 %v172
      %463 = vmatmul.mubr.f32.gmra.mrb[0].mxu0 %v171
      %v464 = vpop.f32.mrb[0].mxu0
      %v465 = vadd.f32 0.0, %v464
      %v466 = vpop.f32.mrb[0].mxu0
      %467 = vmatprep.mubr.f32.mxu0 %v175
      %468 = vmatmul.mubr.f32.gmra.mrb[0].mxu0 %v174
      %v469 = vpop.f32.mrb[0].mxu0
      %v470 = vadd.f32 0.0, %v469
      %v471 = vpop.f32.mrb[0].mxu0
      %472 = vmatprep.mubr.f32.mxu0 %v178
      %473 = vmatmul.mubr.f32.gmra.mrb[0].mxu0 %v177
      %v474 = vpop.f32.mrb[0].mxu0
      %v475 = vadd.f32 0.0, %v474
      %v476 = vpop.f32.mrb[0].mxu0
      %477 = vmatprep.mubr.f32.mxu0 %v181
      %478 = vmatmul.mubr.f32.gmra.mrb[0].mxu0 %v180
      %v479 = vpop.f32.mrb[0].mxu0
      %v480 = vadd.f32 0.0, %v479
      %v481 = vpop.f32.mrb[0].mxu0
      %482 = vmatprep.mubr.f32.mxu0 %v184
      %483 = vmatmul.mubr.f32.gmra.mrb[0].mxu0 %v183
      %v484 = vpop.f32.mrb[0].mxu0
      %v485 = vadd.f32 0.0, %v484
      %v486 = vpop.f32.mrb[0].mxu0
      %487 = vmatprep.mubr.f32.mxu0 %v187
      %488 = vmatmul.mubr.f32.gmra.mrb[0].mxu0 %v186
      %v489 = vpop.f32.mrb[0].mxu0
      %v490 = vadd.f32 0.0, %v489
      %v491 = vpop.f32.mrb[0].mxu0
      %492 = vmatprep.mubr.f32.mxu0 %v190
      %493 = vmatmul.mubr.f32.gmra.mrb[0].mxu0 %v189
      %v494 = vpop.f32.mrb[0].mxu0
      %v495 = vadd.f32 0.0, %v494
      %v496 = vpop.f32.mrb[0].mxu0
      %497 = vmatprep.mubr.f32.mxu0 %v193
      %498 = vmatmul.mubr.f32.gmra.mrb[0].mxu0 %v192
      %v499 = vpop.f32.mrb[0].mxu0
      %v500 = vadd.f32 0.0, %v499
      %v501 = vpop.f32.mrb[0].mxu0
      %502 = vdwg.mxu0
      %503 = vmatprep.subr.mxu0 0.0
      %504 = vmatpush1.msra.mxu0 %v365
      %505 = vmatprep.subr.mxu0 0.0
      %506 = vmatpush1.msra.mxu0 %v366
      %507 = vmatprep.subr.mxu0 0.0
      %508 = vmatpush1.msra.mxu0 %v367
      %509 = vmatprep.subr.mxu0 0.0
      %510 = vmatpush1.msra.mxu0 %v368
      %511 = vmatprep.subr.mxu0 0.0
      %512 = vmatpush1.msra.mxu0 0.0
      %513 = vmatprep.subr.mxu0 0.0
      %514 = vmatpush1.msra.mxu0 0.0
      %515 = vmatprep.subr.mxu0 0.0
      %516 = vmatpush1.msra.mxu0 0.0
      %517 = vmatprep.subr.mxu0 0.0
      %518 = vmatpush1.msra.mxu0 0.0
      %519 = vmatprep.subr.mxu0 0.0
      %520 = vmatpush1.msra.mxu0 0.0
      %521 = vmatprep.subr.mxu0 0.0
      %522 = vmatpush1.msra.mxu0 0.0
      %523 = vmatprep.subr.mxu0 0.0
      %524 = vmatpush1.msra.mxu0 0.0
      %525 = vmatprep.subr.mxu0 0.0
      %526 = vmatpush1.msra.mxu0 0.0
      %527 = vmatprep.subr.mxu0 0.0
      %528 = vmatpush1.msra.mxu0 0.0
      %529 = vmatprep.subr.mxu0 0.0
      %530 = vmatpush1.msra.mxu0 0.0
      %531 = vmatprep.subr.mxu0 0.0
      %532 = vmatpush1.msra.mxu0 0.0
      %533 = vmatprep.subr.mxu0 0.0
      %534 = vmatpush1.msra.mxu0 0.0
      %535 = vmatprep.subr.mxu0 0.0
      %536 = vmatpush1.msra.mxu0 0.0
      %537 = vmatprep.subr.mxu0 0.0
      %538 = vmatpush1.msra.mxu0 0.0
      %539 = vmatprep.subr.mxu0 0.0
      %540 = vmatpush1.msra.mxu0 0.0
      %541 = vmatprep.subr.mxu0 0.0
      %542 = vmatpush1.msra.mxu0 0.0
      %543 = vmatprep.subr.mxu0 0.0
      %544 = vmatpush1.msra.mxu0 0.0
      %545 = vmatprep.subr.mxu0 0.0
      %546 = vmatpush1.msra.mxu0 0.0
      %547 = vmatprep.subr.mxu0 0.0
      %548 = vmatpush1.msra.mxu0 0.0
      %549 = vmatprep.subr.mxu0 0.0
      %550 = vmatpush1.msra.mxu0 0.0
      %551 = vmatprep.subr.mxu0 0.0
      %552 = vmatpush1.msra.mxu0 0.0
      %553 = vmatprep.subr.mxu0 0.0
      %554 = vmatpush1.msra.mxu0 0.0
      %555 = vmatprep.subr.mxu0 0.0
      %556 = vmatpush1.msra.mxu0 0.0
      %557 = vmatprep.subr.mxu0 0.0
      %558 = vmatpush1.msra.mxu0 0.0
      %559 = vmatprep.subr.mxu0 0.0
      %560 = vmatpush1.msra.mxu0 0.0
      %561 = vmatprep.subr.mxu0 0.0
      %562 = vmatpush1.msra.mxu0 0.0
      %563 = vmatprep.subr.mxu0 0.0
      %564 = vmatpush1.msra.mxu0 0.0
      %565 = vmatprep.subr.mxu0 0.0
      %566 = vmatpush1.msra.mxu0 0.0
      %567 = vmatprep.mubr.f32.mxu0 0.0
      %568 = vmatmul.mubr.f32.gmra.mrb[0].mxu0 %v375
      %v569 = vpop.f32.mrb[0].mxu0
      %v570 = vadd.f32 %v465, %v569
      %v571 = vpop.f32.mrb[0].mxu0
      %572 = vmatprep.mubr.f32.mxu0 0.0
      %573 = vmatmul.mubr.f32.gmra.mrb[0].mxu0 %v378
      %v574 = vpop.f32.mrb[0].mxu0
      %v575 = vadd.f32 %v470, %v574
      %v576 = vpop.f32.mrb[0].mxu0
      %577 = vmatprep.mubr.f32.mxu0 0.0
      %578 = vmatmul.mubr.f32.gmra.mrb[0].mxu0 %v381
      %v579 = vpop.f32.mrb[0].mxu0
      %v580 = vadd.f32 %v475, %v579
      %v581 = vpop.f32.mrb[0].mxu0
      %582 = vmatprep.mubr.f32.mxu0 0.0
      %583 = vmatmul.mubr.f32.gmra.mrb[0].mxu0 %v384
      %v584 = vpop.f32.mrb[0].mxu0
      %v585 = vadd.f32 %v480, %v584
      %v586 = vpop.f32.mrb[0].mxu0
      %587 = vmatprep.mubr.f32.mxu0 0.0
      %588 = vmatmul.mubr.f32.gmra.mrb[0].mxu0 %v387
      %v589 = vpop.f32.mrb[0].mxu0
      %v590 = vadd.f32 %v485, %v589
      %v591 = vpop.f32.mrb[0].mxu0
      %592 = vmatprep.mubr.f32.mxu0 0.0
      %593 = vmatmul.mubr.f32.gmra.mrb[0].mxu0 %v390
      %v594 = vpop.f32.mrb[0].mxu0
      %v595 = vadd.f32 %v490, %v594
      %v596 = vpop.f32.mrb[0].mxu0
      %597 = vmatprep.mubr.f32.mxu0 0.0
      %598 = vmatmul.mubr.f32.gmra.mrb[0].mxu0 %v393
      %v599 = vpop.f32.mrb[0].mxu0
      %v600 = vadd.f32 %v495, %v599
      %v601 = vpop.f32.mrb[0].mxu0
      %602 = vmatprep.mubr.f32.mxu0 0.0
      %603 = vmatmul.mubr.f32.gmra.mrb[0].mxu0 %v396
      %v604 = vpop.f32.mrb[0].mxu0
      %v605 = vadd.f32 %v500, %v604
      %v606 = vpop.f32.mrb[0].mxu0
      %607 = vdwg.mxu0
      %v608 = vld [vmem:[%s213] sm:$0xff]
      %v609 = vld [vmem:[%s213 + $0x8] sm:$0xff]
      %v610 = vld [vmem:[%s213 + $0x10] sm:$0xff]
      %v611 = vld [vmem:[%s213 + $0x18] sm:$0xff]
      %v612 = vld [vmem:[%s213 + $0x20] sm:$0xff]
      %v613 = vld [vmem:[%s213 + $0x28] sm:$0xff]
      %v614 = vld [vmem:[%s213 + $0x30] sm:$0xff]
      %v615 = vld [vmem:[%s213 + $0x38] sm:$0xff]
      %616 = vrot.lane.b32.xlu0 %v200, 127
      %v617 = vpop.permute.xlu0 %616
      %618 = vrot.lane.b32.xlu0 %v222, 127
      %v619 = vpop.permute.xlu0 %618
      %620 = vrot.lane.b32.xlu0 %v201, 127
      %v621 = vpop.permute.xlu0 %620
      %622 = vrot.lane.b32.xlu0 %v223, 127
      %v623 = vpop.permute.xlu0 %622
      %624 = vrot.lane.b32.xlu0 %v202, 127
      %v625 = vpop.permute.xlu0 %624
      %626 = vrot.lane.b32.xlu0 %v224, 127
      %v627 = vpop.permute.xlu0 %626
      %628 = vrot.lane.b32.xlu0 %v203, 127
      %v629 = vpop.permute.xlu0 %628
      %630 = vrot.lane.b32.xlu0 %v225, 127
      %v631 = vpop.permute.xlu0 %630
      %v632 = vsel %vm250, %v617, %v619
      %v633 = vsel %vm250, %v621, %v623
      %v634 = vsel %vm250, %v625, %v627
      %v635 = vsel %vm250, %v629, %v631
      %648 = vrot.lane.b32.xlu0 %v608, 127
      %v649 = vpop.permute.xlu0 %648
      %650 = vrot.lane.b32.xlu0 %v609, 127
      %v651 = vpop.permute.xlu0 %650
      %652 = vrot.lane.b32.xlu0 %v610, 127
      %v653 = vpop.permute.xlu0 %652
      %654 = vrot.lane.b32.xlu0 %v611, 127
      %v655 = vpop.permute.xlu0 %654
      %656 = vrot.lane.b32.xlu0 %v612, 127
      %v657 = vpop.permute.xlu0 %656
      %658 = vrot.lane.b32.xlu0 %v613, 127
      %v659 = vpop.permute.xlu0 %658
      %660 = vrot.lane.b32.xlu0 %v614, 127
      %v661 = vpop.permute.xlu0 %660
      %662 = vrot.lane.b32.xlu0 %v615, 127
      %v663 = vpop.permute.xlu0 %662
      %v664 = vsel %vm250, %v649, %v651
      %v665 = vsel %vm250, %v653, %v655
      %v666 = vsel %vm250, %v657, %v659
      %v667 = vsel %vm250, %v661, %v663
      %672 = vrot.lane.b32.xlu0 %v200, 122
      %v673 = vpop.permute.xlu0 %672
      %674 = vrot.lane.b32.xlu0 %v222, 122
      %v675 = vpop.permute.xlu0 %674
      %676 = vrot.lane.b32.xlu0 %v201, 122
      %v677 = vpop.permute.xlu0 %676
      %678 = vrot.lane.b32.xlu0 %v223, 122
      %v679 = vpop.permute.xlu0 %678
      %680 = vrot.lane.b32.xlu0 %v202, 122
      %v681 = vpop.permute.xlu0 %680
      %682 = vrot.lane.b32.xlu0 %v224, 122
      %v683 = vpop.permute.xlu0 %682
      %684 = vrot.lane.b32.xlu0 %v203, 122
      %v685 = vpop.permute.xlu0 %684
      %686 = vrot.lane.b32.xlu0 %v225, 122
      %v687 = vpop.permute.xlu0 %686
      %v688 = vsel %vm364, %v673, %v675
      %v689 = vsel %vm364, %v677, %v679
      %v690 = vsel %vm364, %v681, %v683
      %v691 = vsel %vm364, %v685, %v687
      %696 = vmatprep.subr.mxu0 0.0
      %697 = vmatpush1.msra.mxu0 %v200
      %698 = vmatprep.subr.mxu0 0.0
      %699 = vmatpush1.msra.mxu0 %v201
      %700 = vmatprep.subr.mxu0 0.0
      %701 = vmatpush1.msra.mxu0 %v202
      %702 = vmatprep.subr.mxu0 0.0
      %703 = vmatpush1.msra.mxu0 %v203
      %704 = vmatprep.subr.mxu0 0.0
      %705 = vmatpush1.msra.mxu0 %v251
      %706 = vmatprep.subr.mxu0 0.0
      %707 = vmatpush1.msra.mxu0 %v252
      %708 = vmatprep.subr.mxu0 0.0
      %709 = vmatpush1.msra.mxu0 %v253
      %710 = vmatprep.subr.mxu0 0.0
      %711 = vmatpush1.msra.mxu0 %v254
      %712 = vmatprep.subr.mxu0 0.0
      %713 = vmatpush1.msra.mxu0 %v632
      %714 = vmatprep.subr.mxu0 0.0
      %715 = vmatpush1.msra.mxu0 %v633
      %716 = vmatprep.subr.mxu0 0.0
      %717 = vmatpush1.msra.mxu0 %v634
      %718 = vmatprep.subr.mxu0 0.0
      %719 = vmatpush1.msra.mxu0 %v635
      %720 = vmatprep.subr.mxu0 0.0
      %721 = vmatpush1.msra.mxu0 %v214
      %722 = vmatprep.subr.mxu0 0.0
      %723 = vmatpush1.msra.mxu0 %v215
      %724 = vmatprep.subr.mxu0 0.0
      %725 = vmatpush1.msra.mxu0 %v216
      %726 = vmatprep.subr.mxu0 0.0
      %727 = vmatpush1.msra.mxu0 %v217
      %728 = vmatprep.subr.mxu0 0.0
      %729 = vmatpush1.msra.mxu0 %v283
      %730 = vmatprep.subr.mxu0 0.0
      %731 = vmatpush1.msra.mxu0 %v284
      %732 = vmatprep.subr.mxu0 0.0
      %733 = vmatpush1.msra.mxu0 %v285
      %734 = vmatprep.subr.mxu0 0.0
      %735 = vmatpush1.msra.mxu0 %v286
      %736 = vmatprep.subr.mxu0 0.0
      %737 = vmatpush1.msra.mxu0 %v664
      %738 = vmatprep.subr.mxu0 0.0
      %739 = vmatpush1.msra.mxu0 %v665
      %740 = vmatprep.subr.mxu0 0.0
      %741 = vmatpush1.msra.mxu0 %v666
      %742 = vmatprep.subr.mxu0 0.0
      %743 = vmatpush1.msra.mxu0 %v667
      %744 = vmatprep.subr.mxu0 0.0
      %745 = vmatpush1.msra.mxu0 %v340
      %746 = vmatprep.subr.mxu0 0.0
      %747 = vmatpush1.msra.mxu0 %v341
      %748 = vmatprep.subr.mxu0 0.0
      %749 = vmatpush1.msra.mxu0 %v342
      %750 = vmatprep.subr.mxu0 0.0
      %751 = vmatpush1.msra.mxu0 %v343
      %752 = vmatprep.subr.mxu0 0.0
      %753 = vmatpush1.msra.mxu0 %v365
      %754 = vmatprep.subr.mxu0 0.0
      %755 = vmatpush1.msra.mxu0 %v366
      %756 = vmatprep.subr.mxu0 0.0
      %757 = vmatpush1.msra.mxu0 %v367
      %758 = vmatprep.subr.mxu0 0.0
      %759 = vmatpush1.msra.mxu0 %v368
      %760 = vmatprep.mubr.f32.mxu0 %v172
      %761 = vmatmul.mubr.f32.gmra.mrb[0].mxu0 %v171
      %v762 = vpop.f32.mrb[0].mxu0
      %v763 = vadd.f32 0.0, %v762
      %v764 = vpop.f32.mrb[0].mxu0
      %765 = vmatprep.mubr.f32.mxu0 %v175
      %766 = vmatmul.mubr.f32.gmra.mrb[0].mxu0 %v174
      %v767 = vpop.f32.mrb[0].mxu0
      %v768 = vadd.f32 0.0, %v767
      %v769 = vpop.f32.mrb[0].mxu0
      %770 = vmatprep.mubr.f32.mxu0 %v178
      %771 = vmatmul.mubr.f32.gmra.mrb[0].mxu0 %v177
      %v772 = vpop.f32.mrb[0].mxu0
      %v773 = vadd.f32 0.0, %v772
      %v774 = vpop.f32.mrb[0].mxu0
      %775 = vmatprep.mubr.f32.mxu0 %v181
      %776 = vmatmul.mubr.f32.gmra.mrb[0].mxu0 %v180
      %v777 = vpop.f32.mrb[0].mxu0
      %v778 = vadd.f32 0.0, %v777
      %v779 = vpop.f32.mrb[0].mxu0
      %780 = vmatprep.mubr.f32.mxu0 %v184
      %781 = vmatmul.mubr.f32.gmra.mrb[0].mxu0 %v183
      %v782 = vpop.f32.mrb[0].mxu0
      %v783 = vadd.f32 0.0, %v782
      %v784 = vpop.f32.mrb[0].mxu0
      %785 = vmatprep.mubr.f32.mxu0 %v187
      %786 = vmatmul.mubr.f32.gmra.mrb[0].mxu0 %v186
      %v787 = vpop.f32.mrb[0].mxu0
      %v788 = vadd.f32 0.0, %v787
      %v789 = vpop.f32.mrb[0].mxu0
      %790 = vmatprep.mubr.f32.mxu0 %v190
      %791 = vmatmul.mubr.f32.gmra.mrb[0].mxu0 %v189
      %v792 = vpop.f32.mrb[0].mxu0
      %v793 = vadd.f32 0.0, %v792
      %v794 = vpop.f32.mrb[0].mxu0
      %795 = vmatprep.mubr.f32.mxu0 %v193
      %796 = vmatmul.mubr.f32.gmra.mrb[0].mxu0 %v192
      %v797 = vpop.f32.mrb[0].mxu0
      %v798 = vadd.f32 0.0, %v797
      %v799 = vpop.f32.mrb[0].mxu0
      %800 = vdwg.mxu0
      %801 = vmatprep.subr.mxu0 0.0
      %802 = vmatpush1.msra.mxu0 %v688
      %803 = vmatprep.subr.mxu0 0.0
      %804 = vmatpush1.msra.mxu0 %v689
      %805 = vmatprep.subr.mxu0 0.0
      %806 = vmatpush1.msra.mxu0 %v690
      %807 = vmatprep.subr.mxu0 0.0
      %808 = vmatpush1.msra.mxu0 %v691
      %809 = vmatprep.subr.mxu0 0.0
      %810 = vmatpush1.msra.mxu0 0.0
      %811 = vmatprep.subr.mxu0 0.0
      %812 = vmatpush1.msra.mxu0 0.0
      %813 = vmatprep.subr.mxu0 0.0
      %814 = vmatpush1.msra.mxu0 0.0
      %815 = vmatprep.subr.mxu0 0.0
      %816 = vmatpush1.msra.mxu0 0.0
      %817 = vmatprep.subr.mxu0 0.0
      %818 = vmatpush1.msra.mxu0 0.0
      %819 = vmatprep.subr.mxu0 0.0
      %820 = vmatpush1.msra.mxu0 0.0
      %821 = vmatprep.subr.mxu0 0.0
      %822 = vmatpush1.msra.mxu0 0.0
      %823 = vmatprep.subr.mxu0 0.0
      %824 = vmatpush1.msra.mxu0 0.0
      %825 = vmatprep.subr.mxu0 0.0
      %826 = vmatpush1.msra.mxu0 0.0
      %827 = vmatprep.subr.mxu0 0.0
      %828 = vmatpush1.msra.mxu0 0.0
      %829 = vmatprep.subr.mxu0 0.0
      %830 = vmatpush1.msra.mxu0 0.0
      %831 = vmatprep.subr.mxu0 0.0
      %832 = vmatpush1.msra.mxu0 0.0
      %833 = vmatprep.subr.mxu0 0.0
      %834 = vmatpush1.msra.mxu0 0.0
      %835 = vmatprep.subr.mxu0 0.0
      %836 = vmatpush1.msra.mxu0 0.0
      %837 = vmatprep.subr.mxu0 0.0
      %838 = vmatpush1.msra.mxu0 0.0
      %839 = vmatprep.subr.mxu0 0.0
      %840 = vmatpush1.msra.mxu0 0.0
      %841 = vmatprep.subr.mxu0 0.0
      %842 = vmatpush1.msra.mxu0 0.0
      %843 = vmatprep.subr.mxu0 0.0
      %844 = vmatpush1.msra.mxu0 0.0
      %845 = vmatprep.subr.mxu0 0.0
      %846 = vmatpush1.msra.mxu0 0.0
      %847 = vmatprep.subr.mxu0 0.0
      %848 = vmatpush1.msra.mxu0 0.0
      %849 = vmatprep.subr.mxu0 0.0
      %850 = vmatpush1.msra.mxu0 0.0
      %851 = vmatprep.subr.mxu0 0.0
      %852 = vmatpush1.msra.mxu0 0.0
      %853 = vmatprep.subr.mxu0 0.0
      %854 = vmatpush1.msra.mxu0 0.0
      %855 = vmatprep.subr.mxu0 0.0
      %856 = vmatpush1.msra.mxu0 0.0
      %857 = vmatprep.subr.mxu0 0.0
      %858 = vmatpush1.msra.mxu0 0.0
      %859 = vmatprep.subr.mxu0 0.0
      %860 = vmatpush1.msra.mxu0 0.0
      %861 = vmatprep.subr.mxu0 0.0
      %862 = vmatpush1.msra.mxu0 0.0
      %863 = vmatprep.subr.mxu0 0.0
      %864 = vmatpush1.msra.mxu0 0.0
      %865 = vmatprep.mubr.f32.mxu0 0.0
      %866 = vmatmul.mubr.f32.gmra.mrb[0].mxu0 %v375
      %v867 = vpop.f32.mrb[0].mxu0
      %v868 = vadd.f32 %v763, %v867
      %v869 = vpop.f32.mrb[0].mxu0
      %870 = vmatprep.mubr.f32.mxu0 0.0
      %871 = vmatmul.mubr.f32.gmra.mrb[0].mxu0 %v378
      %v872 = vpop.f32.mrb[0].mxu0
      %v873 = vadd.f32 %v768, %v872
      %v874 = vpop.f32.mrb[0].mxu0
      %875 = vmatprep.mubr.f32.mxu0 0.0
      %876 = vmatmul.mubr.f32.gmra.mrb[0].mxu0 %v381
      %v877 = vpop.f32.mrb[0].mxu0
      %v878 = vadd.f32 %v773, %v877
      %v879 = vpop.f32.mrb[0].mxu0
      %880 = vmatprep.mubr.f32.mxu0 0.0
      %881 = vmatmul.mubr.f32.gmra.mrb[0].mxu0 %v384
      %v882 = vpop.f32.mrb[0].mxu0
      %v883 = vadd.f32 %v778, %v882
      %v884 = vpop.f32.mrb[0].mxu0
      %885 = vmatprep.mubr.f32.mxu0 0.0
      %886 = vmatmul.mubr.f32.gmra.mrb[0].mxu0 %v387
      %v887 = vpop.f32.mrb[0].mxu0
      %v888 = vadd.f32 %v783, %v887
      %v889 = vpop.f32.mrb[0].mxu0
      %890 = vmatprep.mubr.f32.mxu0 0.0
      %891 = vmatmul.mubr.f32.gmra.mrb[0].mxu0 %v390
      %v892 = vpop.f32.mrb[0].mxu0
      %v893 = vadd.f32 %v788, %v892
      %v894 = vpop.f32.mrb[0].mxu0
      %895 = vmatprep.mubr.f32.mxu0 0.0
      %896 = vmatmul.mubr.f32.gmra.mrb[0].mxu0 %v393
      %v897 = vpop.f32.mrb[0].mxu0
      %v898 = vadd.f32 %v793, %v897
      %v899 = vpop.f32.mrb[0].mxu0
      %900 = vmatprep.mubr.f32.mxu0 0.0
      %901 = vmatmul.mubr.f32.gmra.mrb[0].mxu0 %v396
      %v902 = vpop.f32.mrb[0].mxu0
      %v903 = vadd.f32 %v798, %v902
      %v904 = vpop.f32.mrb[0].mxu0
      %905 = vdwg.mxu0
      %v906 = vmax.f32 %v570, %v868
      %v907 = vmax.f32 %v575, %v873
      %v908 = vmax.f32 %v580, %v878
      %v909 = vmax.f32 %v585, %v883
      %v910 = vmax.f32 %v590, %v888
      %v911 = vmax.f32 %v595, %v893
      %v912 = vmax.f32 %v600, %v898
      %v913 = vmax.f32 %v605, %v903
      %914 = vrot.lane.b32.xlu0 %v209, 123
      %v915 = vpop.permute.xlu0 %914
      %916 = vrot.lane.b32.xlu0 %v218, 123
      %v917 = vpop.permute.xlu0 %916
      %918 = vrot.lane.b32.xlu0 %v210, 123
      %v919 = vpop.permute.xlu0 %918
      %920 = vrot.lane.b32.xlu0 %v219, 123
      %v921 = vpop.permute.xlu0 %920
      %922 = vrot.lane.b32.xlu0 %v211, 123
      %v923 = vpop.permute.xlu0 %922
      %924 = vrot.lane.b32.xlu0 %v220, 123
      %v925 = vpop.permute.xlu0 %924
      %926 = vrot.lane.b32.xlu0 %v212, 123
      %v927 = vpop.permute.xlu0 %926
      %928 = vrot.lane.b32.xlu0 %v221, 123
      %v929 = vpop.permute.xlu0 %928
      %v930 = vsel %vm307, %v915, %v917
      %v931 = vsel %vm307, %v919, %v921
      %v932 = vsel %vm307, %v923, %v925
      %v933 = vsel %vm307, %v927, %v929
      %938 = vrot.lane.b32.xlu0 %v608, 123
      %v939 = vpop.permute.xlu0 %938
      %940 = vrot.lane.b32.xlu0 %v609, 123
      %v941 = vpop.permute.xlu0 %940
      %942 = vrot.lane.b32.xlu0 %v610, 123
      %v943 = vpop.permute.xlu0 %942
      %944 = vrot.lane.b32.xlu0 %v611, 123
      %v945 = vpop.permute.xlu0 %944
      %946 = vrot.lane.b32.xlu0 %v612, 123
      %v947 = vpop.permute.xlu0 %946
      %948 = vrot.lane.b32.xlu0 %v613, 123
      %v949 = vpop.permute.xlu0 %948
      %950 = vrot.lane.b32.xlu0 %v614, 123
      %v951 = vpop.permute.xlu0 %950
      %952 = vrot.lane.b32.xlu0 %v615, 123
      %v953 = vpop.permute.xlu0 %952
      %v954 = vsel %vm307, %v939, %v941
      %v955 = vsel %vm307, %v943, %v945
      %v956 = vsel %vm307, %v947, %v949
      %v957 = vsel %vm307, %v951, %v953
      %962 = vrot.lane.b32.xlu0 %v209, 122
      %v963 = vpop.permute.xlu0 %962
      %964 = vrot.lane.b32.xlu0 %v218, 122
      %v965 = vpop.permute.xlu0 %964
      %966 = vrot.lane.b32.xlu0 %v210, 122
      %v967 = vpop.permute.xlu0 %966
      %968 = vrot.lane.b32.xlu0 %v219, 122
      %v969 = vpop.permute.xlu0 %968
      %970 = vrot.lane.b32.xlu0 %v211, 122
      %v971 = vpop.permute.xlu0 %970
      %972 = vrot.lane.b32.xlu0 %v220, 122
      %v973 = vpop.permute.xlu0 %972
      %974 = vrot.lane.b32.xlu0 %v212, 122
      %v975 = vpop.permute.xlu0 %974
      %976 = vrot.lane.b32.xlu0 %v221, 122
      %v977 = vpop.permute.xlu0 %976
      %v978 = vsel %vm364, %v963, %v965
      %v979 = vsel %vm364, %v967, %v969
      %v980 = vsel %vm364, %v971, %v973
      %v981 = vsel %vm364, %v975, %v977
      %986 = vmatprep.subr.mxu0 0.0
      %987 = vmatpush1.msra.mxu0 %v209
      %988 = vmatprep.subr.mxu0 0.0
      %989 = vmatpush1.msra.mxu0 %v210
      %990 = vmatprep.subr.mxu0 0.0
      %991 = vmatpush1.msra.mxu0 %v211
      %992 = vmatprep.subr.mxu0 0.0
      %993 = vmatpush1.msra.mxu0 %v212
      %994 = vmatprep.subr.mxu0 0.0
      %995 = vmatpush1.msra.mxu0 %v214
      %996 = vmatprep.subr.mxu0 0.0
      %997 = vmatpush1.msra.mxu0 %v215
      %998 = vmatprep.subr.mxu0 0.0
      %999 = vmatpush1.msra.mxu0 %v216
      %1000 = vmatprep.subr.mxu0 0.0
      %1001 = vmatpush1.msra.mxu0 %v217
      %1002 = vmatprep.subr.mxu0 0.0
      %1003 = vmatpush1.msra.mxu0 %v283
      %1004 = vmatprep.subr.mxu0 0.0
      %1005 = vmatpush1.msra.mxu0 %v284
      %1006 = vmatprep.subr.mxu0 0.0
      %1007 = vmatpush1.msra.mxu0 %v285
      %1008 = vmatprep.subr.mxu0 0.0
      %1009 = vmatpush1.msra.mxu0 %v286
      %1010 = vmatprep.subr.mxu0 0.0
      %1011 = vmatpush1.msra.mxu0 %v308
      %1012 = vmatprep.subr.mxu0 0.0
      %1013 = vmatpush1.msra.mxu0 %v309
      %1014 = vmatprep.subr.mxu0 0.0
      %1015 = vmatpush1.msra.mxu0 %v310
      %1016 = vmatprep.subr.mxu0 0.0
      %1017 = vmatpush1.msra.mxu0 %v311
      %1018 = vmatprep.subr.mxu0 0.0
      %1019 = vmatpush1.msra.mxu0 %v340
      %1020 = vmatprep.subr.mxu0 0.0
      %1021 = vmatpush1.msra.mxu0 %v341
      %1022 = vmatprep.subr.mxu0 0.0
      %1023 = vmatpush1.msra.mxu0 %v342
      %1024 = vmatprep.subr.mxu0 0.0
      %1025 = vmatpush1.msra.mxu0 %v343
      %1026 = vmatprep.subr.mxu0 0.0
      %1027 = vmatpush1.msra.mxu0 %v365
      %1028 = vmatprep.subr.mxu0 0.0
      %1029 = vmatpush1.msra.mxu0 %v366
      %1030 = vmatprep.subr.mxu0 0.0
      %1031 = vmatpush1.msra.mxu0 %v367
      %1032 = vmatprep.subr.mxu0 0.0
      %1033 = vmatpush1.msra.mxu0 %v368
      %1034 = vmatprep.subr.mxu0 0.0
      %1035 = vmatpush1.msra.mxu0 %v930
      %1036 = vmatprep.subr.mxu0 0.0
      %1037 = vmatpush1.msra.mxu0 %v931
      %1038 = vmatprep.subr.mxu0 0.0
      %1039 = vmatpush1.msra.mxu0 %v932
      %1040 = vmatprep.subr.mxu0 0.0
      %1041 = vmatpush1.msra.mxu0 %v933
      %1042 = vmatprep.subr.mxu0 0.0
      %1043 = vmatpush1.msra.mxu0 %v954
      %1044 = vmatprep.subr.mxu0 0.0
      %1045 = vmatpush1.msra.mxu0 %v955
      %1046 = vmatprep.subr.mxu0 0.0
      %1047 = vmatpush1.msra.mxu0 %v956
      %1048 = vmatprep.subr.mxu0 0.0
      %1049 = vmatpush1.msra.mxu0 %v957
      %1050 = vmatprep.mubr.f32.mxu0 %v172
      %1051 = vmatmul.mubr.f32.gmra.mrb[0].mxu0 %v171
      %v1052 = vpop.f32.mrb[0].mxu0
      %v1053 = vadd.f32 0.0, %v1052
      %v1054 = vpop.f32.mrb[0].mxu0
      %1055 = vmatprep.mubr.f32.mxu0 %v175
      %1056 = vmatmul.mubr.f32.gmra.mrb[0].mxu0 %v174
      %v1057 = vpop.f32.mrb[0].mxu0
      %v1058 = vadd.f32 0.0, %v1057
      %v1059 = vpop.f32.mrb[0].mxu0
      %1060 = vmatprep.mubr.f32.mxu0 %v178
      %1061 = vmatmul.mubr.f32.gmra.mrb[0].mxu0 %v177
      %v1062 = vpop.f32.mrb[0].mxu0
      %v1063 = vadd.f32 0.0, %v1062
      %v1064 = vpop.f32.mrb[0].mxu0
      %1065 = vmatprep.mubr.f32.mxu0 %v181
      %1066 = vmatmul.mubr.f32.gmra.mrb[0].mxu0 %v180
      %v1067 = vpop.f32.mrb[0].mxu0
      %v1068 = vadd.f32 0.0, %v1067
      %v1069 = vpop.f32.mrb[0].mxu0
      %1070 = vmatprep.mubr.f32.mxu0 %v184
      %1071 = vmatmul.mubr.f32.gmra.mrb[0].mxu0 %v183
      %v1072 = vpop.f32.mrb[0].mxu0
      %v1073 = vadd.f32 0.0, %v1072
      %v1074 = vpop.f32.mrb[0].mxu0
      %1075 = vmatprep.mubr.f32.mxu0 %v187
      %1076 = vmatmul.mubr.f32.gmra.mrb[0].mxu0 %v186
      %v1077 = vpop.f32.mrb[0].mxu0
      %v1078 = vadd.f32 0.0, %v1077
      %v1079 = vpop.f32.mrb[0].mxu0
      %1080 = vmatprep.mubr.f32.mxu0 %v190
      %1081 = vmatmul.mubr.f32.gmra.mrb[0].mxu0 %v189
      %v1082 = vpop.f32.mrb[0].mxu0
      %v1083 = vadd.f32 0.0, %v1082
      %v1084 = vpop.f32.mrb[0].mxu0
      %1085 = vmatprep.mubr.f32.mxu0 %v193
      %1086 = vmatmul.mubr.f32.gmra.mrb[0].mxu0 %v192
      %v1087 = vpop.f32.mrb[0].mxu0
      %v1088 = vadd.f32 0.0, %v1087
      %v1089 = vpop.f32.mrb[0].mxu0
      %1090 = vdwg.mxu0
      %1091 = vmatprep.subr.mxu0 0.0
      %1092 = vmatpush1.msra.mxu0 %v978
      %1093 = vmatprep.subr.mxu0 0.0
      %1094 = vmatpush1.msra.mxu0 %v979
      %1095 = vmatprep.subr.mxu0 0.0
      %1096 = vmatpush1.msra.mxu0 %v980
      %1097 = vmatprep.subr.mxu0 0.0
      %1098 = vmatpush1.msra.mxu0 %v981
      %1099 = vmatprep.subr.mxu0 0.0
      %1100 = vmatpush1.msra.mxu0 0.0
      %1101 = vmatprep.subr.mxu0 0.0
      %1102 = vmatpush1.msra.mxu0 0.0
      %1103 = vmatprep.subr.mxu0 0.0
      %1104 = vmatpush1.msra.mxu0 0.0
      %1105 = vmatprep.subr.mxu0 0.0
      %1106 = vmatpush1.msra.mxu0 0.0
      %1107 = vmatprep.subr.mxu0 0.0
      %1108 = vmatpush1.msra.mxu0 0.0
      %1109 = vmatprep.subr.mxu0 0.0
      %1110 = vmatpush1.msra.mxu0 0.0
      %1111 = vmatprep.subr.mxu0 0.0
      %1112 = vmatpush1.msra.mxu0 0.0
      %1113 = vmatprep.subr.mxu0 0.0
      %1114 = vmatpush1.msra.mxu0 0.0
      %1115 = vmatprep.subr.mxu0 0.0
      %1116 = vmatpush1.msra.mxu0 0.0
      %1117 = vmatprep.subr.mxu0 0.0
      %1118 = vmatpush1.msra.mxu0 0.0
      %1119 = vmatprep.subr.mxu0 0.0
      %1120 = vmatpush1.msra.mxu0 0.0
      %1121 = vmatprep.subr.mxu0 0.0
      %1122 = vmatpush1.msra.mxu0 0.0
      %1123 = vmatprep.subr.mxu0 0.0
      %1124 = vmatpush1.msra.mxu0 0.0
      %1125 = vmatprep.subr.mxu0 0.0
      %1126 = vmatpush1.msra.mxu0 0.0
      %1127 = vmatprep.subr.mxu0 0.0
      %1128 = vmatpush1.msra.mxu0 0.0
      %1129 = vmatprep.subr.mxu0 0.0
      %1130 = vmatpush1.msra.mxu0 0.0
      %1131 = vmatprep.subr.mxu0 0.0
      %1132 = vmatpush1.msra.mxu0 0.0
      %1133 = vmatprep.subr.mxu0 0.0
      %1134 = vmatpush1.msra.mxu0 0.0
      %1135 = vmatprep.subr.mxu0 0.0
      %1136 = vmatpush1.msra.mxu0 0.0
      %1137 = vmatprep.subr.mxu0 0.0
      %1138 = vmatpush1.msra.mxu0 0.0
      %1139 = vmatprep.subr.mxu0 0.0
      %1140 = vmatpush1.msra.mxu0 0.0
      %1141 = vmatprep.subr.mxu0 0.0
      %1142 = vmatpush1.msra.mxu0 0.0
      %1143 = vmatprep.subr.mxu0 0.0
      %1144 = vmatpush1.msra.mxu0 0.0
      %1145 = vmatprep.subr.mxu0 0.0
      %1146 = vmatpush1.msra.mxu0 0.0
      %1147 = vmatprep.subr.mxu0 0.0
      %1148 = vmatpush1.msra.mxu0 0.0
      %1149 = vmatprep.subr.mxu0 0.0
      %1150 = vmatpush1.msra.mxu0 0.0
      %1151 = vmatprep.subr.mxu0 0.0
      %1152 = vmatpush1.msra.mxu0 0.0
      %1153 = vmatprep.subr.mxu0 0.0
      %1154 = vmatpush1.msra.mxu0 0.0
      %1155 = vmatprep.mubr.f32.mxu0 0.0
      %1156 = vmatmul.mubr.f32.gmra.mrb[0].mxu0 %v375
      %v1157 = vpop.f32.mrb[0].mxu0
      %v1158 = vadd.f32 %v1053, %v1157
      %v1159 = vpop.f32.mrb[0].mxu0
      %1160 = vmatprep.mubr.f32.mxu0 0.0
      %1161 = vmatmul.mubr.f32.gmra.mrb[0].mxu0 %v378
      %v1162 = vpop.f32.mrb[0].mxu0
      %v1163 = vadd.f32 %v1058, %v1162
      %v1164 = vpop.f32.mrb[0].mxu0
      %1165 = vmatprep.mubr.f32.mxu0 0.0
      %1166 = vmatmul.mubr.f32.gmra.mrb[0].mxu0 %v381
      %v1167 = vpop.f32.mrb[0].mxu0
      %v1168 = vadd.f32 %v1063, %v1167
      %v1169 = vpop.f32.mrb[0].mxu0
      %1170 = vmatprep.mubr.f32.mxu0 0.0
      %1171 = vmatmul.mubr.f32.gmra.mrb[0].mxu0 %v384
      %v1172 = vpop.f32.mrb[0].mxu0
      %v1173 = vadd.f32 %v1068, %v1172
      %v1174 = vpop.f32.mrb[0].mxu0
      %1175 = vmatprep.mubr.f32.mxu0 0.0
      %1176 = vmatmul.mubr.f32.gmra.mrb[0].mxu0 %v387
      %v1177 = vpop.f32.mrb[0].mxu0
      %v1178 = vadd.f32 %v1073, %v1177
      %v1179 = vpop.f32.mrb[0].mxu0
      %1180 = vmatprep.mubr.f32.mxu0 0.0
      %1181 = vmatmul.mubr.f32.gmra.mrb[0].mxu0 %v390
      %v1182 = vpop.f32.mrb[0].mxu0
      %v1183 = vadd.f32 %v1078, %v1182
      %v1184 = vpop.f32.mrb[0].mxu0
      %1185 = vmatprep.mubr.f32.mxu0 0.0
      %1186 = vmatmul.mubr.f32.gmra.mrb[0].mxu0 %v393
      %v1187 = vpop.f32.mrb[0].mxu0
      %v1188 = vadd.f32 %v1083, %v1187
      %v1189 = vpop.f32.mrb[0].mxu0
      %1190 = vmatprep.mubr.f32.mxu0 0.0
      %1191 = vmatmul.mubr.f32.gmra.mrb[0].mxu0 %v396
      %v1192 = vpop.f32.mrb[0].mxu0
      %v1193 = vadd.f32 %v1088, %v1192
      %v1194 = vpop.f32.mrb[0].mxu0
      %1195 = vdwg.mxu0
      %v1196 = vmax.f32 %v906, %v1158
      %v1197 = vmax.f32 %v907, %v1163
      %v1198 = vmax.f32 %v908, %v1168
      %v1199 = vmax.f32 %v909, %v1173
      %v1200 = vmax.f32 %v910, %v1178
      %v1201 = vmax.f32 %v911, %v1183
      %v1202 = vmax.f32 %v912, %v1188
      %v1203 = vmax.f32 %v913, %v1193
      %1204 = vrot.lane.b32.xlu0 %v608, 122
      %v1205 = vpop.permute.xlu0 %1204
      %1206 = vrot.lane.b32.xlu0 %v609, 122
      %v1207 = vpop.permute.xlu0 %1206
      %1208 = vrot.lane.b32.xlu0 %v610, 122
      %v1209 = vpop.permute.xlu0 %1208
      %1210 = vrot.lane.b32.xlu0 %v611, 122
      %v1211 = vpop.permute.xlu0 %1210
      %1212 = vrot.lane.b32.xlu0 %v612, 122
      %v1213 = vpop.permute.xlu0 %1212
      %1214 = vrot.lane.b32.xlu0 %v613, 122
      %v1215 = vpop.permute.xlu0 %1214
      %1216 = vrot.lane.b32.xlu0 %v614, 122
      %v1217 = vpop.permute.xlu0 %1216
      %1218 = vrot.lane.b32.xlu0 %v615, 122
      %v1219 = vpop.permute.xlu0 %1218
      %v1220 = vsel %vm364, %v1205, %v1207
      %v1221 = vsel %vm364, %v1209, %v1211
      %v1222 = vsel %vm364, %v1213, %v1215
      %v1223 = vsel %vm364, %v1217, %v1219
      %1228 = vmatprep.subr.mxu0 0.0
      %1229 = vmatpush1.msra.mxu0 %v214
      %1230 = vmatprep.subr.mxu0 0.0
      %1231 = vmatpush1.msra.mxu0 %v215
      %1232 = vmatprep.subr.mxu0 0.0
      %1233 = vmatpush1.msra.mxu0 %v216
      %1234 = vmatprep.subr.mxu0 0.0
      %1235 = vmatpush1.msra.mxu0 %v217
      %1236 = vmatprep.subr.mxu0 0.0
      %1237 = vmatpush1.msra.mxu0 %v283
      %1238 = vmatprep.subr.mxu0 0.0
      %1239 = vmatpush1.msra.mxu0 %v284
      %1240 = vmatprep.subr.mxu0 0.0
      %1241 = vmatpush1.msra.mxu0 %v285
      %1242 = vmatprep.subr.mxu0 0.0
      %1243 = vmatpush1.msra.mxu0 %v286
      %1244 = vmatprep.subr.mxu0 0.0
      %1245 = vmatpush1.msra.mxu0 %v664
      %1246 = vmatprep.subr.mxu0 0.0
      %1247 = vmatpush1.msra.mxu0 %v665
      %1248 = vmatprep.subr.mxu0 0.0
      %1249 = vmatpush1.msra.mxu0 %v666
      %1250 = vmatprep.subr.mxu0 0.0
      %1251 = vmatpush1.msra.mxu0 %v667
      %1252 = vmatprep.subr.mxu0 0.0
      %1253 = vmatpush1.msra.mxu0 %v340
      %1254 = vmatprep.subr.mxu0 0.0
      %1255 = vmatpush1.msra.mxu0 %v341
      %1256 = vmatprep.subr.mxu0 0.0
      %1257 = vmatpush1.msra.mxu0 %v342
      %1258 = vmatprep.subr.mxu0 0.0
      %1259 = vmatpush1.msra.mxu0 %v343
      %1260 = vmatprep.subr.mxu0 0.0
      %1261 = vmatpush1.msra.mxu0 %v365
      %1262 = vmatprep.subr.mxu0 0.0
      %1263 = vmatpush1.msra.mxu0 %v366
      %1264 = vmatprep.subr.mxu0 0.0
      %1265 = vmatpush1.msra.mxu0 %v367
      %1266 = vmatprep.subr.mxu0 0.0
      %1267 = vmatpush1.msra.mxu0 %v368
      %1268 = vmatprep.subr.mxu0 0.0
      %1269 = vmatpush1.msra.mxu0 %v688
      %1270 = vmatprep.subr.mxu0 0.0
      %1271 = vmatpush1.msra.mxu0 %v689
      %1272 = vmatprep.subr.mxu0 0.0
      %1273 = vmatpush1.msra.mxu0 %v690
      %1274 = vmatprep.subr.mxu0 0.0
      %1275 = vmatpush1.msra.mxu0 %v691
      %1276 = vmatprep.subr.mxu0 0.0
      %1277 = vmatpush1.msra.mxu0 %v954
      %1278 = vmatprep.subr.mxu0 0.0
      %1279 = vmatpush1.msra.mxu0 %v955
      %1280 = vmatprep.subr.mxu0 0.0
      %1281 = vmatpush1.msra.mxu0 %v956
      %1282 = vmatprep.subr.mxu0 0.0
      %1283 = vmatpush1.msra.mxu0 %v957
      %1284 = vmatprep.subr.mxu0 0.0
      %1285 = vmatpush1.msra.mxu0 %v978
      %1286 = vmatprep.subr.mxu0 0.0
      %1287 = vmatpush1.msra.mxu0 %v979
      %1288 = vmatprep.subr.mxu0 0.0
      %1289 = vmatpush1.msra.mxu0 %v980
      %1290 = vmatprep.subr.mxu0 0.0
      %1291 = vmatpush1.msra.mxu0 %v981
      %1292 = vmatprep.mubr.f32.mxu0 %v172
      %1293 = vmatmul.mubr.f32.gmra.mrb[0].mxu0 %v171
      %v1294 = vpop.f32.mrb[0].mxu0
      %v1295 = vadd.f32 0.0, %v1294
      %v1296 = vpop.f32.mrb[0].mxu0
      %1297 = vmatprep.mubr.f32.mxu0 %v175
      %1298 = vmatmul.mubr.f32.gmra.mrb[0].mxu0 %v174
      %v1299 = vpop.f32.mrb[0].mxu0
      %v1300 = vadd.f32 0.0, %v1299
      %v1301 = vpop.f32.mrb[0].mxu0
      %1302 = vmatprep.mubr.f32.mxu0 %v178
      %1303 = vmatmul.mubr.f32.gmra.mrb[0].mxu0 %v177
      %v1304 = vpop.f32.mrb[0].mxu0
      %v1305 = vadd.f32 0.0, %v1304
      %v1306 = vpop.f32.mrb[0].mxu0
      %1307 = vmatprep.mubr.f32.mxu0 %v181
      %1308 = vmatmul.mubr.f32.gmra.mrb[0].mxu0 %v180
      %v1309 = vpop.f32.mrb[0].mxu0
      %v1310 = vadd.f32 0.0, %v1309
      %v1311 = vpop.f32.mrb[0].mxu0
      %1312 = vmatprep.mubr.f32.mxu0 %v184
      %1313 = vmatmul.mubr.f32.gmra.mrb[0].mxu0 %v183
      %v1314 = vpop.f32.mrb[0].mxu0
      %v1315 = vadd.f32 0.0, %v1314
      %v1316 = vpop.f32.mrb[0].mxu0
      %1317 = vmatprep.mubr.f32.mxu0 %v187
      %1318 = vmatmul.mubr.f32.gmra.mrb[0].mxu0 %v186
      %v1319 = vpop.f32.mrb[0].mxu0
      %v1320 = vadd.f32 0.0, %v1319
      %v1321 = vpop.f32.mrb[0].mxu0
      %1322 = vmatprep.mubr.f32.mxu0 %v190
      %1323 = vmatmul.mubr.f32.gmra.mrb[0].mxu0 %v189
      %v1324 = vpop.f32.mrb[0].mxu0
      %v1325 = vadd.f32 0.0, %v1324
      %v1326 = vpop.f32.mrb[0].mxu0
      %1327 = vmatprep.mubr.f32.mxu0 %v193
      %1328 = vmatmul.mubr.f32.gmra.mrb[0].mxu0 %v192
      %v1329 = vpop.f32.mrb[0].mxu0
      %v1330 = vadd.f32 0.0, %v1329
      %v1331 = vpop.f32.mrb[0].mxu0
      %1332 = vdwg.mxu0
      %1333 = vmatprep.subr.mxu0 0.0
      %1334 = vmatpush1.msra.mxu0 %v1220
      %1335 = vmatprep.subr.mxu0 0.0
      %1336 = vmatpush1.msra.mxu0 %v1221
      %1337 = vmatprep.subr.mxu0 0.0
      %1338 = vmatpush1.msra.mxu0 %v1222
      %1339 = vmatprep.subr.mxu0 0.0
      %1340 = vmatpush1.msra.mxu0 %v1223
      %1341 = vmatprep.subr.mxu0 0.0
      %1342 = vmatpush1.msra.mxu0 0.0
      %1343 = vmatprep.subr.mxu0 0.0
      %1344 = vmatpush1.msra.mxu0 0.0
      %1345 = vmatprep.subr.mxu0 0.0
      %1346 = vmatpush1.msra.mxu0 0.0
      %1347 = vmatprep.subr.mxu0 0.0
      %1348 = vmatpush1.msra.mxu0 0.0
      %1349 = vmatprep.subr.mxu0 0.0
      %1350 = vmatpush1.msra.mxu0 0.0
      %1351 = vmatprep.subr.mxu0 0.0
      %1352 = vmatpush1.msra.mxu0 0.0
      %1353 = vmatprep.subr.mxu0 0.0
      %1354 = vmatpush1.msra.mxu0 0.0
      %1355 = vmatprep.subr.mxu0 0.0
      %1356 = vmatpush1.msra.mxu0 0.0
      %1357 = vmatprep.subr.mxu0 0.0
      %1358 = vmatpush1.msra.mxu0 0.0
      %1359 = vmatprep.subr.mxu0 0.0
      %1360 = vmatpush1.msra.mxu0 0.0
      %1361 = vmatprep.subr.mxu0 0.0
      %1362 = vmatpush1.msra.mxu0 0.0
      %1363 = vmatprep.subr.mxu0 0.0
      %1364 = vmatpush1.msra.mxu0 0.0
      %1365 = vmatprep.subr.mxu0 0.0
      %1366 = vmatpush1.msra.mxu0 0.0
      %1367 = vmatprep.subr.mxu0 0.0
      %1368 = vmatpush1.msra.mxu0 0.0
      %1369 = vmatprep.subr.mxu0 0.0
      %1370 = vmatpush1.msra.mxu0 0.0
      %1371 = vmatprep.subr.mxu0 0.0
      %1372 = vmatpush1.msra.mxu0 0.0
      %1373 = vmatprep.subr.mxu0 0.0
      %1374 = vmatpush1.msra.mxu0 0.0
      %1375 = vmatprep.subr.mxu0 0.0
      %1376 = vmatpush1.msra.mxu0 0.0
      %1377 = vmatprep.subr.mxu0 0.0
      %1378 = vmatpush1.msra.mxu0 0.0
      %1379 = vmatprep.subr.mxu0 0.0
      %1380 = vmatpush1.msra.mxu0 0.0
      %1381 = vmatprep.subr.mxu0 0.0
      %1382 = vmatpush1.msra.mxu0 0.0
      %1383 = vmatprep.subr.mxu0 0.0
      %1384 = vmatpush1.msra.mxu0 0.0
      %1385 = vmatprep.subr.mxu0 0.0
      %1386 = vmatpush1.msra.mxu0 0.0
      %1387 = vmatprep.subr.mxu0 0.0
      %1388 = vmatpush1.msra.mxu0 0.0
      %1389 = vmatprep.subr.mxu0 0.0
      %1390 = vmatpush1.msra.mxu0 0.0
      %1391 = vmatprep.subr.mxu0 0.0
      %1392 = vmatpush1.msra.mxu0 0.0
      %1393 = vmatprep.subr.mxu0 0.0
      %1394 = vmatpush1.msra.mxu0 0.0
      %1395 = vmatprep.subr.mxu0 0.0
      %1396 = vmatpush1.msra.mxu0 0.0
      %1397 = vmatprep.mubr.f32.mxu0 0.0
      %1398 = vmatmul.mubr.f32.gmra.mrb[0].mxu0 %v375
      %v1399 = vpop.f32.mrb[0].mxu0
      %v1400 = vadd.f32 %v1295, %v1399
      %v1401 = vpop.f32.mrb[0].mxu0
      %1402 = vmatprep.mubr.f32.mxu0 0.0
      %1403 = vmatmul.mubr.f32.gmra.mrb[0].mxu0 %v378
      %v1404 = vpop.f32.mrb[0].mxu0
      %v1405 = vadd.f32 %v1300, %v1404
      %v1406 = vpop.f32.mrb[0].mxu0
      %1407 = vmatprep.mubr.f32.mxu0 0.0
      %1408 = vmatmul.mubr.f32.gmra.mrb[0].mxu0 %v381
      %v1409 = vpop.f32.mrb[0].mxu0
      %v1410 = vadd.f32 %v1305, %v1409
      %v1411 = vpop.f32.mrb[0].mxu0
      %1412 = vmatprep.mubr.f32.mxu0 0.0
      %1413 = vmatmul.mubr.f32.gmra.mrb[0].mxu0 %v384
      %v1414 = vpop.f32.mrb[0].mxu0
      %v1415 = vadd.f32 %v1310, %v1414
      %v1416 = vpop.f32.mrb[0].mxu0
      %1417 = vmatprep.mubr.f32.mxu0 0.0
      %1418 = vmatmul.mubr.f32.gmra.mrb[0].mxu0 %v387
      %v1419 = vpop.f32.mrb[0].mxu0
      %v1420 = vadd.f32 %v1315, %v1419
      %v1421 = vpop.f32.mrb[0].mxu0
      %1422 = vmatprep.mubr.f32.mxu0 0.0
      %1423 = vmatmul.mubr.f32.gmra.mrb[0].mxu0 %v390
      %v1424 = vpop.f32.mrb[0].mxu0
      %v1425 = vadd.f32 %v1320, %v1424
      %v1426 = vpop.f32.mrb[0].mxu0
      %1427 = vmatprep.mubr.f32.mxu0 0.0
      %1428 = vmatmul.mubr.f32.gmra.mrb[0].mxu0 %v393
      %v1429 = vpop.f32.mrb[0].mxu0
      %v1430 = vadd.f32 %v1325, %v1429
      %v1431 = vpop.f32.mrb[0].mxu0
      %1432 = vmatprep.mubr.f32.mxu0 0.0
      %1433 = vmatmul.mubr.f32.gmra.mrb[0].mxu0 %v396
      %v1434 = vpop.f32.mrb[0].mxu0
      %v1435 = vadd.f32 %v1330, %v1434
      %v1436 = vpop.f32.mrb[0].mxu0
      %1437 = vdwg.mxu0
      %v1438 = vmax.f32 %v1196, %v1400
      %v1439 = vmax.f32 %v1197, %v1405
      %v1440 = vmax.f32 %v1198, %v1410
      %v1441 = vmax.f32 %v1199, %v1415
      %v1442 = vmax.f32 %v1200, %v1420
      %v1443 = vmax.f32 %v1201, %v1425
      %v1444 = vmax.f32 %v1202, %v1430
      %v1445 = vmax.f32 %v1203, %v1435
      %v1446 = vld [vmem:[%s2] sm:$0xff]
      %v1447 = vld [vmem:[%s2 + $0x8] sm:$0xff]
      %v1448 = vld [vmem:[%s2 + $0x10] sm:$0xff]
      %v1449 = vld [vmem:[%s2 + $0x18] sm:$0xff]
      %v1450 = vld [vmem:[%s2 + $0x20] sm:$0xff]
      %v1451 = vld [vmem:[%s2 + $0x28] sm:$0xff]
      %v1452 = vld [vmem:[%s2 + $0x30] sm:$0xff]
      %v1453 = vld [vmem:[%s2 + $0x38] sm:$0xff]
      %1455 = vset.pattern.permute.xlu0 0
      %1456 = vperm.xlu0 %1455, %v1446
      %v1457 = vpop.permute.xlu0 %1456
      %1460 = vset.pattern.permute.xlu0 0
      %1461 = vperm.xlu0 %1460, %v1447
      %v1462 = vpop.permute.xlu0 %1461
      %1465 = vset.pattern.permute.xlu0 0
      %1466 = vperm.xlu0 %1465, %v1448
      %v1467 = vpop.permute.xlu0 %1466
      %1470 = vset.pattern.permute.xlu0 0
      %1471 = vperm.xlu0 %1470, %v1449
      %v1472 = vpop.permute.xlu0 %1471
      %1475 = vset.pattern.permute.xlu0 0
      %1476 = vperm.xlu0 %1475, %v1450
      %v1477 = vpop.permute.xlu0 %1476
      %1480 = vset.pattern.permute.xlu0 0
      %1481 = vperm.xlu0 %1480, %v1451
      %v1482 = vpop.permute.xlu0 %1481
      %1485 = vset.pattern.permute.xlu0 0
      %1486 = vperm.xlu0 %1485, %v1452
      %v1487 = vpop.permute.xlu0 %1486
      %1490 = vset.pattern.permute.xlu0 0
      %1491 = vperm.xlu0 %1490, %v1453
      %v1492 = vpop.permute.xlu0 %1491
      %v1494 = vadd.f32 %v1438, %v1457
      %v1495 = vadd.f32 %v1439, %v1462
      %v1496 = vadd.f32 %v1440, %v1467
      %v1497 = vadd.f32 %v1441, %v1472
      %v1498 = vadd.f32 %v1442, %v1477
      %v1499 = vadd.f32 %v1443, %v1482
      %v1500 = vadd.f32 %v1444, %v1487
      %v1501 = vadd.f32 %v1445, %v1492
      %v1502 = vmax.f32 %v1494, 0.0
      %v1503 = vmax.f32 %v1495, 0.0
      %v1504 = vmax.f32 %v1496, 0.0
      %v1505 = vmax.f32 %v1497, 0.0
      %v1506 = vmax.f32 %v1498, 0.0
      %v1507 = vmax.f32 %v1499, 0.0
      %v1508 = vmax.f32 %v1500, 0.0
      %v1509 = vmax.f32 %v1501, 0.0
      %1510 = vst [vmem:[%s170] sm:$0xff] %v1502
      %1511 = vst [vmem:[%s170 + $0x8] sm:$0xff] %v1503
      %1512 = vst [vmem:[%s170 + $0x10] sm:$0xff] %v1504
      %1513 = vst [vmem:[%s170 + $0x18] sm:$0xff] %v1505
      %1514 = vst [vmem:[%s170 + $0x20] sm:$0xff] %v1506
      %1515 = vst [vmem:[%s170 + $0x28] sm:$0xff] %v1507
      %1516 = vst [vmem:[%s170 + $0x30] sm:$0xff] %v1508
      %1517 = vst [vmem:[%s170 + $0x38] sm:$0xff] %v1509
      %p1518 = scmp.lt.s32.totalorder %s14, 1
      %s1519 = scalar_select %p1518, %s14, 1
      %s1520 = smul.addr %s1519, 8
      %s1521 = smul.addr %s1520, 8
      %s1522 = scalar_lea.vmem %s3, %s1521
      // Predicated region
      $region33: #{lunar_lander_convnet_forward.4} parent=31 // pred_check
        %p1523 = pneg %p100
      $region34: #{lunar_lander_convnet_forward.4} parent=31 // pred_check_branch
        %1525 = sbr.rel (%p1523) target = $region36
      $region35: #{lunar_lander_convnet_forward.4} parent=31 // pred_region
        _
      $region36: #{lunar_lander_convnet_forward.4} parent=31 // pred_fallthru
        _
    $region32: #{lunar_lander_convnet_forward.4} parent=5 // pred_fallthru
      _
    %p1526 = scmp.le.s32.totalorder 2, %s9
    // Predicated region
    $region37: #{lunar_lander_convnet_forward.4} parent=5 // pred_check
      %p1527 = pneg %p1526
    $region38: #{lunar_lander_convnet_forward.4} parent=5 // pred_check_branch
      %1529 = sbr.rel (%p1527) target = $region40
    $region39: #{lunar_lander_convnet_forward.4} parent=5 // pred_region
      %s1530 = ssub.s32 %s9, 2
      // Predicated region
      $region41: #{lunar_lander_convnet_forward.4} parent=39 // pred_check
        %p1531 = pneg %p106
      $region42: #{lunar_lander_convnet_forward.4} parent=39 // pred_check_branch
        %1533 = sbr.rel (%p1531) target = $region44
      $region43: #{lunar_lander_convnet_forward.4} parent=39 // pred_region
        %p1534 = scmp.lt.s32.totalorder %s15, 1
        %s1535 = scalar_select %p1534, %s15, 1
        %s1536 = smul.addr %s1535, 8
        %s1537 = smul.addr %s1536, 8
        %s1538 = scalar_lea.vmem %s3, %s1537
      $region44: #{lunar_lander_convnet_forward.4} parent=39 // pred_fallthru
        _
    $region40: #{lunar_lander_convnet_forward.4} parent=5 // pred_fallthru
      _
  $region6: #{lunar_lander_convnet_forward.4} parent=0 // loop_footer
    %s13 = sadd.s32 1, %s9
  $region7: #{lunar_lander_convnet_forward.4} parent=0 // loop_footer_branch
    %8 = sbr.rel target = $region3
  $region8: #{lunar_lander_convnet_forward.4} parent=0 // loop_exit
    _

</llo_original>
